<compile_context>
chip_gen: v7x
topology: tpu7x:2x2x1
jax: 0.10.0
libtpu: 0.0.40
codegen_flags: <defaults>
</compile_context>

<pallas_src>
import functools

import jax
import jax.numpy as jnp
from jax.experimental import pallas as pl
from jax.experimental.pallas import tpu as pltpu

_EPS = 1e-5


# ----------------------------------------------------------------------------
# In-kernel building blocks (operate on VMEM values / refs)
# ----------------------------------------------------------------------------
def _conv3x3_bn_relu_pool(x, w_ref, shift, pool):
    """One fused layer on VMEM-resident data.

    x     : (H, W, Cin)  float32 activation value.
    w_ref : Ref (9, Cin, Cout) bf16, per-tap weights with BN scale folded in.
    shift : (1, Cout)    float32, folded conv-bias + BN shift.
    Returns (H', W', Cout) float32, H'=H//2, W'=W//2 if pool else (H, W).
    """
    h, w, cin = x.shape
    cout = w_ref.shape[-1]

    # Zero-pad H (major) and W (sublane) by 1 on each side, on VMEM values only.
    zr = jnp.zeros((1, w, cin), x.dtype)
    xp = jnp.concatenate([zr, x, zr], axis=0)                 # (h+2, w,   cin)
    zc = jnp.zeros((h + 2, 1, cin), x.dtype)
    xp = jnp.concatenate([zc, xp, zc], axis=1)                # (h+2, w+2, cin)

    # 3x3 conv as 9 accumulated MXU dots (accumulation is free on the MXU);
    # no (H*W, 9*Cin) patches buffer is ever materialized.
    acc = jnp.zeros((h * w, cout), jnp.float32)
    for dy in range(3):
        for dx in range(3):
            tap = xp[dy:dy + h, dx:dx + w, :].reshape(h * w, cin)
            acc = acc + jnp.dot(
                tap.astype(jnp.bfloat16),                     # bf16 MXU operands
                w_ref[dy * 3 + dx],                           # (Cin, Cout) bf16
                preferred_element_type=jnp.float32)

    # Epilogue in f32 on the VPU: folded bias/BN shift + ReLU.
    y = jnp.maximum(acc + shift, 0.0)                         # (h*w, cout)

    if pool:
        # W-pair max fused on the matmul-output layout, then H-pair max on
        # contiguous row pairs (pure row maxes).
        y = jnp.max(y.reshape(h * w // 2, 2, cout), axis=1)          # (h*w/2, cout)
        y = jnp.max(y.reshape(h // 2, 2, w // 2, cout), axis=1)      # (h/2, w/2, cout)
        return y
    return y.reshape(h, w, cout)


def fused_conv_block_kernel(*refs, num_conv, pool):
    """refs = (x_ref, w0_ref, s0_ref, ..., w{L-1}_ref, s{L-1}_ref, o_ref)."""
    x_ref, o_ref = refs[0], refs[-1]
    x = x_ref[...].reshape(x_ref.shape[1:])                   # (H, W, Cin)
    for layer in range(num_conv):
        w_ref = refs[1 + 2 * layer]
        shift = refs[2 + 2 * layer][...]
        x = _conv3x3_bn_relu_pool(x, w_ref, shift, pool)
    hf, wf, cout = x.shape
    # Lane-dense store: fold (Wf, Cout) into the lane axis so the HBM writeback
    # is a dense slab instead of Cout(=8)-lane masked stores.
    o_ref[...] = x.reshape(1, hf, wf * cout).astype(o_ref.dtype)


# ----------------------------------------------------------------------------
# Wrapper
# ----------------------------------------------------------------------------
def _vmem_budget_bytes(h, w, cin, cout, folded_params):
    """Estimate per-grid-step VMEM footprint (double-buffered input/output
    blocks + resident weights + padded activation + f32 accumulator), add a 4x
    margin, clamp to ~75% of this chip's VMEM (v7x 64 MiB vs v5e/v6e 128 MiB)."""
    in_block = h * w * cin * 4 * 2                            # x2 double buffering
    out_block = h * w * cout * 4 * 2
    weights = sum(int(wm.size) * wm.dtype.itemsize + int(sh.size) * 4
                  for wm, sh in folded_params)
    padded_act = (h + 2) * (w + 2) * max(cin, cout) * 4
    acc = h * w * cout * 4
    est = in_block + out_block + weights + padded_act + acc
    try:
        vmem_cap = pltpu.get_tpu_info().vmem_capacity_bytes
    except Exception:
        vmem_cap = 64 * 1024 * 1024                           # v7x-safe fallback
    return int(min(max(4 * est, 16 * 1024 * 1024), 0.75 * vmem_cap))


def conv_block_forward(x_nchw, folded_params, pool):
    """x_nchw: (N, Cin, H, W); folded_params: list of (w_taps(9,Cin,Cout) bf16,
    shift(1,Cout) f32)."""
    x = jnp.transpose(x_nchw, (0, 2, 3, 1)).astype(jnp.float32)   # NCHW -> NHWC
    n, h, w, cin = x.shape
    num_conv = len(folded_params)
    cout = folded_params[-1][0].shape[-1]

    if pool:
        assert h % (2 ** num_conv) == 0 and w % (2 ** num_conv) == 0
        hf, wf = h // (2 ** num_conv), w // (2 ** num_conv)
    else:
        hf, wf = h, w

    inputs = [x]
    # One image per grid step; weights/shifts with constant index_maps stay
    # VMEM resident across steps.
    in_specs = [pl.BlockSpec((1, h, w, cin), lambda b: (b, 0, 0, 0))]
    for (wtap, shift) in folded_params:
        inputs += [wtap, shift]
        in_specs += [
            pl.BlockSpec(tuple(wtap.shape), lambda b: (0, 0, 0)),
            pl.BlockSpec(tuple(shift.shape), lambda b: (0, 0)),
        ]
    out_spec = pl.BlockSpec((1, hf, wf * cout), lambda b: (b, 0, 0))

    kernel = functools.partial(fused_conv_block_kernel, num_conv=num_conv, pool=pool)
    out = pl.pallas_call(
        kernel,
        out_shape=jax.ShapeDtypeStruct((n, hf, wf * cout), jnp.float32),
        grid=(n,),
        in_specs=in_specs,
        out_specs=out_spec,
        compiler_params=pltpu.CompilerParams(
            dimension_semantics=("parallel",),                # megacore on v7x
            vmem_limit_bytes=_vmem_budget_bytes(h, w, cin, cout, folded_params),
        ),
    )(*inputs)
    out = out.reshape(n, hf, wf, cout)                        # un-flatten lanes
    return jnp.transpose(out, (0, 3, 1, 2))                   # NHWC -> NCHW


# ----------------------------------------------------------------------------
# Parameters (PyTorch-equivalent shapes) + folding + pure-JAX reference
# ----------------------------------------------------------------------------
def init_conv_block_params(key, in_features, out_features, num_conv):
    """Deterministic synthetic raw parameters (same shapes as the PyTorch module)."""
    features = [in_features] + [out_features] * num_conv
    raw = []
    for i in range(len(features) - 1):
        cin, cout = features[i], features[i + 1]
        key, kw, kb, kg, kbeta = jax.random.split(key, 5)
        w = jax.random.normal(kw, (cout, cin, 3, 3), jnp.float32) * 0.1   # OIHW
        b = jax.random.normal(kb, (cout,), jnp.float32) * 0.05
        gamma = 1.0 + 0.1 * jax.random.normal(kg, (cout,), jnp.float32)
        beta = 0.1 * jax.random.normal(kbeta, (cout,), jnp.float32)
        mean = jnp.zeros((cout,), jnp.float32)     # init-time running stats
        var = jnp.ones((cout,), jnp.float32)
        raw.append((w, b, gamma, beta, mean, var))
    return raw


def fold_params(raw_params, eps=_EPS):
    """Fold conv bias + inference BatchNorm into per-tap bf16 weights + f32 shift."""
    folded = []
    for (w, b, gamma, beta, mean, var) in raw_params:
        cout, cin = w.shape[0], w.shape[1]
        scale = gamma / jnp.sqrt(var + eps)                               # (Cout,)
        shift = beta + (b - mean) * scale                                 # (Cout,)
        # (Cout,Cin,3,3) -> (3,3,Cin,Cout) -> (9,Cin,Cout), BN scale folded in;
        # stored bf16 once here (MXU-native on v6e/v7x).
        wtap = (jnp.transpose(w, (2, 3, 1, 0)).reshape(9, cin, cout)
                * scale[None, None, :]).astype(jnp.bfloat16)
        folded.append((wtap, shift.reshape(1, cout).astype(jnp.float32)))
    return folded


def reference_forward(x_nchw, raw_params, pool, eps=_EPS):
    """Pure-JAX reference (lax.conv + BN(inference) + ReLU [+ pool]) in NCHW, f32."""
    x = x_nchw
    for (w, b, gamma, beta, mean, var) in raw_params:
        y = jax.lax.conv_general_dilated(
            x, w, window_strides=(1, 1), padding=((1, 1), (1, 1)),
            dimension_numbers=("NCHW", "OIHW", "NCHW"),
            precision=jax.lax.Precision.HIGHEST)
        y = y + b[None, :, None, None]
        y = (y - mean[None, :, None, None]) / jnp.sqrt(var[None, :, None, None] + eps)
        y = y * gamma[None, :, None, None] + beta[None, :, None, None]
        y = jnp.maximum(y, 0.0)
        if pool:
            nb, c, hh, ww = y.shape
            y = jnp.max(y.reshape(nb, c, hh, ww // 2, 2), axis=4)
            y = jnp.max(y.reshape(nb, c, hh // 2, 2, ww // 2), axis=3)
        x = y
    return x


# ----------------------------------------------------------------------------
if __name__ == "__main__":
    # ConvBlock(in_features=4, out_features=8, num_conv=2, pool=True)
    N, Cin, H, W = 2, 4, 16, 16
    out_features, num_conv, pool = 8, 2, True

    key = jax.random.PRNGKey(0)
    key, kx = jax.random.split(key)
    x = jax.random.normal(kx, (N, Cin, H, W), jnp.float32)

    raw_params = init_conv_block_params(key, Cin, out_features, num_conv)
    params = fold_params(raw_params)

    out = conv_block_forward(x, params, pool)
    out = jax.block_until_ready(out)

    expected_spatial = H // (2 ** num_conv) if pool else H
    assert out.shape == (N, out_features, expected_spatial, expected_spatial), out.shape
    assert bool(jnp.all(jnp.isfinite(out)))

    # bf16 MXU operands (per perf review) -> expect ~1e-2-level error vs the
    # fp32 HIGHEST-precision reference; blessed tolerance below.
    ref = reference_forward(x, raw_params, pool)
    max_err = float(jnp.max(jnp.abs(out - ref)))
    assert max_err < 1e-1, f"max abs error vs reference: {max_err}"

    print("KERNEL_OK")
</pallas_src>

<mosaic_0001>
module attributes {stable_mosaic.version = 11 : i64} {
  func.func @fused_conv_block_kernel(%arg0: i32, %arg1: memref<1x16x16x4xf32, #tpu.memory_space<vmem>>, %arg2: memref<9x4x8xbf16, #tpu.memory_space<vmem>>, %arg3: memref<1x8xf32, #tpu.memory_space<vmem>>, %arg4: memref<9x8x8xbf16, #tpu.memory_space<vmem>>, %arg5: memref<1x8xf32, #tpu.memory_space<vmem>>, %arg6: memref<1x4x32xf32, #tpu.memory_space<vmem>>) attributes {dimension_semantics = [#tpu.dimension_semantics<parallel>], iteration_bounds = array<i64: 2>, scalar_prefetch = 0 : i64, scratch_operands = 0 : i64, tpu.core_type = #tpu.core_type<tc>, window_params = [{transform_indices = @transform_0, window_bounds = array<i64: 1, 16, 16, 4>}, {pipeline_mode = #tpu.pipeline_mode<synchronous>, transform_indices = @transform_1, window_bounds = array<i64: 9, 4, 8>}, {pipeline_mode = #tpu.pipeline_mode<synchronous>, transform_indices = @transform_2, window_bounds = array<i64: 1, 8>}, {pipeline_mode = #tpu.pipeline_mode<synchronous>, transform_indices = @transform_3, window_bounds = array<i64: 9, 8, 8>}, {pipeline_mode = #tpu.pipeline_mode<synchronous>, transform_indices = @transform_4, window_bounds = array<i64: 1, 8>}, {transform_indices = @transform_5, window_bounds = array<i64: 1, 4, 32>}]} {
    %c0 = arith.constant 0 : index
    %c0_0 = arith.constant 0 : index
    %c0_1 = arith.constant 0 : index
    %c0_2 = arith.constant 0 : index
    %0 = vector.load %arg1[%c0, %c0_0, %c0_1, %c0_2] : memref<1x16x16x4xf32, #tpu.memory_space<vmem>>, vector<1x16x16x4xf32>
    %1 = vector.shape_cast %0 : vector<1x16x16x4xf32> to vector<16x16x4xf32>
    %c0_3 = arith.constant 0 : index
    %c0_4 = arith.constant 0 : index
    %2 = vector.load %arg3[%c0_3, %c0_4] : memref<1x8xf32, #tpu.memory_space<vmem>>, vector<1x8xf32>
    %cst = arith.constant 0.000000e+00 : f32
    %3 = vector.broadcast %cst : f32 to vector<1x16x4xf32>
    %4 = tpu.concatenate %3, %1, %3 in 0 : vector<1x16x4xf32>, vector<16x16x4xf32>, vector<1x16x4xf32> -> vector<18x16x4xf32>
    %cst_5 = arith.constant 0.000000e+00 : f32
    %5 = vector.broadcast %cst_5 : f32 to vector<18x1x4xf32>
    %6 = tpu.concatenate %5, %4, %5 in 1 : vector<18x1x4xf32>, vector<18x16x4xf32>, vector<18x1x4xf32> -> vector<18x18x4xf32>
    %cst_6 = arith.constant 0.000000e+00 : f32
    %7 = vector.broadcast %cst_6 : f32 to vector<256x8xf32>
    %8 = vector.extract_strided_slice %6 {offsets = [0, 0, 0], sizes = [16, 16, 4], strides = [1, 1, 1]} : vector<18x18x4xf32> to vector<16x16x4xf32>
    %9 = vector.shape_cast %8 : vector<16x16x4xf32> to vector<256x4xf32>
    %10 = arith.truncf %9 : vector<256x4xf32> to vector<256x4xbf16>
    %c0_7 = arith.constant 0 : index
    %c0_8 = arith.constant 0 : index
    %c0_9 = arith.constant 0 : index
    %11 = vector.load %arg2[%c0_7, %c0_8, %c0_9] : memref<9x4x8xbf16, #tpu.memory_space<vmem>>, vector<1x4x8xbf16>
    %12 = vector.shape_cast %11 : vector<1x4x8xbf16> to vector<4x8xbf16>
    %cst_10 = arith.constant dense<0.000000e+00> : vector<256x8xf32>
    %13 = tpu.matmul %10, %12, %cst_10 {dimension_numbers = #tpu.dot_dimension_numbers<[1], [0], [0], [1], [0, 0, 1, 1], [], []>} : vector<256x4xbf16>, vector<4x8xbf16>, vector<256x8xf32> -> vector<256x8xf32>
    %14 = arith.addf %7, %13 : vector<256x8xf32>
    %15 = vector.extract_strided_slice %6 {offsets = [0, 1, 0], sizes = [16, 16, 4], strides = [1, 1, 1]} : vector<18x18x4xf32> to vector<16x16x4xf32>
    %16 = vector.shape_cast %15 : vector<16x16x4xf32> to vector<256x4xf32>
    %17 = arith.truncf %16 : vector<256x4xf32> to vector<256x4xbf16>
    %c1 = arith.constant 1 : index
    %c0_11 = arith.constant 0 : index
    %c0_12 = arith.constant 0 : index
    %18 = vector.load %arg2[%c1, %c0_11, %c0_12] : memref<9x4x8xbf16, #tpu.memory_space<vmem>>, vector<1x4x8xbf16>
    %19 = vector.shape_cast %18 : vector<1x4x8xbf16> to vector<4x8xbf16>
    %cst_13 = arith.constant dense<0.000000e+00> : vector<256x8xf32>
    %20 = tpu.matmul %17, %19, %cst_13 {dimension_numbers = #tpu.dot_dimension_numbers<[1], [0], [0], [1], [0, 0, 1, 1], [], []>} : vector<256x4xbf16>, vector<4x8xbf16>, vector<256x8xf32> -> vector<256x8xf32>
    %21 = arith.addf %14, %20 : vector<256x8xf32>
    %22 = vector.extract_strided_slice %6 {offsets = [0, 2, 0], sizes = [16, 16, 4], strides = [1, 1, 1]} : vector<18x18x4xf32> to vector<16x16x4xf32>
    %23 = vector.shape_cast %22 : vector<16x16x4xf32> to vector<256x4xf32>
    %24 = arith.truncf %23 : vector<256x4xf32> to vector<256x4xbf16>
    %c2 = arith.constant 2 : index
    %c0_14 = arith.constant 0 : index
    %c0_15 = arith.constant 0 : index
    %25 = vector.load %arg2[%c2, %c0_14, %c0_15] : memref<9x4x8xbf16, #tpu.memory_space<vmem>>, vector<1x4x8xbf16>
    %26 = vector.shape_cast %25 : vector<1x4x8xbf16> to vector<4x8xbf16>
    %cst_16 = arith.constant dense<0.000000e+00> : vector<256x8xf32>
    %27 = tpu.matmul %24, %26, %cst_16 {dimension_numbers = #tpu.dot_dimension_numbers<[1], [0], [0], [1], [0, 0, 1, 1], [], []>} : vector<256x4xbf16>, vector<4x8xbf16>, vector<256x8xf32> -> vector<256x8xf32>
    %28 = arith.addf %21, %27 : vector<256x8xf32>
    %29 = vector.extract_strided_slice %6 {offsets = [1, 0, 0], sizes = [16, 16, 4], strides = [1, 1, 1]} : vector<18x18x4xf32> to vector<16x16x4xf32>
    %30 = vector.shape_cast %29 : vector<16x16x4xf32> to vector<256x4xf32>
    %31 = arith.truncf %30 : vector<256x4xf32> to vector<256x4xbf16>
    %c3 = arith.constant 3 : index
    %c0_17 = arith.constant 0 : index
    %c0_18 = arith.constant 0 : index
    %32 = vector.load %arg2[%c3, %c0_17, %c0_18] : memref<9x4x8xbf16, #tpu.memory_space<vmem>>, vector<1x4x8xbf16>
    %33 = vector.shape_cast %32 : vector<1x4x8xbf16> to vector<4x8xbf16>
    %cst_19 = arith.constant dense<0.000000e+00> : vector<256x8xf32>
    %34 = tpu.matmul %31, %33, %cst_19 {dimension_numbers = #tpu.dot_dimension_numbers<[1], [0], [0], [1], [0, 0, 1, 1], [], []>} : vector<256x4xbf16>, vector<4x8xbf16>, vector<256x8xf32> -> vector<256x8xf32>
    %35 = arith.addf %28, %34 : vector<256x8xf32>
    %36 = vector.extract_strided_slice %6 {offsets = [1, 1, 0], sizes = [16, 16, 4], strides = [1, 1, 1]} : vector<18x18x4xf32> to vector<16x16x4xf32>
    %37 = vector.shape_cast %36 : vector<16x16x4xf32> to vector<256x4xf32>
    %38 = arith.truncf %37 : vector<256x4xf32> to vector<256x4xbf16>
    %c4 = arith.constant 4 : index
    %c0_20 = arith.constant 0 : index
    %c0_21 = arith.constant 0 : index
    %39 = vector.load %arg2[%c4, %c0_20, %c0_21] : memref<9x4x8xbf16, #tpu.memory_space<vmem>>, vector<1x4x8xbf16>
    %40 = vector.shape_cast %39 : vector<1x4x8xbf16> to vector<4x8xbf16>
    %cst_22 = arith.constant dense<0.000000e+00> : vector<256x8xf32>
    %41 = tpu.matmul %38, %40, %cst_22 {dimension_numbers = #tpu.dot_dimension_numbers<[1], [0], [0], [1], [0, 0, 1, 1], [], []>} : vector<256x4xbf16>, vector<4x8xbf16>, vector<256x8xf32> -> vector<256x8xf32>
    %42 = arith.addf %35, %41 : vector<256x8xf32>
    %43 = vector.extract_strided_slice %6 {offsets = [1, 2, 0], sizes = [16, 16, 4], strides = [1, 1, 1]} : vector<18x18x4xf32> to vector<16x16x4xf32>
    %44 = vector.shape_cast %43 : vector<16x16x4xf32> to vector<256x4xf32>
    %45 = arith.truncf %44 : vector<256x4xf32> to vector<256x4xbf16>
    %c5 = arith.constant 5 : index
    %c0_23 = arith.constant 0 : index
    %c0_24 = arith.constant 0 : index
    %46 = vector.load %arg2[%c5, %c0_23, %c0_24] : memref<9x4x8xbf16, #tpu.memory_space<vmem>>, vector<1x4x8xbf16>
    %47 = vector.shape_cast %46 : vector<1x4x8xbf16> to vector<4x8xbf16>
    %cst_25 = arith.constant dense<0.000000e+00> : vector<256x8xf32>
    %48 = tpu.matmul %45, %47, %cst_25 {dimension_numbers = #tpu.dot_dimension_numbers<[1], [0], [0], [1], [0, 0, 1, 1], [], []>} : vector<256x4xbf16>, vector<4x8xbf16>, vector<256x8xf32> -> vector<256x8xf32>
    %49 = arith.addf %42, %48 : vector<256x8xf32>
    %50 = vector.extract_strided_slice %6 {offsets = [2, 0, 0], sizes = [16, 16, 4], strides = [1, 1, 1]} : vector<18x18x4xf32> to vector<16x16x4xf32>
    %51 = vector.shape_cast %50 : vector<16x16x4xf32> to vector<256x4xf32>
    %52 = arith.truncf %51 : vector<256x4xf32> to vector<256x4xbf16>
    %c6 = arith.constant 6 : index
    %c0_26 = arith.constant 0 : index
    %c0_27 = arith.constant 0 : index
    %53 = vector.load %arg2[%c6, %c0_26, %c0_27] : memref<9x4x8xbf16, #tpu.memory_space<vmem>>, vector<1x4x8xbf16>
    %54 = vector.shape_cast %53 : vector<1x4x8xbf16> to vector<4x8xbf16>
    %cst_28 = arith.constant dense<0.000000e+00> : vector<256x8xf32>
    %55 = tpu.matmul %52, %54, %cst_28 {dimension_numbers = #tpu.dot_dimension_numbers<[1], [0], [0], [1], [0, 0, 1, 1], [], []>} : vector<256x4xbf16>, vector<4x8xbf16>, vector<256x8xf32> -> vector<256x8xf32>
    %56 = arith.addf %49, %55 : vector<256x8xf32>
    %57 = vector.extract_strided_slice %6 {offsets = [2, 1, 0], sizes = [16, 16, 4], strides = [1, 1, 1]} : vector<18x18x4xf32> to vector<16x16x4xf32>
    %58 = vector.shape_cast %57 : vector<16x16x4xf32> to vector<256x4xf32>
    %59 = arith.truncf %58 : vector<256x4xf32> to vector<256x4xbf16>
    %c7 = arith.constant 7 : index
    %c0_29 = arith.constant 0 : index
    %c0_30 = arith.constant 0 : index
    %60 = vector.load %arg2[%c7, %c0_29, %c0_30] : memref<9x4x8xbf16, #tpu.memory_space<vmem>>, vector<1x4x8xbf16>
    %61 = vector.shape_cast %60 : vector<1x4x8xbf16> to vector<4x8xbf16>
    %cst_31 = arith.constant dense<0.000000e+00> : vector<256x8xf32>
    %62 = tpu.matmul %59, %61, %cst_31 {dimension_numbers = #tpu.dot_dimension_numbers<[1], [0], [0], [1], [0, 0, 1, 1], [], []>} : vector<256x4xbf16>, vector<4x8xbf16>, vector<256x8xf32> -> vector<256x8xf32>
    %63 = arith.addf %56, %62 : vector<256x8xf32>
    %64 = vector.extract_strided_slice %6 {offsets = [2, 2, 0], sizes = [16, 16, 4], strides = [1, 1, 1]} : vector<18x18x4xf32> to vector<16x16x4xf32>
    %65 = vector.shape_cast %64 : vector<16x16x4xf32> to vector<256x4xf32>
    %66 = arith.truncf %65 : vector<256x4xf32> to vector<256x4xbf16>
    %c8 = arith.constant 8 : index
    %c0_32 = arith.constant 0 : index
    %c0_33 = arith.constant 0 : index
    %67 = vector.load %arg2[%c8, %c0_32, %c0_33] : memref<9x4x8xbf16, #tpu.memory_space<vmem>>, vector<1x4x8xbf16>
    %68 = vector.shape_cast %67 : vector<1x4x8xbf16> to vector<4x8xbf16>
    %cst_34 = arith.constant dense<0.000000e+00> : vector<256x8xf32>
    %69 = tpu.matmul %66, %68, %cst_34 {dimension_numbers = #tpu.dot_dimension_numbers<[1], [0], [0], [1], [0, 0, 1, 1], [], []>} : vector<256x4xbf16>, vector<4x8xbf16>, vector<256x8xf32> -> vector<256x8xf32>
    %70 = arith.addf %63, %69 : vector<256x8xf32>
    %71 = vector.broadcast %2 : vector<1x8xf32> to vector<256x8xf32>
    %72 = arith.addf %70, %71 : vector<256x8xf32>
    %cst_35 = arith.constant 0.000000e+00 : f32
    %73 = vector.broadcast %cst_35 : f32 to vector<256x8xf32>
    %74 = arith.maximumf %72, %73 : vector<256x8xf32>
    %75 = vector.shape_cast %74 : vector<256x8xf32> to vector<128x2x8xf32>
    %cst_36 = arith.constant dense<0xFF800000> : vector<128x8xf32>
    %76 = vector.multi_reduction <maximumf>, %75, %cst_36 [1] : vector<128x2x8xf32> to vector<128x8xf32>
    %77 = vector.shape_cast %76 : vector<128x8xf32> to vector<8x2x8x8xf32>
    %cst_37 = arith.constant dense<0xFF800000> : vector<8x8x8xf32>
    %78 = vector.multi_reduction <maximumf>, %77, %cst_37 [1] : vector<8x2x8x8xf32> to vector<8x8x8xf32>
    %c0_38 = arith.constant 0 : index
    %c0_39 = arith.constant 0 : index
    %79 = vector.load %arg5[%c0_38, %c0_39] : memref<1x8xf32, #tpu.memory_space<vmem>>, vector<1x8xf32>
    %cst_40 = arith.constant 0.000000e+00 : f32
    %80 = vector.broadcast %cst_40 : f32 to vector<1x8x8xf32>
    %81 = tpu.concatenate %80, %78, %80 in 0 : vector<1x8x8xf32>, vector<8x8x8xf32>, vector<1x8x8xf32> -> vector<10x8x8xf32>
    %cst_41 = arith.constant 0.000000e+00 : f32
    %82 = vector.broadcast %cst_41 : f32 to vector<10x1x8xf32>
    %83 = tpu.concatenate %82, %81, %82 in 1 : vector<10x1x8xf32>, vector<10x8x8xf32>, vector<10x1x8xf32> -> vector<10x10x8xf32>
    %cst_42 = arith.constant 0.000000e+00 : f32
    %84 = vector.broadcast %cst_42 : f32 to vector<64x8xf32>
    %85 = vector.extract_strided_slice %83 {offsets = [0, 0, 0], sizes = [8, 8, 8], strides = [1, 1, 1]} : vector<10x10x8xf32> to vector<8x8x8xf32>
    %86 = vector.shape_cast %85 : vector<8x8x8xf32> to vector<64x8xf32>
    %87 = arith.truncf %86 : vector<64x8xf32> to vector<64x8xbf16>
    %c0_43 = arith.constant 0 : index
    %c0_44 = arith.constant 0 : index
    %c0_45 = arith.constant 0 : index
    %88 = vector.load %arg4[%c0_43, %c0_44, %c0_45] : memref<9x8x8xbf16, #tpu.memory_space<vmem>>, vector<1x8x8xbf16>
    %89 = vector.shape_cast %88 : vector<1x8x8xbf16> to vector<8x8xbf16>
    %cst_46 = arith.constant dense<0.000000e+00> : vector<64x8xf32>
    %90 = tpu.matmul %87, %89, %cst_46 {dimension_numbers = #tpu.dot_dimension_numbers<[1], [0], [0], [1], [0, 0, 1, 1], [], []>} : vector<64x8xbf16>, vector<8x8xbf16>, vector<64x8xf32> -> vector<64x8xf32>
    %91 = arith.addf %84, %90 : vector<64x8xf32>
    %92 = vector.extract_strided_slice %83 {offsets = [0, 1, 0], sizes = [8, 8, 8], strides = [1, 1, 1]} : vector<10x10x8xf32> to vector<8x8x8xf32>
    %93 = vector.shape_cast %92 : vector<8x8x8xf32> to vector<64x8xf32>
    %94 = arith.truncf %93 : vector<64x8xf32> to vector<64x8xbf16>
    %c1_47 = arith.constant 1 : index
    %c0_48 = arith.constant 0 : index
    %c0_49 = arith.constant 0 : index
    %95 = vector.load %arg4[%c1_47, %c0_48, %c0_49] : memref<9x8x8xbf16, #tpu.memory_space<vmem>>, vector<1x8x8xbf16>
    %96 = vector.shape_cast %95 : vector<1x8x8xbf16> to vector<8x8xbf16>
    %cst_50 = arith.constant dense<0.000000e+00> : vector<64x8xf32>
    %97 = tpu.matmul %94, %96, %cst_50 {dimension_numbers = #tpu.dot_dimension_numbers<[1], [0], [0], [1], [0, 0, 1, 1], [], []>} : vector<64x8xbf16>, vector<8x8xbf16>, vector<64x8xf32> -> vector<64x8xf32>
    %98 = arith.addf %91, %97 : vector<64x8xf32>
    %99 = vector.extract_strided_slice %83 {offsets = [0, 2, 0], sizes = [8, 8, 8], strides = [1, 1, 1]} : vector<10x10x8xf32> to vector<8x8x8xf32>
    %100 = vector.shape_cast %99 : vector<8x8x8xf32> to vector<64x8xf32>
    %101 = arith.truncf %100 : vector<64x8xf32> to vector<64x8xbf16>
    %c2_51 = arith.constant 2 : index
    %c0_52 = arith.constant 0 : index
    %c0_53 = arith.constant 0 : index
    %102 = vector.load %arg4[%c2_51, %c0_52, %c0_53] : memref<9x8x8xbf16, #tpu.memory_space<vmem>>, vector<1x8x8xbf16>
    %103 = vector.shape_cast %102 : vector<1x8x8xbf16> to vector<8x8xbf16>
    %cst_54 = arith.constant dense<0.000000e+00> : vector<64x8xf32>
    %104 = tpu.matmul %101, %103, %cst_54 {dimension_numbers = #tpu.dot_dimension_numbers<[1], [0], [0], [1], [0, 0, 1, 1], [], []>} : vector<64x8xbf16>, vector<8x8xbf16>, vector<64x8xf32> -> vector<64x8xf32>
    %105 = arith.addf %98, %104 : vector<64x8xf32>
    %106 = vector.extract_strided_slice %83 {offsets = [1, 0, 0], sizes = [8, 8, 8], strides = [1, 1, 1]} : vector<10x10x8xf32> to vector<8x8x8xf32>
    %107 = vector.shape_cast %106 : vector<8x8x8xf32> to vector<64x8xf32>
    %108 = arith.truncf %107 : vector<64x8xf32> to vector<64x8xbf16>
    %c3_55 = arith.constant 3 : index
    %c0_56 = arith.constant 0 : index
    %c0_57 = arith.constant 0 : index
    %109 = vector.load %arg4[%c3_55, %c0_56, %c0_57] : memref<9x8x8xbf16, #tpu.memory_space<vmem>>, vector<1x8x8xbf16>
    %110 = vector.shape_cast %109 : vector<1x8x8xbf16> to vector<8x8xbf16>
    %cst_58 = arith.constant dense<0.000000e+00> : vector<64x8xf32>
    %111 = tpu.matmul %108, %110, %cst_58 {dimension_numbers = #tpu.dot_dimension_numbers<[1], [0], [0], [1], [0, 0, 1, 1], [], []>} : vector<64x8xbf16>, vector<8x8xbf16>, vector<64x8xf32> -> vector<64x8xf32>
    %112 = arith.addf %105, %111 : vector<64x8xf32>
    %113 = vector.extract_strided_slice %83 {offsets = [1, 1, 0], sizes = [8, 8, 8], strides = [1, 1, 1]} : vector<10x10x8xf32> to vector<8x8x8xf32>
    %114 = vector.shape_cast %113 : vector<8x8x8xf32> to vector<64x8xf32>
    %115 = arith.truncf %114 : vector<64x8xf32> to vector<64x8xbf16>
    %c4_59 = arith.constant 4 : index
    %c0_60 = arith.constant 0 : index
    %c0_61 = arith.constant 0 : index
    %116 = vector.load %arg4[%c4_59, %c0_60, %c0_61] : memref<9x8x8xbf16, #tpu.memory_space<vmem>>, vector<1x8x8xbf16>
    %117 = vector.shape_cast %116 : vector<1x8x8xbf16> to vector<8x8xbf16>
    %cst_62 = arith.constant dense<0.000000e+00> : vector<64x8xf32>
    %118 = tpu.matmul %115, %117, %cst_62 {dimension_numbers = #tpu.dot_dimension_numbers<[1], [0], [0], [1], [0, 0, 1, 1], [], []>} : vector<64x8xbf16>, vector<8x8xbf16>, vector<64x8xf32> -> vector<64x8xf32>
    %119 = arith.addf %112, %118 : vector<64x8xf32>
    %120 = vector.extract_strided_slice %83 {offsets = [1, 2, 0], sizes = [8, 8, 8], strides = [1, 1, 1]} : vector<10x10x8xf32> to vector<8x8x8xf32>
    %121 = vector.shape_cast %120 : vector<8x8x8xf32> to vector<64x8xf32>
    %122 = arith.truncf %121 : vector<64x8xf32> to vector<64x8xbf16>
    %c5_63 = arith.constant 5 : index
    %c0_64 = arith.constant 0 : index
    %c0_65 = arith.constant 0 : index
    %123 = vector.load %arg4[%c5_63, %c0_64, %c0_65] : memref<9x8x8xbf16, #tpu.memory_space<vmem>>, vector<1x8x8xbf16>
    %124 = vector.shape_cast %123 : vector<1x8x8xbf16> to vector<8x8xbf16>
    %cst_66 = arith.constant dense<0.000000e+00> : vector<64x8xf32>
    %125 = tpu.matmul %122, %124, %cst_66 {dimension_numbers = #tpu.dot_dimension_numbers<[1], [0], [0], [1], [0, 0, 1, 1], [], []>} : vector<64x8xbf16>, vector<8x8xbf16>, vector<64x8xf32> -> vector<64x8xf32>
    %126 = arith.addf %119, %125 : vector<64x8xf32>
    %127 = vector.extract_strided_slice %83 {offsets = [2, 0, 0], sizes = [8, 8, 8], strides = [1, 1, 1]} : vector<10x10x8xf32> to vector<8x8x8xf32>
    %128 = vector.shape_cast %127 : vector<8x8x8xf32> to vector<64x8xf32>
    %129 = arith.truncf %128 : vector<64x8xf32> to vector<64x8xbf16>
    %c6_67 = arith.constant 6 : index
    %c0_68 = arith.constant 0 : index
    %c0_69 = arith.constant 0 : index
    %130 = vector.load %arg4[%c6_67, %c0_68, %c0_69] : memref<9x8x8xbf16, #tpu.memory_space<vmem>>, vector<1x8x8xbf16>
    %131 = vector.shape_cast %130 : vector<1x8x8xbf16> to vector<8x8xbf16>
    %cst_70 = arith.constant dense<0.000000e+00> : vector<64x8xf32>
    %132 = tpu.matmul %129, %131, %cst_70 {dimension_numbers = #tpu.dot_dimension_numbers<[1], [0], [0], [1], [0, 0, 1, 1], [], []>} : vector<64x8xbf16>, vector<8x8xbf16>, vector<64x8xf32> -> vector<64x8xf32>
    %133 = arith.addf %126, %132 : vector<64x8xf32>
    %134 = vector.extract_strided_slice %83 {offsets = [2, 1, 0], sizes = [8, 8, 8], strides = [1, 1, 1]} : vector<10x10x8xf32> to vector<8x8x8xf32>
    %135 = vector.shape_cast %134 : vector<8x8x8xf32> to vector<64x8xf32>
    %136 = arith.truncf %135 : vector<64x8xf32> to vector<64x8xbf16>
    %c7_71 = arith.constant 7 : index
    %c0_72 = arith.constant 0 : index
    %c0_73 = arith.constant 0 : index
    %137 = vector.load %arg4[%c7_71, %c0_72, %c0_73] : memref<9x8x8xbf16, #tpu.memory_space<vmem>>, vector<1x8x8xbf16>
    %138 = vector.shape_cast %137 : vector<1x8x8xbf16> to vector<8x8xbf16>
    %cst_74 = arith.constant dense<0.000000e+00> : vector<64x8xf32>
    %139 = tpu.matmul %136, %138, %cst_74 {dimension_numbers = #tpu.dot_dimension_numbers<[1], [0], [0], [1], [0, 0, 1, 1], [], []>} : vector<64x8xbf16>, vector<8x8xbf16>, vector<64x8xf32> -> vector<64x8xf32>
    %140 = arith.addf %133, %139 : vector<64x8xf32>
    %141 = vector.extract_strided_slice %83 {offsets = [2, 2, 0], sizes = [8, 8, 8], strides = [1, 1, 1]} : vector<10x10x8xf32> to vector<8x8x8xf32>
    %142 = vector.shape_cast %141 : vector<8x8x8xf32> to vector<64x8xf32>
    %143 = arith.truncf %142 : vector<64x8xf32> to vector<64x8xbf16>
    %c8_75 = arith.constant 8 : index
    %c0_76 = arith.constant 0 : index
    %c0_77 = arith.constant 0 : index
    %144 = vector.load %arg4[%c8_75, %c0_76, %c0_77] : memref<9x8x8xbf16, #tpu.memory_space<vmem>>, vector<1x8x8xbf16>
    %145 = vector.shape_cast %144 : vector<1x8x8xbf16> to vector<8x8xbf16>
    %cst_78 = arith.constant dense<0.000000e+00> : vector<64x8xf32>
    %146 = tpu.matmul %143, %145, %cst_78 {dimension_numbers = #tpu.dot_dimension_numbers<[1], [0], [0], [1], [0, 0, 1, 1], [], []>} : vector<64x8xbf16>, vector<8x8xbf16>, vector<64x8xf32> -> vector<64x8xf32>
    %147 = arith.addf %140, %146 : vector<64x8xf32>
    %148 = vector.broadcast %79 : vector<1x8xf32> to vector<64x8xf32>
    %149 = arith.addf %147, %148 : vector<64x8xf32>
    %cst_79 = arith.constant 0.000000e+00 : f32
    %150 = vector.broadcast %cst_79 : f32 to vector<64x8xf32>
    %151 = arith.maximumf %149, %150 : vector<64x8xf32>
    %152 = vector.shape_cast %151 : vector<64x8xf32> to vector<32x2x8xf32>
    %cst_80 = arith.constant dense<0xFF800000> : vector<32x8xf32>
    %153 = vector.multi_reduction <maximumf>, %152, %cst_80 [1] : vector<32x2x8xf32> to vector<32x8xf32>
    %154 = vector.shape_cast %153 : vector<32x8xf32> to vector<4x2x4x8xf32>
    %cst_81 = arith.constant dense<0xFF800000> : vector<4x4x8xf32>
    %155 = vector.multi_reduction <maximumf>, %154, %cst_81 [1] : vector<4x2x4x8xf32> to vector<4x4x8xf32>
    %156 = vector.shape_cast %155 : vector<4x4x8xf32> to vector<1x4x32xf32>
    %c0_82 = arith.constant 0 : index
    %c0_83 = arith.constant 0 : index
    %c0_84 = arith.constant 0 : index
    %157 = vector.load %arg6[%c0_82, %c0_83, %c0_84] : memref<1x4x32xf32, #tpu.memory_space<vmem>>, vector<1x4x32xf32>
    tpu.vector_store %arg6[%c0_82, %c0_83, %c0_84], %156 {strides = array<i32>} : memref<1x4x32xf32, #tpu.memory_space<vmem>>, vector<1x4x32xf32>,
    return
  }
  func.func @transform_0(%arg0: i32) -> (i32, i32, i32, i32) {
    %c0_i32 = arith.constant 0 : i32
    %c0_i32_0 = arith.constant 0 : i32
    %c0_i32_1 = arith.constant 0 : i32
    %c0_i32_2 = arith.constant 0 : i32
    return %arg0, %c0_i32, %c0_i32_0, %c0_i32_1 : i32, i32, i32, i32
  }
  func.func @transform_1(%arg0: i32) -> (i32, i32, i32) {
    %c0_i32 = arith.constant 0 : i32
    %c0_i32_0 = arith.constant 0 : i32
    %c0_i32_1 = arith.constant 0 : i32
    %c0_i32_2 = arith.constant 0 : i32
    return %c0_i32, %c0_i32_0, %c0_i32_1 : i32, i32, i32
  }
  func.func @transform_2(%arg0: i32) -> (i32, i32) {
    %c0_i32 = arith.constant 0 : i32
    %c0_i32_0 = arith.constant 0 : i32
    %c0_i32_1 = arith.constant 0 : i32
    return %c0_i32, %c0_i32_0 : i32, i32
  }
  func.func @transform_3(%arg0: i32) -> (i32, i32, i32) {
    %c0_i32 = arith.constant 0 : i32
    %c0_i32_0 = arith.constant 0 : i32
    %c0_i32_1 = arith.constant 0 : i32
    %c0_i32_2 = arith.constant 0 : i32
    return %c0_i32, %c0_i32_0, %c0_i32_1 : i32, i32, i32
  }
  func.func @transform_4(%arg0: i32) -> (i32, i32) {
    %c0_i32 = arith.constant 0 : i32
    %c0_i32_0 = arith.constant 0 : i32
    %c0_i32_1 = arith.constant 0 : i32
    return %c0_i32, %c0_i32_0 : i32, i32
  }
  func.func @transform_5(%arg0: i32) -> (i32, i32, i32) {
    %c0_i32 = arith.constant 0 : i32
    %c0_i32_0 = arith.constant 0 : i32
    %c0_i32_1 = arith.constant 0 : i32
    return %arg0, %c0_i32, %c0_i32_0 : i32, i32, i32
  }
}

</mosaic_0001>

<llo_original>
// kernel: tpu_custom_call.1
$region0: #{tpu_custom_call.1}
  #allocation0 [shape = 'u32[]', space=smem, size = 0x4, offset = 0x4, fixed_abs, tag = 'smem constant byte address 0x4 - core index']
  #allocation1 [shape = 'u32[144,128]{1,0:T(1,128)}', space=vmem, size = 0x12000, scoped, tag = 'internal scratch']
  %s0 = inlined_call_operand.vmem [shape: f32[2,16,16,4], index: 0, kind: input, shape index: {}]
  %s1 = inlined_call_operand.vmem [shape: bf16[9,4,8], index: 1, kind: input, shape index: {}]
  %s2 = inlined_call_operand.vmem [shape: f32[1,8], index: 2, kind: input, shape index: {}]
  %s3 = inlined_call_operand.vmem [shape: bf16[9,8,8], index: 3, kind: input, shape index: {}]
  %s4 = inlined_call_operand.vmem [shape: f32[1,8], index: 4, kind: input, shape index: {}]
  %s5 = inlined_call_operand.hbm [shape: f32[2,4,32], index: 5, kind: output, shape index: {}]
  %s6 = sld [smem:[#allocation0]]
  $region53: #{tpu_custom_call.1} parent=0
    _
  %s8 = ssub.s32 1, %s6
  %s9 = scalar_select 0, %s8, %s6
  $region1: #{tpu_custom_call.1} parent=0
    #allocation2 [shape = 'u8[4096]{0}', space=vmem, size = 0x1000, scoped, tag = 'output window, operand 0']
    #allocation3 [shape = 's32[2]{0}', space=sflag, size = 0x8, scoped, tag = 'scoped memory for tpu_custom_call.1']
    %10 = vsyncpa [#allocation3], 0
    %s11 = scalar_lea.sflag [#allocation3], 1
    %12 = vsyncpa %s11, 0
    loop: start=0, step=1, limit=4
    $region2: #{tpu_custom_call.1} parent=1 // loop_pre_header
      _
    $region3: #{tpu_custom_call.1} parent=1 // loop_header
      %s14 = sphi 0, %s18
      %p15 = scmp.ge.s32.totalorder %s14, 4
      %s24 = sphi 0, %s26
      %s27 = sphi 0, %s24
      %s28 = sphi 0, %s27
      %s44 = sphi 0, %s28
      %s48 = sphi 0, %s48
      %s50 = sphi 0, %s48
      %s51 = sphi 0, %s50
      %s65 = sphi 0, %s51
      %s69 = sphi 0, %s69
      %s71 = sphi 0, %s69
      %s72 = sphi 0, %s71
      %s86 = sphi 0, %s72
      %s90 = sphi 0, %s90
      %s92 = sphi 0, %s90
      %s93 = sphi 0, %s92
      %s107 = sphi 0, %s93
      %s111 = sphi 0, %s111
      %s113 = sphi 0, %s111
      %s114 = sphi 0, %s113
      %s128 = sphi 0, %s114
      %s134 = sphi 0, %s136
      %s137 = sphi 0, %s134
      %s138 = sphi 0, %s137
      %s154 = sphi 0, %s138
    $region4: #{tpu_custom_call.1} parent=1 // loop_header_branch
      %17 = sbr.rel (%p15) target = $region8
    $region5: #{tpu_custom_call.1} parent=1 // loop_body
      %s19 = ssub.s32 %s14, 1
      %s20 = ssub.s32 %s14, 2
      %s21 = sadd.s32 %s14, 1
      %s22 = ssub.s32 %s14, %s21
      %p23 = scmp.eq.s32.totalorder %s22, 0
      %s25 = sadd.s32 %s24, 1
      %s26 = scalar_select %p23, %s24, %s25
      %p29 = pneg %p23
      %p30 = scmp.eq.s32.totalorder %s14, 1
      %p31 = por %p29, %p30
      %p32 = scmp.ne.s32.totalorder %s24, %s27
      %p33 = scmp.eq.s32.totalorder %s14, 0
      %p34 = por %p32, %p33
      %p35 = scmp.ne.s32.totalorder %s24, %s27
      %p36 = scmp.eq.s32.totalorder %s19, 1
      %p37 = por %p35, %p36
      %p38 = scmp.ne.s32.totalorder %s27, %s28
      %p39 = scmp.eq.s32.totalorder %s19, 0
      %p40 = por %p38, %p39
      %p41 = scmp.ne.s32.totalorder %s27, %s28
      %p42 = scmp.eq.s32.totalorder %s20, 1
      %p43 = por %p41, %p42
      %p45 = scmp.ne.s32.totalorder %s28, %s44
      %p46 = scmp.eq.s32.totalorder %s20, 0
      %p47 = por %p45, %p46
      %s49 = sadd.s32 %s48, 1
      %p52 = scmp.eq.s32.totalorder %s14, 1
      %p53 = scmp.ne.s32.totalorder %s48, %s50
      %p54 = scmp.eq.s32.totalorder %s14, 0
      %p55 = por %p53, %p54
      %p56 = scmp.ne.s32.totalorder %s48, %s50
      %p57 = scmp.eq.s32.totalorder %s19, 1
      %p58 = por %p56, %p57
      %p59 = scmp.ne.s32.totalorder %s50, %s51
      %p60 = scmp.eq.s32.totalorder %s19, 0
      %p61 = por %p59, %p60
      %p62 = scmp.ne.s32.totalorder %s50, %s51
      %p63 = scmp.eq.s32.totalorder %s20, 1
      %p64 = por %p62, %p63
      %p66 = scmp.ne.s32.totalorder %s51, %s65
      %p67 = scmp.eq.s32.totalorder %s20, 0
      %p68 = por %p66, %p67
      %s70 = sadd.s32 %s69, 1
      %p73 = scmp.eq.s32.totalorder %s14, 1
      %p74 = scmp.ne.s32.totalorder %s69, %s71
      %p75 = scmp.eq.s32.totalorder %s14, 0
      %p76 = por %p74, %p75
      %p77 = scmp.ne.s32.totalorder %s69, %s71
      %p78 = scmp.eq.s32.totalorder %s19, 1
      %p79 = por %p77, %p78
      %p80 = scmp.ne.s32.totalorder %s71, %s72
      %p81 = scmp.eq.s32.totalorder %s19, 0
      %p82 = por %p80, %p81
      %p83 = scmp.ne.s32.totalorder %s71, %s72
      %p84 = scmp.eq.s32.totalorder %s20, 1
      %p85 = por %p83, %p84
      %p87 = scmp.ne.s32.totalorder %s72, %s86
      %p88 = scmp.eq.s32.totalorder %s20, 0
      %p89 = por %p87, %p88
      %s91 = sadd.s32 %s90, 1
      %p94 = scmp.eq.s32.totalorder %s14, 1
      %p95 = scmp.ne.s32.totalorder %s90, %s92
      %p96 = scmp.eq.s32.totalorder %s14, 0
      %p97 = por %p95, %p96
      %p98 = scmp.ne.s32.totalorder %s90, %s92
      %p99 = scmp.eq.s32.totalorder %s19, 1
      %p100 = por %p98, %p99
      %p101 = scmp.ne.s32.totalorder %s92, %s93
      %p102 = scmp.eq.s32.totalorder %s19, 0
      %p103 = por %p101, %p102
      %p104 = scmp.ne.s32.totalorder %s92, %s93
      %p105 = scmp.eq.s32.totalorder %s20, 1
      %p106 = por %p104, %p105
      %p108 = scmp.ne.s32.totalorder %s93, %s107
      %p109 = scmp.eq.s32.totalorder %s20, 0
      %p110 = por %p108, %p109
      %s112 = sadd.s32 %s111, 1
      %p115 = scmp.eq.s32.totalorder %s14, 1
      %p116 = scmp.ne.s32.totalorder %s111, %s113
      %p117 = scmp.eq.s32.totalorder %s14, 0
      %p118 = por %p116, %p117
      %p119 = scmp.ne.s32.totalorder %s111, %s113
      %p120 = scmp.eq.s32.totalorder %s19, 1
      %p121 = por %p119, %p120
      %p122 = scmp.ne.s32.totalorder %s113, %s114
      %p123 = scmp.eq.s32.totalorder %s19, 0
      %p124 = por %p122, %p123
      %p125 = scmp.ne.s32.totalorder %s113, %s114
      %p126 = scmp.eq.s32.totalorder %s20, 1
      %p127 = por %p125, %p126
      %p129 = scmp.ne.s32.totalorder %s114, %s128
      %p130 = scmp.eq.s32.totalorder %s20, 0
      %p131 = por %p129, %p130
      %s132 = ssub.s32 %s14, %s21
      %p133 = scmp.eq.s32.totalorder %s132, 0
      %s135 = sadd.s32 %s134, 1
      %s136 = scalar_select %p133, %s134, %s135
      %p139 = pneg %p133
      %p140 = scmp.eq.s32.totalorder %s14, 1
      %p141 = por %p139, %p140
      %p142 = scmp.ne.s32.totalorder %s134, %s137
      %p143 = scmp.eq.s32.totalorder %s14, 0
      %p144 = por %p142, %p143
      %p145 = scmp.ne.s32.totalorder %s134, %s137
      %p146 = scmp.eq.s32.totalorder %s19, 1
      %p147 = por %p145, %p146
      %p148 = scmp.ne.s32.totalorder %s137, %s138
      %p149 = scmp.eq.s32.totalorder %s19, 0
      %p150 = por %p148, %p149
      %p151 = scmp.ne.s32.totalorder %s137, %s138
      %p152 = scmp.eq.s32.totalorder %s20, 1
      %p153 = por %p151, %p152
      %p155 = scmp.ne.s32.totalorder %s138, %s154
      %p156 = scmp.eq.s32.totalorder %s20, 0
      %p157 = por %p155, %p156
      %p158 = scmp.le.s32.totalorder 1, %s14
      %p159 = scmp.lt.s32.totalorder %s14, 3
      %p160 = pnand %p158, %p159
      %p161 = pneg %p160
      // Predicated region
      $region9: #{tpu_custom_call.1} parent=5 // pred_check
        _
      $region10: #{tpu_custom_call.1} parent=5 // pred_check_branch
        %163 = sbr.rel (%p160) target = $region12
      $region11: #{tpu_custom_call.1} parent=5 // pred_region
        %s164 = ssub.s32 %s14, 1
        // Predicated region
        $region13: #{tpu_custom_call.1} parent=11 // pred_check
          %p165 = pneg %p61
        $region14: #{tpu_custom_call.1} parent=11 // pred_check_branch
          %167 = sbr.rel (%p165) target = $region16
        $region15: #{tpu_custom_call.1} parent=11 // pred_region
          _
        $region16: #{tpu_custom_call.1} parent=11 // pred_fallthru
          _
        // Predicated region
        $region17: #{tpu_custom_call.1} parent=11 // pred_check
          %p168 = pneg %p82
        $region18: #{tpu_custom_call.1} parent=11 // pred_check_branch
          %170 = sbr.rel (%p168) target = $region20
        $region19: #{tpu_custom_call.1} parent=11 // pred_region
          _
        $region20: #{tpu_custom_call.1} parent=11 // pred_fallthru
          _
        // Predicated region
        $region21: #{tpu_custom_call.1} parent=11 // pred_check
          %p171 = pneg %p103
        $region22: #{tpu_custom_call.1} parent=11 // pred_check_branch
          %173 = sbr.rel (%p171) target = $region24
        $region23: #{tpu_custom_call.1} parent=11 // pred_region
          _
        $region24: #{tpu_custom_call.1} parent=11 // pred_fallthru
          _
        // Predicated region
        $region25: #{tpu_custom_call.1} parent=11 // pred_check
          %p174 = pneg %p124
        $region26: #{tpu_custom_call.1} parent=11 // pred_check_branch
          %176 = sbr.rel (%p174) target = $region28
        $region27: #{tpu_custom_call.1} parent=11 // pred_region
          _
        $region28: #{tpu_custom_call.1} parent=11 // pred_fallthru
          _
      $region12: #{tpu_custom_call.1} parent=5 // pred_fallthru
        _
      %p177 = scmp.lt.s32.totalorder %s14, 2
      // Predicated region
      $region29: #{tpu_custom_call.1} parent=5 // pred_check
        %p178 = pneg %p177
      $region30: #{tpu_custom_call.1} parent=5 // pred_check_branch
        %180 = sbr.rel (%p178) target = $region32
      $region31: #{tpu_custom_call.1} parent=5 // pred_region
        // Predicated region
        $region33: #{tpu_custom_call.1} parent=31 // pred_check
          %p181 = pneg %p34
        $region34: #{tpu_custom_call.1} parent=31 // pred_check_branch
          %183 = sbr.rel (%p181) target = $region36
        $region35: #{tpu_custom_call.1} parent=31 // pred_region
          %p184 = scmp.lt.s32.totalorder %s14, 1
          %s185 = scalar_select %p184, %s14, 1
          %s186 = smul.addr %s185, 32
          %s187 = smul.addr %s186, 8
          %s188 = scalar_lea.vmem %s0, %s187
        $region36: #{tpu_custom_call.1} parent=31 // pred_fallthru
          _
      $region32: #{tpu_custom_call.1} parent=5 // pred_fallthru
        _
      %p189 = scmp.le.s32.totalorder 1, %s14
      %p190 = scmp.lt.s32.totalorder %s14, 3
      %p191 = pnand %p189, %p190
      %p192 = pneg %p191
      // Predicated region
      $region37: #{tpu_custom_call.1} parent=5 // pred_check
        _
      $region38: #{tpu_custom_call.1} parent=5 // pred_check_branch
        %194 = sbr.rel (%p191) target = $region40
      $region39: #{tpu_custom_call.1} parent=5 // pred_region
        %s195 = ssub.s32 %s14, 1
        %p196 = scmp.lt.s32.totalorder %s19, 1
        %s197 = scalar_select %p196, %s19, 1
        %s198 = smul.addr %s197, 32
        %s199 = smul.addr %s198, 8
        %s200 = scalar_lea.vmem %s0, %s199
        %p201 = pneg %p40
        %p202 = pneg %p37
        %p203 = pneg %p61
        %p204 = pneg %p58
        %p205 = pneg %p82
        %p206 = pneg %p79
        %p207 = pneg %p103
        %p208 = pneg %p100
        %p209 = pneg %p124
        %p210 = pneg %p121
        %p211 = pneg %p150
        %p212 = pneg %p147
        %s213 = sand.u32 %s137, 1
        %s214 = scalar_lea.sflag [#allocation3], %s213
        %s215 = sand.u32 %s137, 1
        %s216 = smul.addr %s215, 4
        %s217 = scalar_lea.vmem [#allocation2], %s216
        %p218 = scmp.lt.s32.totalorder %s19, 1
        %s219 = scalar_select %p218, %s19, 1
        %s220 = smul.addr %s219, 32
        %s221 = smul.addr %s220, 8
        %s222 = scalar_lea.vmem %s0, %s221
        %v224 = vld [vmem:[%s222] sm:$0xff]
        %v225 = vld [vmem:[%s222 + $0x8] sm:$0xff]
        %v226 = vld [vmem:[%s222 + $0x10] sm:$0xff]
        %v227 = vld [vmem:[%s222 + $0x18] sm:$0xff]
        %v228 = vld [vmem:[%s222 + $0x20] sm:$0xff]
        %v229 = vld [vmem:[%s222 + $0x28] sm:$0xff]
        %v230 = vld [vmem:[%s222 + $0x30] sm:$0xff]
        %v231 = vld [vmem:[%s222 + $0x38] sm:$0xff]
        %v232 = vld [vmem:[%s222 + $0x40] sm:$0xff]
        %v233 = vld [vmem:[%s222 + $0x48] sm:$0xff]
        %v234 = vld [vmem:[%s222 + $0x50] sm:$0xff]
        %v235 = vld [vmem:[%s222 + $0x58] sm:$0xff]
        %v236 = vld [vmem:[%s222 + $0x60] sm:$0xff]
        %v237 = vld [vmem:[%s222 + $0x68] sm:$0xff]
        %v238 = vld [vmem:[%s222 + $0x70] sm:$0xff]
        %v239 = vld [vmem:[%s222 + $0x78] sm:$0xff]
        %v240 = vld [vmem:[%s222 + $0x80] sm:$0xff]
        %v241 = vld [vmem:[%s222 + $0x88] sm:$0xff]
        %v242 = vld [vmem:[%s222 + $0x90] sm:$0xff]
        %v243 = vld [vmem:[%s222 + $0x98] sm:$0xff]
        %v244 = vld [vmem:[%s222 + $0xa0] sm:$0xff]
        %v245 = vld [vmem:[%s222 + $0xa8] sm:$0xff]
        %v246 = vld [vmem:[%s222 + $0xb0] sm:$0xff]
        %v247 = vld [vmem:[%s222 + $0xb8] sm:$0xff]
        %v248 = vld [vmem:[%s222 + $0xc0] sm:$0xff]
        %v249 = vld [vmem:[%s222 + $0xc8] sm:$0xff]
        %v250 = vld [vmem:[%s222 + $0xd0] sm:$0xff]
        %v251 = vld [vmem:[%s222 + $0xd8] sm:$0xff]
        %v252 = vld [vmem:[%s222 + $0xe0] sm:$0xff]
        %v253 = vld [vmem:[%s222 + $0xe8] sm:$0xff]
        %v254 = vld [vmem:[%s222 + $0xf0] sm:$0xff]
        %v255 = vld [vmem:[%s222 + $0xf8] sm:$0xff]
        %v256 = vld [vmem:[%s2] sm:$0x1]
        %vm290 = vcmask 1040384
        %v291 = vrot.slane 0.0, 7
        %v292 = vsel %vm290, %v291, %v291
        %v293 = vrot.slane %v224, 7
        %v294 = vrot.slane %v225, 7
        %v295 = vsel %vm290, %v293, %v294
        %v296 = vrot.slane %v226, 7
        %v297 = vrot.slane %v227, 7
        %v298 = vsel %vm290, %v296, %v297
        %v299 = vrot.slane %v228, 7
        %v300 = vrot.slane %v229, 7
        %v301 = vsel %vm290, %v299, %v300
        %v302 = vrot.slane %v230, 7
        %v303 = vrot.slane %v231, 7
        %v304 = vsel %vm290, %v302, %v303
        %v305 = vrot.slane %v232, 7
        %v306 = vrot.slane %v233, 7
        %v307 = vsel %vm290, %v305, %v306
        %v308 = vrot.slane %v234, 7
        %v309 = vrot.slane %v235, 7
        %v310 = vsel %vm290, %v308, %v309
        %v311 = vrot.slane %v236, 7
        %v312 = vrot.slane %v237, 7
        %v313 = vsel %vm290, %v311, %v312
        %v314 = vrot.slane %v238, 7
        %v315 = vrot.slane %v239, 7
        %v316 = vsel %vm290, %v314, %v315
        %v317 = vrot.slane %v240, 7
        %v318 = vrot.slane %v241, 7
        %v319 = vsel %vm290, %v317, %v318
        %v320 = vrot.slane %v242, 7
        %v321 = vrot.slane %v243, 7
        %v322 = vsel %vm290, %v320, %v321
        %v323 = vrot.slane %v244, 7
        %v324 = vrot.slane %v245, 7
        %v325 = vsel %vm290, %v323, %v324
        %v326 = vrot.slane %v246, 7
        %v327 = vrot.slane %v247, 7
        %v328 = vsel %vm290, %v326, %v327
        %v329 = vrot.slane %v248, 7
        %v330 = vrot.slane %v249, 7
        %v331 = vsel %vm290, %v329, %v330
        %v332 = vrot.slane %v250, 7
        %v333 = vrot.slane %v251, 7
        %v334 = vsel %vm290, %v332, %v333
        %v335 = vrot.slane %v252, 7
        %v336 = vrot.slane %v253, 7
        %v337 = vsel %vm290, %v335, %v336
        %v338 = vrot.slane %v254, 7
        %v339 = vrot.slane %v255, 7
        %v340 = vsel %vm290, %v338, %v339
        %v391 = vsel %vm290, 0.0, %v291
        %v392 = vsel %vm290, 0.0, %v293
        %v393 = vsel %vm290, 0.0, %v296
        %v394 = vsel %vm290, 0.0, %v299
        %v395 = vsel %vm290, 0.0, %v302
        %v396 = vsel %vm290, 0.0, %v305
        %v397 = vsel %vm290, 0.0, %v308
        %v398 = vsel %vm290, 0.0, %v311
        %v399 = vsel %vm290, 0.0, %v314
        %v400 = vsel %vm290, 0.0, %v317
        %v401 = vsel %vm290, 0.0, %v320
        %v402 = vsel %vm290, 0.0, %v323
        %v403 = vsel %vm290, 0.0, %v326
        %v404 = vsel %vm290, 0.0, %v329
        %v405 = vsel %vm290, 0.0, %v332
        %v406 = vsel %vm290, 0.0, %v335
        %v407 = vsel %vm290, 0.0, %v338
        %v408 = vsel %vm290, %v291, 0.0
        %v409 = vsel %vm290, %v294, 0.0
        %v410 = vsel %vm290, %v297, 0.0
        %v411 = vsel %vm290, %v300, 0.0
        %v412 = vsel %vm290, %v303, 0.0
        %v413 = vsel %vm290, %v306, 0.0
        %v414 = vsel %vm290, %v309, 0.0
        %v415 = vsel %vm290, %v312, 0.0
        %v416 = vsel %vm290, %v315, 0.0
        %v417 = vsel %vm290, %v318, 0.0
        %v418 = vsel %vm290, %v321, 0.0
        %v419 = vsel %vm290, %v324, 0.0
        %v420 = vsel %vm290, %v327, 0.0
        %v421 = vsel %vm290, %v330, 0.0
        %v422 = vsel %vm290, %v333, 0.0
        %v423 = vsel %vm290, %v336, 0.0
        %v424 = vsel %vm290, %v339, 0.0
        %v425 = vpack.c.bf16 %v292, %v391
        %v426 = vpack.c.bf16 %v295, %v392
        %v427 = vpack.c.bf16 %v298, %v393
        %v428 = vpack.c.bf16 %v301, %v394
        %v429 = vpack.c.bf16 %v304, %v395
        %v430 = vpack.c.bf16 %v307, %v396
        %v431 = vpack.c.bf16 %v310, %v397
        %v432 = vpack.c.bf16 %v313, %v398
        %v433 = vpack.c.bf16 %v316, %v399
        %v434 = vpack.c.bf16 %v319, %v400
        %v435 = vpack.c.bf16 %v322, %v401
        %v436 = vpack.c.bf16 %v325, %v402
        %v437 = vpack.c.bf16 %v328, %v403
        %v438 = vpack.c.bf16 %v331, %v404
        %v439 = vpack.c.bf16 %v334, %v405
        %v440 = vpack.c.bf16 %v337, %v406
        %v441 = vld [vmem:[%s1] sm:$0x3]
        %vm474 = vcmask 1046528
        %v475 = vrot.slane %v391, 1
        %v476 = vrot.slane %v292, 1
        %v477 = vsel %vm474, %v475, %v476
        %v478 = vrot.slane %v408, 1
        %v479 = vsel %vm474, %v476, %v478
        %v480 = vrot.slane %v392, 1
        %v481 = vrot.slane %v295, 1
        %v482 = vsel %vm474, %v480, %v481
        %v483 = vrot.slane %v409, 1
        %v484 = vsel %vm474, %v481, %v483
        %v485 = vrot.slane %v393, 1
        %v486 = vrot.slane %v298, 1
        %v487 = vsel %vm474, %v485, %v486
        %v488 = vrot.slane %v410, 1
        %v489 = vsel %vm474, %v486, %v488
        %v490 = vrot.slane %v394, 1
        %v491 = vrot.slane %v301, 1
        %v492 = vsel %vm474, %v490, %v491
        %v493 = vrot.slane %v411, 1
        %v494 = vsel %vm474, %v491, %v493
        %v495 = vrot.slane %v395, 1
        %v496 = vrot.slane %v304, 1
        %v497 = vsel %vm474, %v495, %v496
        %v498 = vrot.slane %v412, 1
        %v499 = vsel %vm474, %v496, %v498
        %v500 = vrot.slane %v396, 1
        %v501 = vrot.slane %v307, 1
        %v502 = vsel %vm474, %v500, %v501
        %v503 = vrot.slane %v413, 1
        %v504 = vsel %vm474, %v501, %v503
        %v505 = vrot.slane %v397, 1
        %v506 = vrot.slane %v310, 1
        %v507 = vsel %vm474, %v505, %v506
        %v508 = vrot.slane %v414, 1
        %v509 = vsel %vm474, %v506, %v508
        %v510 = vrot.slane %v398, 1
        %v511 = vrot.slane %v313, 1
        %v512 = vsel %vm474, %v510, %v511
        %v513 = vrot.slane %v415, 1
        %v514 = vsel %vm474, %v511, %v513
        %v515 = vrot.slane %v399, 1
        %v516 = vrot.slane %v316, 1
        %v517 = vsel %vm474, %v515, %v516
        %v518 = vrot.slane %v416, 1
        %v519 = vsel %vm474, %v516, %v518
        %v520 = vrot.slane %v400, 1
        %v521 = vrot.slane %v319, 1
        %v522 = vsel %vm474, %v520, %v521
        %v523 = vrot.slane %v417, 1
        %v524 = vsel %vm474, %v521, %v523
        %v525 = vrot.slane %v401, 1
        %v526 = vrot.slane %v322, 1
        %v527 = vsel %vm474, %v525, %v526
        %v528 = vrot.slane %v418, 1
        %v529 = vsel %vm474, %v526, %v528
        %v530 = vrot.slane %v402, 1
        %v531 = vrot.slane %v325, 1
        %v532 = vsel %vm474, %v530, %v531
        %v533 = vrot.slane %v419, 1
        %v534 = vsel %vm474, %v531, %v533
        %v535 = vrot.slane %v403, 1
        %v536 = vrot.slane %v328, 1
        %v537 = vsel %vm474, %v535, %v536
        %v538 = vrot.slane %v420, 1
        %v539 = vsel %vm474, %v536, %v538
        %v540 = vrot.slane %v404, 1
        %v541 = vrot.slane %v331, 1
        %v542 = vsel %vm474, %v540, %v541
        %v543 = vrot.slane %v421, 1
        %v544 = vsel %vm474, %v541, %v543
        %v545 = vrot.slane %v405, 1
        %v546 = vrot.slane %v334, 1
        %v547 = vsel %vm474, %v545, %v546
        %v548 = vrot.slane %v422, 1
        %v549 = vsel %vm474, %v546, %v548
        %v550 = vrot.slane %v406, 1
        %v551 = vrot.slane %v337, 1
        %v552 = vsel %vm474, %v550, %v551
        %v553 = vrot.slane %v423, 1
        %v554 = vsel %vm474, %v551, %v553
        %v587 = vpack.c.bf16 %v479, %v477
        %v588 = vpack.c.bf16 %v484, %v482
        %v589 = vpack.c.bf16 %v489, %v487
        %v590 = vpack.c.bf16 %v494, %v492
        %v591 = vpack.c.bf16 %v499, %v497
        %v592 = vpack.c.bf16 %v504, %v502
        %v593 = vpack.c.bf16 %v509, %v507
        %v594 = vpack.c.bf16 %v514, %v512
        %v595 = vpack.c.bf16 %v519, %v517
        %v596 = vpack.c.bf16 %v524, %v522
        %v597 = vpack.c.bf16 %v529, %v527
        %v598 = vpack.c.bf16 %v534, %v532
        %v599 = vpack.c.bf16 %v539, %v537
        %v600 = vpack.c.bf16 %v544, %v542
        %v601 = vpack.c.bf16 %v549, %v547
        %v602 = vpack.c.bf16 %v554, %v552
        %s603 = scalar_lea.vmem %s1, 2
        %v604 = vld [vmem:[%s603] sm:$0x3]
        %vm605 = vcmask 31744
        %v607 = vsel %vm605, %v587, 0
        %v610 = vsel %vm605, %v588, 0
        %v613 = vsel %vm605, %v589, 0
        %v616 = vsel %vm605, %v590, 0
        %v619 = vsel %vm605, %v591, 0
        %v622 = vsel %vm605, %v592, 0
        %v625 = vsel %vm605, %v593, 0
        %v628 = vsel %vm605, %v594, 0
        %v631 = vsel %vm605, %v595, 0
        %v634 = vsel %vm605, %v596, 0
        %v637 = vsel %vm605, %v597, 0
        %v640 = vsel %vm605, %v598, 0
        %v643 = vsel %vm605, %v599, 0
        %v646 = vsel %vm605, %v600, 0
        %v649 = vsel %vm605, %v601, 0
        %v652 = vsel %vm605, %v602, 0
        %vm654 = vcmask 1041408
        %v656 = vsel %vm654, %v604, 0
        %658 = vmatprep.subr.bf16.mxu0 0
        %659 = vmatpush1.bf16.msra.mxu0 %v656
        %660 = vmatprep.subr.bf16.mxu0 0
        %661 = vmatpush1.bf16.msra.mxu0 0
        %662 = vmatprep.subr.bf16.mxu0 0
        %663 = vmatpush1.bf16.msra.mxu0 0
        %664 = vmatprep.subr.bf16.mxu0 0
        %665 = vmatpush1.bf16.msra.mxu0 0
        %666 = vmatprep.subr.bf16.mxu0 0
        %667 = vmatpush1.bf16.msra.mxu0 0
        %668 = vmatprep.subr.bf16.mxu0 0
        %669 = vmatpush1.bf16.msra.mxu0 0
        %670 = vmatprep.subr.bf16.mxu0 0
        %671 = vmatpush1.bf16.msra.mxu0 0
        %672 = vmatprep.subr.bf16.mxu0 0
        %673 = vmatpush1.bf16.msra.mxu0 0
        %674 = vmatprep.subr.bf16.mxu0 0
        %675 = vmatpush1.bf16.msra.mxu0 0
        %676 = vmatprep.subr.bf16.mxu0 0
        %677 = vmatpush1.bf16.msra.mxu0 0
        %678 = vmatprep.subr.bf16.mxu0 0
        %679 = vmatpush1.bf16.msra.mxu0 0
        %680 = vmatprep.subr.bf16.mxu0 0
        %681 = vmatpush1.bf16.msra.mxu0 0
        %682 = vmatprep.subr.bf16.mxu0 0
        %683 = vmatpush1.bf16.msra.mxu0 0
        %684 = vmatprep.subr.bf16.mxu0 0
        %685 = vmatpush1.bf16.msra.mxu0 0
        %686 = vmatprep.subr.bf16.mxu0 0
        %687 = vmatpush1.bf16.msra.mxu0 0
        %688 = vmatprep.subr.bf16.mxu0 0
        %689 = vmatpush1.bf16.msra.mxu0 0
        %690 = vmatprep.mubr.bf16.mxu0 0
        %691 = vmatmul.mubr.bf16.gmra.mrb[0].mxu0 %v607
        %v692 = vpop.f32.mrb[0].mxu0
        %v693 = vadd.f32 0.0, %v692
        %v694 = vpop.f32.mrb[0].mxu0
        %v695 = vpop.f32.mrb[0].mxu0
        %v696 = vadd.f32 0.0, %v695
        %v697 = vpop.f32.mrb[0].mxu0
        %698 = vmatprep.mubr.bf16.mxu0 0
        %699 = vmatmul.mubr.bf16.gmra.mrb[0].mxu0 %v610
        %v700 = vpop.f32.mrb[0].mxu0
        %v701 = vadd.f32 0.0, %v700
        %v702 = vpop.f32.mrb[0].mxu0
        %v703 = vpop.f32.mrb[0].mxu0
        %v704 = vadd.f32 0.0, %v703
        %v705 = vpop.f32.mrb[0].mxu0
        %706 = vmatprep.mubr.bf16.mxu0 0
        %707 = vmatmul.mubr.bf16.gmra.mrb[0].mxu0 %v613
        %v708 = vpop.f32.mrb[0].mxu0
        %v709 = vadd.f32 0.0, %v708
        %v710 = vpop.f32.mrb[0].mxu0
        %v711 = vpop.f32.mrb[0].mxu0
        %v712 = vadd.f32 0.0, %v711
        %v713 = vpop.f32.mrb[0].mxu0
        %714 = vmatprep.mubr.bf16.mxu0 0
        %715 = vmatmul.mubr.bf16.gmra.mrb[0].mxu0 %v616
        %v716 = vpop.f32.mrb[0].mxu0
        %v717 = vadd.f32 0.0, %v716
        %v718 = vpop.f32.mrb[0].mxu0
        %v719 = vpop.f32.mrb[0].mxu0
        %v720 = vadd.f32 0.0, %v719
        %v721 = vpop.f32.mrb[0].mxu0
        %722 = vmatprep.mubr.bf16.mxu0 0
        %723 = vmatmul.mubr.bf16.gmra.mrb[0].mxu0 %v619
        %v724 = vpop.f32.mrb[0].mxu0
        %v725 = vadd.f32 0.0, %v724
        %v726 = vpop.f32.mrb[0].mxu0
        %v727 = vpop.f32.mrb[0].mxu0
        %v728 = vadd.f32 0.0, %v727
        %v729 = vpop.f32.mrb[0].mxu0
        %730 = vmatprep.mubr.bf16.mxu0 0
        %731 = vmatmul.mubr.bf16.gmra.mrb[0].mxu0 %v622
        %v732 = vpop.f32.mrb[0].mxu0
        %v733 = vadd.f32 0.0, %v732
        %v734 = vpop.f32.mrb[0].mxu0
        %v735 = vpop.f32.mrb[0].mxu0
        %v736 = vadd.f32 0.0, %v735
        %v737 = vpop.f32.mrb[0].mxu0
        %738 = vmatprep.mubr.bf16.mxu0 0
        %739 = vmatmul.mubr.bf16.gmra.mrb[0].mxu0 %v625
        %v740 = vpop.f32.mrb[0].mxu0
        %v741 = vadd.f32 0.0, %v740
        %v742 = vpop.f32.mrb[0].mxu0
        %v743 = vpop.f32.mrb[0].mxu0
        %v744 = vadd.f32 0.0, %v743
        %v745 = vpop.f32.mrb[0].mxu0
        %746 = vmatprep.mubr.bf16.mxu0 0
        %747 = vmatmul.mubr.bf16.gmra.mrb[0].mxu0 %v628
        %v748 = vpop.f32.mrb[0].mxu0
        %v749 = vadd.f32 0.0, %v748
        %v750 = vpop.f32.mrb[0].mxu0
        %v751 = vpop.f32.mrb[0].mxu0
        %v752 = vadd.f32 0.0, %v751
        %v753 = vpop.f32.mrb[0].mxu0
        %754 = vmatprep.mubr.bf16.mxu0 0
        %755 = vmatmul.mubr.bf16.gmra.mrb[0].mxu0 %v631
        %v756 = vpop.f32.mrb[0].mxu0
        %v757 = vadd.f32 0.0, %v756
        %v758 = vpop.f32.mrb[0].mxu0
        %v759 = vpop.f32.mrb[0].mxu0
        %v760 = vadd.f32 0.0, %v759
        %v761 = vpop.f32.mrb[0].mxu0
        %762 = vmatprep.mubr.bf16.mxu0 0
        %763 = vmatmul.mubr.bf16.gmra.mrb[0].mxu0 %v634
        %v764 = vpop.f32.mrb[0].mxu0
        %v765 = vadd.f32 0.0, %v764
        %v766 = vpop.f32.mrb[0].mxu0
        %v767 = vpop.f32.mrb[0].mxu0
        %v768 = vadd.f32 0.0, %v767
        %v769 = vpop.f32.mrb[0].mxu0
        %770 = vmatprep.mubr.bf16.mxu0 0
        %771 = vmatmul.mubr.bf16.gmra.mrb[0].mxu0 %v637
        %v772 = vpop.f32.mrb[0].mxu0
        %v773 = vadd.f32 0.0, %v772
        %v774 = vpop.f32.mrb[0].mxu0
        %v775 = vpop.f32.mrb[0].mxu0
        %v776 = vadd.f32 0.0, %v775
        %v777 = vpop.f32.mrb[0].mxu0
        %778 = vmatprep.mubr.bf16.mxu0 0
        %779 = vmatmul.mubr.bf16.gmra.mrb[0].mxu0 %v640
        %v780 = vpop.f32.mrb[0].mxu0
        %v781 = vadd.f32 0.0, %v780
        %v782 = vpop.f32.mrb[0].mxu0
        %v783 = vpop.f32.mrb[0].mxu0
        %v784 = vadd.f32 0.0, %v783
        %v785 = vpop.f32.mrb[0].mxu0
        %786 = vmatprep.mubr.bf16.mxu0 0
        %787 = vmatmul.mubr.bf16.gmra.mrb[0].mxu0 %v643
        %v788 = vpop.f32.mrb[0].mxu0
        %v789 = vadd.f32 0.0, %v788
        %v790 = vpop.f32.mrb[0].mxu0
        %v791 = vpop.f32.mrb[0].mxu0
        %v792 = vadd.f32 0.0, %v791
        %v793 = vpop.f32.mrb[0].mxu0
        %794 = vmatprep.mubr.bf16.mxu0 0
        %795 = vmatmul.mubr.bf16.gmra.mrb[0].mxu0 %v646
        %v796 = vpop.f32.mrb[0].mxu0
        %v797 = vadd.f32 0.0, %v796
        %v798 = vpop.f32.mrb[0].mxu0
        %v799 = vpop.f32.mrb[0].mxu0
        %v800 = vadd.f32 0.0, %v799
        %v801 = vpop.f32.mrb[0].mxu0
        %802 = vmatprep.mubr.bf16.mxu0 0
        %803 = vmatmul.mubr.bf16.gmra.mrb[0].mxu0 %v649
        %v804 = vpop.f32.mrb[0].mxu0
        %v805 = vadd.f32 0.0, %v804
        %v806 = vpop.f32.mrb[0].mxu0
        %v807 = vpop.f32.mrb[0].mxu0
        %v808 = vadd.f32 0.0, %v807
        %v809 = vpop.f32.mrb[0].mxu0
        %810 = vmatprep.mubr.bf16.mxu0 0
        %811 = vmatmul.mubr.bf16.gmra.mrb[0].mxu0 %v652
        %v812 = vpop.f32.mrb[0].mxu0
        %v813 = vadd.f32 0.0, %v812
        %v814 = vpop.f32.mrb[0].mxu0
        %v815 = vpop.f32.mrb[0].mxu0
        %v816 = vadd.f32 0.0, %v815
        %v817 = vpop.f32.mrb[0].mxu0
        %818 = vdwg.mxu0
        %v820 = vsel %vm605, %v425, 0
        %v823 = vsel %vm605, %v426, 0
        %v826 = vsel %vm605, %v427, 0
        %v829 = vsel %vm605, %v428, 0
        %v832 = vsel %vm605, %v429, 0
        %v835 = vsel %vm605, %v430, 0
        %v838 = vsel %vm605, %v431, 0
        %v841 = vsel %vm605, %v432, 0
        %v844 = vsel %vm605, %v433, 0
        %v847 = vsel %vm605, %v434, 0
        %v850 = vsel %vm605, %v435, 0
        %v853 = vsel %vm605, %v436, 0
        %v856 = vsel %vm605, %v437, 0
        %v859 = vsel %vm605, %v438, 0
        %v862 = vsel %vm605, %v439, 0
        %v865 = vsel %vm605, %v440, 0
        %v868 = vsel %vm654, %v441, 0
        %870 = vmatprep.subr.bf16.mxu0 0
        %871 = vmatpush1.bf16.msra.mxu0 %v868
        %872 = vmatprep.subr.bf16.mxu0 0
        %873 = vmatpush1.bf16.msra.mxu0 0
        %874 = vmatprep.subr.bf16.mxu0 0
        %875 = vmatpush1.bf16.msra.mxu0 0
        %876 = vmatprep.subr.bf16.mxu0 0
        %877 = vmatpush1.bf16.msra.mxu0 0
        %878 = vmatprep.subr.bf16.mxu0 0
        %879 = vmatpush1.bf16.msra.mxu0 0
        %880 = vmatprep.subr.bf16.mxu0 0
        %881 = vmatpush1.bf16.msra.mxu0 0
        %882 = vmatprep.subr.bf16.mxu0 0
        %883 = vmatpush1.bf16.msra.mxu0 0
        %884 = vmatprep.subr.bf16.mxu0 0
        %885 = vmatpush1.bf16.msra.mxu0 0
        %886 = vmatprep.subr.bf16.mxu0 0
        %887 = vmatpush1.bf16.msra.mxu0 0
        %888 = vmatprep.subr.bf16.mxu0 0
        %889 = vmatpush1.bf16.msra.mxu0 0
        %890 = vmatprep.subr.bf16.mxu0 0
        %891 = vmatpush1.bf16.msra.mxu0 0
        %892 = vmatprep.subr.bf16.mxu0 0
        %893 = vmatpush1.bf16.msra.mxu0 0
        %894 = vmatprep.subr.bf16.mxu0 0
        %895 = vmatpush1.bf16.msra.mxu0 0
        %896 = vmatprep.subr.bf16.mxu0 0
        %897 = vmatpush1.bf16.msra.mxu0 0
        %898 = vmatprep.subr.bf16.mxu0 0
        %899 = vmatpush1.bf16.msra.mxu0 0
        %900 = vmatprep.subr.bf16.mxu0 0
        %901 = vmatpush1.bf16.msra.mxu0 0
        %902 = vmatprep.mubr.bf16.mxu0 0
        %903 = vmatmul.mubr.bf16.gmra.mrb[0].mxu0 %v820
        %v904 = vpop.f32.mrb[0].mxu0
        %v905 = vadd.f32 %v693, %v904
        %v906 = vpop.f32.mrb[0].mxu0
        %v907 = vpop.f32.mrb[0].mxu0
        %v908 = vadd.f32 %v696, %v907
        %v909 = vpop.f32.mrb[0].mxu0
        %910 = vmatprep.mubr.bf16.mxu0 0
        %911 = vmatmul.mubr.bf16.gmra.mrb[0].mxu0 %v823
        %v912 = vpop.f32.mrb[0].mxu0
        %v913 = vadd.f32 %v701, %v912
        %v914 = vpop.f32.mrb[0].mxu0
        %v915 = vpop.f32.mrb[0].mxu0
        %v916 = vadd.f32 %v704, %v915
        %v917 = vpop.f32.mrb[0].mxu0
        %918 = vmatprep.mubr.bf16.mxu0 0
        %919 = vmatmul.mubr.bf16.gmra.mrb[0].mxu0 %v826
        %v920 = vpop.f32.mrb[0].mxu0
        %v921 = vadd.f32 %v709, %v920
        %v922 = vpop.f32.mrb[0].mxu0
        %v923 = vpop.f32.mrb[0].mxu0
        %v924 = vadd.f32 %v712, %v923
        %v925 = vpop.f32.mrb[0].mxu0
        %926 = vmatprep.mubr.bf16.mxu0 0
        %927 = vmatmul.mubr.bf16.gmra.mrb[0].mxu0 %v829
        %v928 = vpop.f32.mrb[0].mxu0
        %v929 = vadd.f32 %v717, %v928
        %v930 = vpop.f32.mrb[0].mxu0
        %v931 = vpop.f32.mrb[0].mxu0
        %v932 = vadd.f32 %v720, %v931
        %v933 = vpop.f32.mrb[0].mxu0
        %934 = vmatprep.mubr.bf16.mxu0 0
        %935 = vmatmul.mubr.bf16.gmra.mrb[0].mxu0 %v832
        %v936 = vpop.f32.mrb[0].mxu0
        %v937 = vadd.f32 %v725, %v936
        %v938 = vpop.f32.mrb[0].mxu0
        %v939 = vpop.f32.mrb[0].mxu0
        %v940 = vadd.f32 %v728, %v939
        %v941 = vpop.f32.mrb[0].mxu0
        %942 = vmatprep.mubr.bf16.mxu0 0
        %943 = vmatmul.mubr.bf16.gmra.mrb[0].mxu0 %v835
        %v944 = vpop.f32.mrb[0].mxu0
        %v945 = vadd.f32 %v733, %v944
        %v946 = vpop.f32.mrb[0].mxu0
        %v947 = vpop.f32.mrb[0].mxu0
        %v948 = vadd.f32 %v736, %v947
        %v949 = vpop.f32.mrb[0].mxu0
        %950 = vmatprep.mubr.bf16.mxu0 0
        %951 = vmatmul.mubr.bf16.gmra.mrb[0].mxu0 %v838
        %v952 = vpop.f32.mrb[0].mxu0
        %v953 = vadd.f32 %v741, %v952
        %v954 = vpop.f32.mrb[0].mxu0
        %v955 = vpop.f32.mrb[0].mxu0
        %v956 = vadd.f32 %v744, %v955
        %v957 = vpop.f32.mrb[0].mxu0
        %958 = vmatprep.mubr.bf16.mxu0 0
        %959 = vmatmul.mubr.bf16.gmra.mrb[0].mxu0 %v841
        %v960 = vpop.f32.mrb[0].mxu0
        %v961 = vadd.f32 %v749, %v960
        %v962 = vpop.f32.mrb[0].mxu0
        %v963 = vpop.f32.mrb[0].mxu0
        %v964 = vadd.f32 %v752, %v963
        %v965 = vpop.f32.mrb[0].mxu0
        %966 = vmatprep.mubr.bf16.mxu0 0
        %967 = vmatmul.mubr.bf16.gmra.mrb[0].mxu0 %v844
        %v968 = vpop.f32.mrb[0].mxu0
        %v969 = vadd.f32 %v757, %v968
        %v970 = vpop.f32.mrb[0].mxu0
        %v971 = vpop.f32.mrb[0].mxu0
        %v972 = vadd.f32 %v760, %v971
        %v973 = vpop.f32.mrb[0].mxu0
        %974 = vmatprep.mubr.bf16.mxu0 0
        %975 = vmatmul.mubr.bf16.gmra.mrb[0].mxu0 %v847
        %v976 = vpop.f32.mrb[0].mxu0
        %v977 = vadd.f32 %v765, %v976
        %v978 = vpop.f32.mrb[0].mxu0
        %v979 = vpop.f32.mrb[0].mxu0
        %v980 = vadd.f32 %v768, %v979
        %v981 = vpop.f32.mrb[0].mxu0
        %982 = vmatprep.mubr.bf16.mxu0 0
        %983 = vmatmul.mubr.bf16.gmra.mrb[0].mxu0 %v850
        %v984 = vpop.f32.mrb[0].mxu0
        %v985 = vadd.f32 %v773, %v984
        %v986 = vpop.f32.mrb[0].mxu0
        %v987 = vpop.f32.mrb[0].mxu0
        %v988 = vadd.f32 %v776, %v987
        %v989 = vpop.f32.mrb[0].mxu0
        %990 = vmatprep.mubr.bf16.mxu0 0
        %991 = vmatmul.mubr.bf16.gmra.mrb[0].mxu0 %v853
        %v992 = vpop.f32.mrb[0].mxu0
        %v993 = vadd.f32 %v781, %v992
        %v994 = vpop.f32.mrb[0].mxu0
        %v995 = vpop.f32.mrb[0].mxu0
        %v996 = vadd.f32 %v784, %v995
        %v997 = vpop.f32.mrb[0].mxu0
        %998 = vmatprep.mubr.bf16.mxu0 0
        %999 = vmatmul.mubr.bf16.gmra.mrb[0].mxu0 %v856
        %v1000 = vpop.f32.mrb[0].mxu0
        %v1001 = vadd.f32 %v789, %v1000
        %v1002 = vpop.f32.mrb[0].mxu0
        %v1003 = vpop.f32.mrb[0].mxu0
        %v1004 = vadd.f32 %v792, %v1003
        %v1005 = vpop.f32.mrb[0].mxu0
        %1006 = vmatprep.mubr.bf16.mxu0 0
        %1007 = vmatmul.mubr.bf16.gmra.mrb[0].mxu0 %v859
        %v1008 = vpop.f32.mrb[0].mxu0
        %v1009 = vadd.f32 %v797, %v1008
        %v1010 = vpop.f32.mrb[0].mxu0
        %v1011 = vpop.f32.mrb[0].mxu0
        %v1012 = vadd.f32 %v800, %v1011
        %v1013 = vpop.f32.mrb[0].mxu0
        %1014 = vmatprep.mubr.bf16.mxu0 0
        %1015 = vmatmul.mubr.bf16.gmra.mrb[0].mxu0 %v862
        %v1016 = vpop.f32.mrb[0].mxu0
        %v1017 = vadd.f32 %v805, %v1016
        %v1018 = vpop.f32.mrb[0].mxu0
        %v1019 = vpop.f32.mrb[0].mxu0
        %v1020 = vadd.f32 %v808, %v1019
        %v1021 = vpop.f32.mrb[0].mxu0
        %1022 = vmatprep.mubr.bf16.mxu0 0
        %1023 = vmatmul.mubr.bf16.gmra.mrb[0].mxu0 %v865
        %v1024 = vpop.f32.mrb[0].mxu0
        %v1025 = vadd.f32 %v813, %v1024
        %v1026 = vpop.f32.mrb[0].mxu0
        %v1027 = vpop.f32.mrb[0].mxu0
        %v1028 = vadd.f32 %v816, %v1027
        %v1029 = vpop.f32.mrb[0].mxu0
        %1030 = vdwg.mxu0
        %vm1031 = vcmask 1045504
        %v1032 = vrot.slane %v391, 2
        %v1033 = vrot.slane %v292, 2
        %v1034 = vsel %vm1031, %v1032, %v1033
        %v1035 = vrot.slane %v408, 2
        %v1036 = vsel %vm1031, %v1033, %v1035
        %v1037 = vrot.slane %v392, 2
        %v1038 = vrot.slane %v295, 2
        %v1039 = vsel %vm1031, %v1037, %v1038
        %v1040 = vrot.slane %v409, 2
        %v1041 = vsel %vm1031, %v1038, %v1040
        %v1042 = vrot.slane %v393, 2
        %v1043 = vrot.slane %v298, 2
        %v1044 = vsel %vm1031, %v1042, %v1043
        %v1045 = vrot.slane %v410, 2
        %v1046 = vsel %vm1031, %v1043, %v1045
        %v1047 = vrot.slane %v394, 2
        %v1048 = vrot.slane %v301, 2
        %v1049 = vsel %vm1031, %v1047, %v1048
        %v1050 = vrot.slane %v411, 2
        %v1051 = vsel %vm1031, %v1048, %v1050
        %v1052 = vrot.slane %v395, 2
        %v1053 = vrot.slane %v304, 2
        %v1054 = vsel %vm1031, %v1052, %v1053
        %v1055 = vrot.slane %v412, 2
        %v1056 = vsel %vm1031, %v1053, %v1055
        %v1057 = vrot.slane %v396, 2
        %v1058 = vrot.slane %v307, 2
        %v1059 = vsel %vm1031, %v1057, %v1058
        %v1060 = vrot.slane %v413, 2
        %v1061 = vsel %vm1031, %v1058, %v1060
        %v1062 = vrot.slane %v397, 2
        %v1063 = vrot.slane %v310, 2
        %v1064 = vsel %vm1031, %v1062, %v1063
        %v1065 = vrot.slane %v414, 2
        %v1066 = vsel %vm1031, %v1063, %v1065
        %v1067 = vrot.slane %v398, 2
        %v1068 = vrot.slane %v313, 2
        %v1069 = vsel %vm1031, %v1067, %v1068
        %v1070 = vrot.slane %v415, 2
        %v1071 = vsel %vm1031, %v1068, %v1070
        %v1072 = vrot.slane %v399, 2
        %v1073 = vrot.slane %v316, 2
        %v1074 = vsel %vm1031, %v1072, %v1073
        %v1075 = vrot.slane %v416, 2
        %v1076 = vsel %vm1031, %v1073, %v1075
        %v1077 = vrot.slane %v400, 2
        %v1078 = vrot.slane %v319, 2
        %v1079 = vsel %vm1031, %v1077, %v1078
        %v1080 = vrot.slane %v417, 2
        %v1081 = vsel %vm1031, %v1078, %v1080
        %v1082 = vrot.slane %v401, 2
        %v1083 = vrot.slane %v322, 2
        %v1084 = vsel %vm1031, %v1082, %v1083
        %v1085 = vrot.slane %v418, 2
        %v1086 = vsel %vm1031, %v1083, %v1085
        %v1087 = vrot.slane %v402, 2
        %v1088 = vrot.slane %v325, 2
        %v1089 = vsel %vm1031, %v1087, %v1088
        %v1090 = vrot.slane %v419, 2
        %v1091 = vsel %vm1031, %v1088, %v1090
        %v1092 = vrot.slane %v403, 2
        %v1093 = vrot.slane %v328, 2
        %v1094 = vsel %vm1031, %v1092, %v1093
        %v1095 = vrot.slane %v420, 2
        %v1096 = vsel %vm1031, %v1093, %v1095
        %v1097 = vrot.slane %v404, 2
        %v1098 = vrot.slane %v331, 2
        %v1099 = vsel %vm1031, %v1097, %v1098
        %v1100 = vrot.slane %v421, 2
        %v1101 = vsel %vm1031, %v1098, %v1100
        %v1102 = vrot.slane %v405, 2
        %v1103 = vrot.slane %v334, 2
        %v1104 = vsel %vm1031, %v1102, %v1103
        %v1105 = vrot.slane %v422, 2
        %v1106 = vsel %vm1031, %v1103, %v1105
        %v1107 = vrot.slane %v406, 2
        %v1108 = vrot.slane %v337, 2
        %v1109 = vsel %vm1031, %v1107, %v1108
        %v1110 = vrot.slane %v423, 2
        %v1111 = vsel %vm1031, %v1108, %v1110
        %v1144 = vpack.c.bf16 %v1036, %v1034
        %v1145 = vpack.c.bf16 %v1041, %v1039
        %v1146 = vpack.c.bf16 %v1046, %v1044
        %v1147 = vpack.c.bf16 %v1051, %v1049
        %v1148 = vpack.c.bf16 %v1056, %v1054
        %v1149 = vpack.c.bf16 %v1061, %v1059
        %v1150 = vpack.c.bf16 %v1066, %v1064
        %v1151 = vpack.c.bf16 %v1071, %v1069
        %v1152 = vpack.c.bf16 %v1076, %v1074
        %v1153 = vpack.c.bf16 %v1081, %v1079
        %v1154 = vpack.c.bf16 %v1086, %v1084
        %v1155 = vpack.c.bf16 %v1091, %v1089
        %v1156 = vpack.c.bf16 %v1096, %v1094
        %v1157 = vpack.c.bf16 %v1101, %v1099
        %v1158 = vpack.c.bf16 %v1106, %v1104
        %v1159 = vpack.c.bf16 %v1111, %v1109
        %s1160 = scalar_lea.vmem %s1, 4
        %v1161 = vld [vmem:[%s1160] sm:$0x3]
        %v1163 = vsel %vm605, %v1144, 0
        %v1166 = vsel %vm605, %v1145, 0
        %v1169 = vsel %vm605, %v1146, 0
        %v1172 = vsel %vm605, %v1147, 0
        %v1175 = vsel %vm605, %v1148, 0
        %v1178 = vsel %vm605, %v1149, 0
        %v1181 = vsel %vm605, %v1150, 0
        %v1184 = vsel %vm605, %v1151, 0
        %v1187 = vsel %vm605, %v1152, 0
        %v1190 = vsel %vm605, %v1153, 0
        %v1193 = vsel %vm605, %v1154, 0
        %v1196 = vsel %vm605, %v1155, 0
        %v1199 = vsel %vm605, %v1156, 0
        %v1202 = vsel %vm605, %v1157, 0
        %v1205 = vsel %vm605, %v1158, 0
        %v1208 = vsel %vm605, %v1159, 0
        %v1211 = vsel %vm654, %v1161, 0
        %1213 = vmatprep.subr.bf16.mxu0 0
        %1214 = vmatpush1.bf16.msra.mxu0 %v1211
        %1215 = vmatprep.subr.bf16.mxu0 0
        %1216 = vmatpush1.bf16.msra.mxu0 0
        %1217 = vmatprep.subr.bf16.mxu0 0
        %1218 = vmatpush1.bf16.msra.mxu0 0
        %1219 = vmatprep.subr.bf16.mxu0 0
        %1220 = vmatpush1.bf16.msra.mxu0 0
        %1221 = vmatprep.subr.bf16.mxu0 0
        %1222 = vmatpush1.bf16.msra.mxu0 0
        %1223 = vmatprep.subr.bf16.mxu0 0
        %1224 = vmatpush1.bf16.msra.mxu0 0
        %1225 = vmatprep.subr.bf16.mxu0 0
        %1226 = vmatpush1.bf16.msra.mxu0 0
        %1227 = vmatprep.subr.bf16.mxu0 0
        %1228 = vmatpush1.bf16.msra.mxu0 0
        %1229 = vmatprep.subr.bf16.mxu0 0
        %1230 = vmatpush1.bf16.msra.mxu0 0
        %1231 = vmatprep.subr.bf16.mxu0 0
        %1232 = vmatpush1.bf16.msra.mxu0 0
        %1233 = vmatprep.subr.bf16.mxu0 0
        %1234 = vmatpush1.bf16.msra.mxu0 0
        %1235 = vmatprep.subr.bf16.mxu0 0
        %1236 = vmatpush1.bf16.msra.mxu0 0
        %1237 = vmatprep.subr.bf16.mxu0 0
        %1238 = vmatpush1.bf16.msra.mxu0 0
        %1239 = vmatprep.subr.bf16.mxu0 0
        %1240 = vmatpush1.bf16.msra.mxu0 0
        %1241 = vmatprep.subr.bf16.mxu0 0
        %1242 = vmatpush1.bf16.msra.mxu0 0
        %1243 = vmatprep.subr.bf16.mxu0 0
        %1244 = vmatpush1.bf16.msra.mxu0 0
        %1245 = vmatprep.mubr.bf16.mxu0 0
        %1246 = vmatmul.mubr.bf16.gmra.mrb[0].mxu0 %v1163
        %v1247 = vpop.f32.mrb[0].mxu0
        %v1248 = vadd.f32 0.0, %v1247
        %v1249 = vpop.f32.mrb[0].mxu0
        %v1250 = vpop.f32.mrb[0].mxu0
        %v1251 = vadd.f32 0.0, %v1250
        %v1252 = vpop.f32.mrb[0].mxu0
        %1253 = vmatprep.mubr.bf16.mxu0 0
        %1254 = vmatmul.mubr.bf16.gmra.mrb[0].mxu0 %v1166
        %v1255 = vpop.f32.mrb[0].mxu0
        %v1256 = vadd.f32 0.0, %v1255
        %v1257 = vpop.f32.mrb[0].mxu0
        %v1258 = vpop.f32.mrb[0].mxu0
        %v1259 = vadd.f32 0.0, %v1258
        %v1260 = vpop.f32.mrb[0].mxu0
        %1261 = vmatprep.mubr.bf16.mxu0 0
        %1262 = vmatmul.mubr.bf16.gmra.mrb[0].mxu0 %v1169
        %v1263 = vpop.f32.mrb[0].mxu0
        %v1264 = vadd.f32 0.0, %v1263
        %v1265 = vpop.f32.mrb[0].mxu0
        %v1266 = vpop.f32.mrb[0].mxu0
        %v1267 = vadd.f32 0.0, %v1266
        %v1268 = vpop.f32.mrb[0].mxu0
        %1269 = vmatprep.mubr.bf16.mxu0 0
        %1270 = vmatmul.mubr.bf16.gmra.mrb[0].mxu0 %v1172
        %v1271 = vpop.f32.mrb[0].mxu0
        %v1272 = vadd.f32 0.0, %v1271
        %v1273 = vpop.f32.mrb[0].mxu0
        %v1274 = vpop.f32.mrb[0].mxu0
        %v1275 = vadd.f32 0.0, %v1274
        %v1276 = vpop.f32.mrb[0].mxu0
        %1277 = vmatprep.mubr.bf16.mxu0 0
        %1278 = vmatmul.mubr.bf16.gmra.mrb[0].mxu0 %v1175
        %v1279 = vpop.f32.mrb[0].mxu0
        %v1280 = vadd.f32 0.0, %v1279
        %v1281 = vpop.f32.mrb[0].mxu0
        %v1282 = vpop.f32.mrb[0].mxu0
        %v1283 = vadd.f32 0.0, %v1282
        %v1284 = vpop.f32.mrb[0].mxu0
        %1285 = vmatprep.mubr.bf16.mxu0 0
        %1286 = vmatmul.mubr.bf16.gmra.mrb[0].mxu0 %v1178
        %v1287 = vpop.f32.mrb[0].mxu0
        %v1288 = vadd.f32 0.0, %v1287
        %v1289 = vpop.f32.mrb[0].mxu0
        %v1290 = vpop.f32.mrb[0].mxu0
        %v1291 = vadd.f32 0.0, %v1290
        %v1292 = vpop.f32.mrb[0].mxu0
        %1293 = vmatprep.mubr.bf16.mxu0 0
        %1294 = vmatmul.mubr.bf16.gmra.mrb[0].mxu0 %v1181
        %v1295 = vpop.f32.mrb[0].mxu0
        %v1296 = vadd.f32 0.0, %v1295
        %v1297 = vpop.f32.mrb[0].mxu0
        %v1298 = vpop.f32.mrb[0].mxu0
        %v1299 = vadd.f32 0.0, %v1298
        %v1300 = vpop.f32.mrb[0].mxu0
        %1301 = vmatprep.mubr.bf16.mxu0 0
        %1302 = vmatmul.mubr.bf16.gmra.mrb[0].mxu0 %v1184
        %v1303 = vpop.f32.mrb[0].mxu0
        %v1304 = vadd.f32 0.0, %v1303
        %v1305 = vpop.f32.mrb[0].mxu0
        %v1306 = vpop.f32.mrb[0].mxu0
        %v1307 = vadd.f32 0.0, %v1306
        %v1308 = vpop.f32.mrb[0].mxu0
        %1309 = vmatprep.mubr.bf16.mxu0 0
        %1310 = vmatmul.mubr.bf16.gmra.mrb[0].mxu0 %v1187
        %v1311 = vpop.f32.mrb[0].mxu0
        %v1312 = vadd.f32 0.0, %v1311
        %v1313 = vpop.f32.mrb[0].mxu0
        %v1314 = vpop.f32.mrb[0].mxu0
        %v1315 = vadd.f32 0.0, %v1314
        %v1316 = vpop.f32.mrb[0].mxu0
        %1317 = vmatprep.mubr.bf16.mxu0 0
        %1318 = vmatmul.mubr.bf16.gmra.mrb[0].mxu0 %v1190
        %v1319 = vpop.f32.mrb[0].mxu0
        %v1320 = vadd.f32 0.0, %v1319
        %v1321 = vpop.f32.mrb[0].mxu0
        %v1322 = vpop.f32.mrb[0].mxu0
        %v1323 = vadd.f32 0.0, %v1322
        %v1324 = vpop.f32.mrb[0].mxu0
        %1325 = vmatprep.mubr.bf16.mxu0 0
        %1326 = vmatmul.mubr.bf16.gmra.mrb[0].mxu0 %v1193
        %v1327 = vpop.f32.mrb[0].mxu0
        %v1328 = vadd.f32 0.0, %v1327
        %v1329 = vpop.f32.mrb[0].mxu0
        %v1330 = vpop.f32.mrb[0].mxu0
        %v1331 = vadd.f32 0.0, %v1330
        %v1332 = vpop.f32.mrb[0].mxu0
        %1333 = vmatprep.mubr.bf16.mxu0 0
        %1334 = vmatmul.mubr.bf16.gmra.mrb[0].mxu0 %v1196
        %v1335 = vpop.f32.mrb[0].mxu0
        %v1336 = vadd.f32 0.0, %v1335
        %v1337 = vpop.f32.mrb[0].mxu0
        %v1338 = vpop.f32.mrb[0].mxu0
        %v1339 = vadd.f32 0.0, %v1338
        %v1340 = vpop.f32.mrb[0].mxu0
        %1341 = vmatprep.mubr.bf16.mxu0 0
        %1342 = vmatmul.mubr.bf16.gmra.mrb[0].mxu0 %v1199
        %v1343 = vpop.f32.mrb[0].mxu0
        %v1344 = vadd.f32 0.0, %v1343
        %v1345 = vpop.f32.mrb[0].mxu0
        %v1346 = vpop.f32.mrb[0].mxu0
        %v1347 = vadd.f32 0.0, %v1346
        %v1348 = vpop.f32.mrb[0].mxu0
        %1349 = vmatprep.mubr.bf16.mxu0 0
        %1350 = vmatmul.mubr.bf16.gmra.mrb[0].mxu0 %v1202
        %v1351 = vpop.f32.mrb[0].mxu0
        %v1352 = vadd.f32 0.0, %v1351
        %v1353 = vpop.f32.mrb[0].mxu0
        %v1354 = vpop.f32.mrb[0].mxu0
        %v1355 = vadd.f32 0.0, %v1354
        %v1356 = vpop.f32.mrb[0].mxu0
        %1357 = vmatprep.mubr.bf16.mxu0 0
        %1358 = vmatmul.mubr.bf16.gmra.mrb[0].mxu0 %v1205
        %v1359 = vpop.f32.mrb[0].mxu0
        %v1360 = vadd.f32 0.0, %v1359
        %v1361 = vpop.f32.mrb[0].mxu0
        %v1362 = vpop.f32.mrb[0].mxu0
        %v1363 = vadd.f32 0.0, %v1362
        %v1364 = vpop.f32.mrb[0].mxu0
        %1365 = vmatprep.mubr.bf16.mxu0 0
        %1366 = vmatmul.mubr.bf16.gmra.mrb[0].mxu0 %v1208
        %v1367 = vpop.f32.mrb[0].mxu0
        %v1368 = vadd.f32 0.0, %v1367
        %v1369 = vpop.f32.mrb[0].mxu0
        %v1370 = vpop.f32.mrb[0].mxu0
        %v1371 = vadd.f32 0.0, %v1370
        %v1372 = vpop.f32.mrb[0].mxu0
        %1373 = vdwg.mxu0
        %v1374 = vadd.f32 %v905, %v1248
        %v1375 = vadd.f32 %v908, %v1251
        %v1376 = vadd.f32 %v913, %v1256
        %v1377 = vadd.f32 %v916, %v1259
        %v1378 = vadd.f32 %v921, %v1264
        %v1379 = vadd.f32 %v924, %v1267
        %v1380 = vadd.f32 %v929, %v1272
        %v1381 = vadd.f32 %v932, %v1275
        %v1382 = vadd.f32 %v937, %v1280
        %v1383 = vadd.f32 %v940, %v1283
        %v1384 = vadd.f32 %v945, %v1288
        %v1385 = vadd.f32 %v948, %v1291
        %v1386 = vadd.f32 %v953, %v1296
        %v1387 = vadd.f32 %v956, %v1299
        %v1388 = vadd.f32 %v961, %v1304
        %v1389 = vadd.f32 %v964, %v1307
        %v1390 = vadd.f32 %v969, %v1312
        %v1391 = vadd.f32 %v972, %v1315
        %v1392 = vadd.f32 %v977, %v1320
        %v1393 = vadd.f32 %v980, %v1323
        %v1394 = vadd.f32 %v985, %v1328
        %v1395 = vadd.f32 %v988, %v1331
        %v1396 = vadd.f32 %v993, %v1336
        %v1397 = vadd.f32 %v996, %v1339
        %v1398 = vadd.f32 %v1001, %v1344
        %v1399 = vadd.f32 %v1004, %v1347
        %v1400 = vadd.f32 %v1009, %v1352
        %v1401 = vadd.f32 %v1012, %v1355
        %v1402 = vadd.f32 %v1017, %v1360
        %v1403 = vadd.f32 %v1020, %v1363
        %v1404 = vadd.f32 %v1025, %v1368
        %v1405 = vadd.f32 %v1028, %v1371
        %v1406 = vpack.c.bf16 %v340, %v407
        %s1407 = scalar_lea.vmem %s1, 6
        %v1408 = vld [vmem:[%s1407] sm:$0x3]
        %v1410 = vsel %vm605, %v1406, 0
        %v1413 = vsel %vm654, %v1408, 0
        %1415 = vmatprep.subr.bf16.mxu0 0
        %1416 = vmatpush1.bf16.msra.mxu0 %v1413
        %1417 = vmatprep.subr.bf16.mxu0 0
        %1418 = vmatpush1.bf16.msra.mxu0 0
        %1419 = vmatprep.subr.bf16.mxu0 0
        %1420 = vmatpush1.bf16.msra.mxu0 0
        %1421 = vmatprep.subr.bf16.mxu0 0
        %1422 = vmatpush1.bf16.msra.mxu0 0
        %1423 = vmatprep.subr.bf16.mxu0 0
        %1424 = vmatpush1.bf16.msra.mxu0 0
        %1425 = vmatprep.subr.bf16.mxu0 0
        %1426 = vmatpush1.bf16.msra.mxu0 0
        %1427 = vmatprep.subr.bf16.mxu0 0
        %1428 = vmatpush1.bf16.msra.mxu0 0
        %1429 = vmatprep.subr.bf16.mxu0 0
        %1430 = vmatpush1.bf16.msra.mxu0 0
        %1431 = vmatprep.subr.bf16.mxu0 0
        %1432 = vmatpush1.bf16.msra.mxu0 0
        %1433 = vmatprep.subr.bf16.mxu0 0
        %1434 = vmatpush1.bf16.msra.mxu0 0
        %1435 = vmatprep.subr.bf16.mxu0 0
        %1436 = vmatpush1.bf16.msra.mxu0 0
        %1437 = vmatprep.subr.bf16.mxu0 0
        %1438 = vmatpush1.bf16.msra.mxu0 0
        %1439 = vmatprep.subr.bf16.mxu0 0
        %1440 = vmatpush1.bf16.msra.mxu0 0
        %1441 = vmatprep.subr.bf16.mxu0 0
        %1442 = vmatpush1.bf16.msra.mxu0 0
        %1443 = vmatprep.subr.bf16.mxu0 0
        %1444 = vmatpush1.bf16.msra.mxu0 0
        %1445 = vmatprep.subr.bf16.mxu0 0
        %1446 = vmatpush1.bf16.msra.mxu0 0
        %1447 = vmatprep.mubr.bf16.mxu0 0
        %1448 = vmatmul.mubr.bf16.gmra.mrb[0].mxu0 %v823
        %v1449 = vpop.f32.mrb[0].mxu0
        %v1450 = vadd.f32 0.0, %v1449
        %v1451 = vpop.f32.mrb[0].mxu0
        %v1452 = vpop.f32.mrb[0].mxu0
        %v1453 = vadd.f32 0.0, %v1452
        %v1454 = vpop.f32.mrb[0].mxu0
        %1455 = vmatprep.mubr.bf16.mxu0 0
        %1456 = vmatmul.mubr.bf16.gmra.mrb[0].mxu0 %v826
        %v1457 = vpop.f32.mrb[0].mxu0
        %v1458 = vadd.f32 0.0, %v1457
        %v1459 = vpop.f32.mrb[0].mxu0
        %v1460 = vpop.f32.mrb[0].mxu0
        %v1461 = vadd.f32 0.0, %v1460
        %v1462 = vpop.f32.mrb[0].mxu0
        %1463 = vmatprep.mubr.bf16.mxu0 0
        %1464 = vmatmul.mubr.bf16.gmra.mrb[0].mxu0 %v829
        %v1465 = vpop.f32.mrb[0].mxu0
        %v1466 = vadd.f32 0.0, %v1465
        %v1467 = vpop.f32.mrb[0].mxu0
        %v1468 = vpop.f32.mrb[0].mxu0
        %v1469 = vadd.f32 0.0, %v1468
        %v1470 = vpop.f32.mrb[0].mxu0
        %1471 = vmatprep.mubr.bf16.mxu0 0
        %1472 = vmatmul.mubr.bf16.gmra.mrb[0].mxu0 %v832
        %v1473 = vpop.f32.mrb[0].mxu0
        %v1474 = vadd.f32 0.0, %v1473
        %v1475 = vpop.f32.mrb[0].mxu0
        %v1476 = vpop.f32.mrb[0].mxu0
        %v1477 = vadd.f32 0.0, %v1476
        %v1478 = vpop.f32.mrb[0].mxu0
        %1479 = vmatprep.mubr.bf16.mxu0 0
        %1480 = vmatmul.mubr.bf16.gmra.mrb[0].mxu0 %v835
        %v1481 = vpop.f32.mrb[0].mxu0
        %v1482 = vadd.f32 0.0, %v1481
        %v1483 = vpop.f32.mrb[0].mxu0
        %v1484 = vpop.f32.mrb[0].mxu0
        %v1485 = vadd.f32 0.0, %v1484
        %v1486 = vpop.f32.mrb[0].mxu0
        %1487 = vmatprep.mubr.bf16.mxu0 0
        %1488 = vmatmul.mubr.bf16.gmra.mrb[0].mxu0 %v838
        %v1489 = vpop.f32.mrb[0].mxu0
        %v1490 = vadd.f32 0.0, %v1489
        %v1491 = vpop.f32.mrb[0].mxu0
        %v1492 = vpop.f32.mrb[0].mxu0
        %v1493 = vadd.f32 0.0, %v1492
        %v1494 = vpop.f32.mrb[0].mxu0
        %1495 = vmatprep.mubr.bf16.mxu0 0
        %1496 = vmatmul.mubr.bf16.gmra.mrb[0].mxu0 %v841
        %v1497 = vpop.f32.mrb[0].mxu0
        %v1498 = vadd.f32 0.0, %v1497
        %v1499 = vpop.f32.mrb[0].mxu0
        %v1500 = vpop.f32.mrb[0].mxu0
        %v1501 = vadd.f32 0.0, %v1500
        %v1502 = vpop.f32.mrb[0].mxu0
        %1503 = vmatprep.mubr.bf16.mxu0 0
        %1504 = vmatmul.mubr.bf16.gmra.mrb[0].mxu0 %v844
        %v1505 = vpop.f32.mrb[0].mxu0
        %v1506 = vadd.f32 0.0, %v1505
        %v1507 = vpop.f32.mrb[0].mxu0
        %v1508 = vpop.f32.mrb[0].mxu0
        %v1509 = vadd.f32 0.0, %v1508
        %v1510 = vpop.f32.mrb[0].mxu0
        %1511 = vmatprep.mubr.bf16.mxu0 0
        %1512 = vmatmul.mubr.bf16.gmra.mrb[0].mxu0 %v847
        %v1513 = vpop.f32.mrb[0].mxu0
        %v1514 = vadd.f32 0.0, %v1513
        %v1515 = vpop.f32.mrb[0].mxu0
        %v1516 = vpop.f32.mrb[0].mxu0
        %v1517 = vadd.f32 0.0, %v1516
        %v1518 = vpop.f32.mrb[0].mxu0
        %1519 = vmatprep.mubr.bf16.mxu0 0
        %1520 = vmatmul.mubr.bf16.gmra.mrb[0].mxu0 %v850
        %v1521 = vpop.f32.mrb[0].mxu0
        %v1522 = vadd.f32 0.0, %v1521
        %v1523 = vpop.f32.mrb[0].mxu0
        %v1524 = vpop.f32.mrb[0].mxu0
        %v1525 = vadd.f32 0.0, %v1524
        %v1526 = vpop.f32.mrb[0].mxu0
        %1527 = vmatprep.mubr.bf16.mxu0 0
        %1528 = vmatmul.mubr.bf16.gmra.mrb[0].mxu0 %v853
        %v1529 = vpop.f32.mrb[0].mxu0
        %v1530 = vadd.f32 0.0, %v1529
        %v1531 = vpop.f32.mrb[0].mxu0
        %v1532 = vpop.f32.mrb[0].mxu0
        %v1533 = vadd.f32 0.0, %v1532
        %v1534 = vpop.f32.mrb[0].mxu0
        %1535 = vmatprep.mubr.bf16.mxu0 0
        %1536 = vmatmul.mubr.bf16.gmra.mrb[0].mxu0 %v856
        %v1537 = vpop.f32.mrb[0].mxu0
        %v1538 = vadd.f32 0.0, %v1537
        %v1539 = vpop.f32.mrb[0].mxu0
        %v1540 = vpop.f32.mrb[0].mxu0
        %v1541 = vadd.f32 0.0, %v1540
        %v1542 = vpop.f32.mrb[0].mxu0
        %1543 = vmatprep.mubr.bf16.mxu0 0
        %1544 = vmatmul.mubr.bf16.gmra.mrb[0].mxu0 %v859
        %v1545 = vpop.f32.mrb[0].mxu0
        %v1546 = vadd.f32 0.0, %v1545
        %v1547 = vpop.f32.mrb[0].mxu0
        %v1548 = vpop.f32.mrb[0].mxu0
        %v1549 = vadd.f32 0.0, %v1548
        %v1550 = vpop.f32.mrb[0].mxu0
        %1551 = vmatprep.mubr.bf16.mxu0 0
        %1552 = vmatmul.mubr.bf16.gmra.mrb[0].mxu0 %v862
        %v1553 = vpop.f32.mrb[0].mxu0
        %v1554 = vadd.f32 0.0, %v1553
        %v1555 = vpop.f32.mrb[0].mxu0
        %v1556 = vpop.f32.mrb[0].mxu0
        %v1557 = vadd.f32 0.0, %v1556
        %v1558 = vpop.f32.mrb[0].mxu0
        %1559 = vmatprep.mubr.bf16.mxu0 0
        %1560 = vmatmul.mubr.bf16.gmra.mrb[0].mxu0 %v865
        %v1561 = vpop.f32.mrb[0].mxu0
        %v1562 = vadd.f32 0.0, %v1561
        %v1563 = vpop.f32.mrb[0].mxu0
        %v1564 = vpop.f32.mrb[0].mxu0
        %v1565 = vadd.f32 0.0, %v1564
        %v1566 = vpop.f32.mrb[0].mxu0
        %1567 = vmatprep.mubr.bf16.mxu0 0
        %1568 = vmatmul.mubr.bf16.gmra.mrb[0].mxu0 %v1410
        %v1569 = vpop.f32.mrb[0].mxu0
        %v1570 = vadd.f32 0.0, %v1569
        %v1571 = vpop.f32.mrb[0].mxu0
        %v1572 = vpop.f32.mrb[0].mxu0
        %v1573 = vadd.f32 0.0, %v1572
        %v1574 = vpop.f32.mrb[0].mxu0
        %1575 = vdwg.mxu0
        %v1576 = vadd.f32 %v1374, %v1450
        %v1577 = vadd.f32 %v1375, %v1453
        %v1578 = vadd.f32 %v1376, %v1458
        %v1579 = vadd.f32 %v1377, %v1461
        %v1580 = vadd.f32 %v1378, %v1466
        %v1581 = vadd.f32 %v1379, %v1469
        %v1582 = vadd.f32 %v1380, %v1474
        %v1583 = vadd.f32 %v1381, %v1477
        %v1584 = vadd.f32 %v1382, %v1482
        %v1585 = vadd.f32 %v1383, %v1485
        %v1586 = vadd.f32 %v1384, %v1490
        %v1587 = vadd.f32 %v1385, %v1493
        %v1588 = vadd.f32 %v1386, %v1498
        %v1589 = vadd.f32 %v1387, %v1501
        %v1590 = vadd.f32 %v1388, %v1506
        %v1591 = vadd.f32 %v1389, %v1509
        %v1592 = vadd.f32 %v1390, %v1514
        %v1593 = vadd.f32 %v1391, %v1517
        %v1594 = vadd.f32 %v1392, %v1522
        %v1595 = vadd.f32 %v1393, %v1525
        %v1596 = vadd.f32 %v1394, %v1530
        %v1597 = vadd.f32 %v1395, %v1533
        %v1598 = vadd.f32 %v1396, %v1538
        %v1599 = vadd.f32 %v1397, %v1541
        %v1600 = vadd.f32 %v1398, %v1546
        %v1601 = vadd.f32 %v1399, %v1549
        %v1602 = vadd.f32 %v1400, %v1554
        %v1603 = vadd.f32 %v1401, %v1557
        %v1604 = vadd.f32 %v1402, %v1562
        %v1605 = vadd.f32 %v1403, %v1565
        %v1606 = vadd.f32 %v1404, %v1570
        %v1607 = vadd.f32 %v1405, %v1573
        %v1610 = vrot.slane %v407, 1
        %v1611 = vrot.slane %v340, 1
        %v1612 = vsel %vm474, %v1610, %v1611
        %v1613 = vrot.slane %v424, 1
        %v1614 = vsel %vm474, %v1611, %v1613
        %v1617 = vpack.c.bf16 %v1614, %v1612
        %s1618 = scalar_lea.vmem %s1, 8
        %v1619 = vld [vmem:[%s1618] sm:$0x3]
        %v1621 = vsel %vm605, %v1617, 0
        %v1624 = vsel %vm654, %v1619, 0
        %1626 = vmatprep.subr.bf16.mxu0 0
        %1627 = vmatpush1.bf16.msra.mxu0 %v1624
        %1628 = vmatprep.subr.bf16.mxu0 0
        %1629 = vmatpush1.bf16.msra.mxu0 0
        %1630 = vmatprep.subr.bf16.mxu0 0
        %1631 = vmatpush1.bf16.msra.mxu0 0
        %1632 = vmatprep.subr.bf16.mxu0 0
        %1633 = vmatpush1.bf16.msra.mxu0 0
        %1634 = vmatprep.subr.bf16.mxu0 0
        %1635 = vmatpush1.bf16.msra.mxu0 0
        %1636 = vmatprep.subr.bf16.mxu0 0
        %1637 = vmatpush1.bf16.msra.mxu0 0
        %1638 = vmatprep.subr.bf16.mxu0 0
        %1639 = vmatpush1.bf16.msra.mxu0 0
        %1640 = vmatprep.subr.bf16.mxu0 0
        %1641 = vmatpush1.bf16.msra.mxu0 0
        %1642 = vmatprep.subr.bf16.mxu0 0
        %1643 = vmatpush1.bf16.msra.mxu0 0
        %1644 = vmatprep.subr.bf16.mxu0 0
        %1645 = vmatpush1.bf16.msra.mxu0 0
        %1646 = vmatprep.subr.bf16.mxu0 0
        %1647 = vmatpush1.bf16.msra.mxu0 0
        %1648 = vmatprep.subr.bf16.mxu0 0
        %1649 = vmatpush1.bf16.msra.mxu0 0
        %1650 = vmatprep.subr.bf16.mxu0 0
        %1651 = vmatpush1.bf16.msra.mxu0 0
        %1652 = vmatprep.subr.bf16.mxu0 0
        %1653 = vmatpush1.bf16.msra.mxu0 0
        %1654 = vmatprep.subr.bf16.mxu0 0
        %1655 = vmatpush1.bf16.msra.mxu0 0
        %1656 = vmatprep.subr.bf16.mxu0 0
        %1657 = vmatpush1.bf16.msra.mxu0 0
        %1658 = vmatprep.mubr.bf16.mxu0 0
        %1659 = vmatmul.mubr.bf16.gmra.mrb[0].mxu0 %v610
        %v1660 = vpop.f32.mrb[0].mxu0
        %v1661 = vadd.f32 0.0, %v1660
        %v1662 = vpop.f32.mrb[0].mxu0
        %v1663 = vpop.f32.mrb[0].mxu0
        %v1664 = vadd.f32 0.0, %v1663
        %v1665 = vpop.f32.mrb[0].mxu0
        %1666 = vmatprep.mubr.bf16.mxu0 0
        %1667 = vmatmul.mubr.bf16.gmra.mrb[0].mxu0 %v613
        %v1668 = vpop.f32.mrb[0].mxu0
        %v1669 = vadd.f32 0.0, %v1668
        %v1670 = vpop.f32.mrb[0].mxu0
        %v1671 = vpop.f32.mrb[0].mxu0
        %v1672 = vadd.f32 0.0, %v1671
        %v1673 = vpop.f32.mrb[0].mxu0
        %1674 = vmatprep.mubr.bf16.mxu0 0
        %1675 = vmatmul.mubr.bf16.gmra.mrb[0].mxu0 %v616
        %v1676 = vpop.f32.mrb[0].mxu0
        %v1677 = vadd.f32 0.0, %v1676
        %v1678 = vpop.f32.mrb[0].mxu0
        %v1679 = vpop.f32.mrb[0].mxu0
        %v1680 = vadd.f32 0.0, %v1679
        %v1681 = vpop.f32.mrb[0].mxu0
        %1682 = vmatprep.mubr.bf16.mxu0 0
        %1683 = vmatmul.mubr.bf16.gmra.mrb[0].mxu0 %v619
        %v1684 = vpop.f32.mrb[0].mxu0
        %v1685 = vadd.f32 0.0, %v1684
        %v1686 = vpop.f32.mrb[0].mxu0
        %v1687 = vpop.f32.mrb[0].mxu0
        %v1688 = vadd.f32 0.0, %v1687
        %v1689 = vpop.f32.mrb[0].mxu0
        %1690 = vmatprep.mubr.bf16.mxu0 0
        %1691 = vmatmul.mubr.bf16.gmra.mrb[0].mxu0 %v622
        %v1692 = vpop.f32.mrb[0].mxu0
        %v1693 = vadd.f32 0.0, %v1692
        %v1694 = vpop.f32.mrb[0].mxu0
        %v1695 = vpop.f32.mrb[0].mxu0
        %v1696 = vadd.f32 0.0, %v1695
        %v1697 = vpop.f32.mrb[0].mxu0
        %1698 = vmatprep.mubr.bf16.mxu0 0
        %1699 = vmatmul.mubr.bf16.gmra.mrb[0].mxu0 %v625
        %v1700 = vpop.f32.mrb[0].mxu0
        %v1701 = vadd.f32 0.0, %v1700
        %v1702 = vpop.f32.mrb[0].mxu0
        %v1703 = vpop.f32.mrb[0].mxu0
        %v1704 = vadd.f32 0.0, %v1703
        %v1705 = vpop.f32.mrb[0].mxu0
        %1706 = vmatprep.mubr.bf16.mxu0 0
        %1707 = vmatmul.mubr.bf16.gmra.mrb[0].mxu0 %v628
        %v1708 = vpop.f32.mrb[0].mxu0
        %v1709 = vadd.f32 0.0, %v1708
        %v1710 = vpop.f32.mrb[0].mxu0
        %v1711 = vpop.f32.mrb[0].mxu0
        %v1712 = vadd.f32 0.0, %v1711
        %v1713 = vpop.f32.mrb[0].mxu0
        %1714 = vmatprep.mubr.bf16.mxu0 0
        %1715 = vmatmul.mubr.bf16.gmra.mrb[0].mxu0 %v631
        %v1716 = vpop.f32.mrb[0].mxu0
        %v1717 = vadd.f32 0.0, %v1716
        %v1718 = vpop.f32.mrb[0].mxu0
        %v1719 = vpop.f32.mrb[0].mxu0
        %v1720 = vadd.f32 0.0, %v1719
        %v1721 = vpop.f32.mrb[0].mxu0
        %1722 = vmatprep.mubr.bf16.mxu0 0
        %1723 = vmatmul.mubr.bf16.gmra.mrb[0].mxu0 %v634
        %v1724 = vpop.f32.mrb[0].mxu0
        %v1725 = vadd.f32 0.0, %v1724
        %v1726 = vpop.f32.mrb[0].mxu0
        %v1727 = vpop.f32.mrb[0].mxu0
        %v1728 = vadd.f32 0.0, %v1727
        %v1729 = vpop.f32.mrb[0].mxu0
        %1730 = vmatprep.mubr.bf16.mxu0 0
        %1731 = vmatmul.mubr.bf16.gmra.mrb[0].mxu0 %v637
        %v1732 = vpop.f32.mrb[0].mxu0
        %v1733 = vadd.f32 0.0, %v1732
        %v1734 = vpop.f32.mrb[0].mxu0
        %v1735 = vpop.f32.mrb[0].mxu0
        %v1736 = vadd.f32 0.0, %v1735
        %v1737 = vpop.f32.mrb[0].mxu0
        %1738 = vmatprep.mubr.bf16.mxu0 0
        %1739 = vmatmul.mubr.bf16.gmra.mrb[0].mxu0 %v640
        %v1740 = vpop.f32.mrb[0].mxu0
        %v1741 = vadd.f32 0.0, %v1740
        %v1742 = vpop.f32.mrb[0].mxu0
        %v1743 = vpop.f32.mrb[0].mxu0
        %v1744 = vadd.f32 0.0, %v1743
        %v1745 = vpop.f32.mrb[0].mxu0
        %1746 = vmatprep.mubr.bf16.mxu0 0
        %1747 = vmatmul.mubr.bf16.gmra.mrb[0].mxu0 %v643
        %v1748 = vpop.f32.mrb[0].mxu0
        %v1749 = vadd.f32 0.0, %v1748
        %v1750 = vpop.f32.mrb[0].mxu0
        %v1751 = vpop.f32.mrb[0].mxu0
        %v1752 = vadd.f32 0.0, %v1751
        %v1753 = vpop.f32.mrb[0].mxu0
        %1754 = vmatprep.mubr.bf16.mxu0 0
        %1755 = vmatmul.mubr.bf16.gmra.mrb[0].mxu0 %v646
        %v1756 = vpop.f32.mrb[0].mxu0
        %v1757 = vadd.f32 0.0, %v1756
        %v1758 = vpop.f32.mrb[0].mxu0
        %v1759 = vpop.f32.mrb[0].mxu0
        %v1760 = vadd.f32 0.0, %v1759
        %v1761 = vpop.f32.mrb[0].mxu0
        %1762 = vmatprep.mubr.bf16.mxu0 0
        %1763 = vmatmul.mubr.bf16.gmra.mrb[0].mxu0 %v649
        %v1764 = vpop.f32.mrb[0].mxu0
        %v1765 = vadd.f32 0.0, %v1764
        %v1766 = vpop.f32.mrb[0].mxu0
        %v1767 = vpop.f32.mrb[0].mxu0
        %v1768 = vadd.f32 0.0, %v1767
        %v1769 = vpop.f32.mrb[0].mxu0
        %1770 = vmatprep.mubr.bf16.mxu0 0
        %1771 = vmatmul.mubr.bf16.gmra.mrb[0].mxu0 %v652
        %v1772 = vpop.f32.mrb[0].mxu0
        %v1773 = vadd.f32 0.0, %v1772
        %v1774 = vpop.f32.mrb[0].mxu0
        %v1775 = vpop.f32.mrb[0].mxu0
        %v1776 = vadd.f32 0.0, %v1775
        %v1777 = vpop.f32.mrb[0].mxu0
        %1778 = vmatprep.mubr.bf16.mxu0 0
        %1779 = vmatmul.mubr.bf16.gmra.mrb[0].mxu0 %v1621
        %v1780 = vpop.f32.mrb[0].mxu0
        %v1781 = vadd.f32 0.0, %v1780
        %v1782 = vpop.f32.mrb[0].mxu0
        %v1783 = vpop.f32.mrb[0].mxu0
        %v1784 = vadd.f32 0.0, %v1783
        %v1785 = vpop.f32.mrb[0].mxu0
        %1786 = vdwg.mxu0
        %v1787 = vadd.f32 %v1576, %v1661
        %v1788 = vadd.f32 %v1577, %v1664
        %v1789 = vadd.f32 %v1578, %v1669
        %v1790 = vadd.f32 %v1579, %v1672
        %v1791 = vadd.f32 %v1580, %v1677
        %v1792 = vadd.f32 %v1581, %v1680
        %v1793 = vadd.f32 %v1582, %v1685
        %v1794 = vadd.f32 %v1583, %v1688
        %v1795 = vadd.f32 %v1584, %v1693
        %v1796 = vadd.f32 %v1585, %v1696
        %v1797 = vadd.f32 %v1586, %v1701
        %v1798 = vadd.f32 %v1587, %v1704
        %v1799 = vadd.f32 %v1588, %v1709
        %v1800 = vadd.f32 %v1589, %v1712
        %v1801 = vadd.f32 %v1590, %v1717
        %v1802 = vadd.f32 %v1591, %v1720
        %v1803 = vadd.f32 %v1592, %v1725
        %v1804 = vadd.f32 %v1593, %v1728
        %v1805 = vadd.f32 %v1594, %v1733
        %v1806 = vadd.f32 %v1595, %v1736
        %v1807 = vadd.f32 %v1596, %v1741
        %v1808 = vadd.f32 %v1597, %v1744
        %v1809 = vadd.f32 %v1598, %v1749
        %v1810 = vadd.f32 %v1599, %v1752
        %v1811 = vadd.f32 %v1600, %v1757
        %v1812 = vadd.f32 %v1601, %v1760
        %v1813 = vadd.f32 %v1602, %v1765
        %v1814 = vadd.f32 %v1603, %v1768
        %v1815 = vadd.f32 %v1604, %v1773
        %v1816 = vadd.f32 %v1605, %v1776
        %v1817 = vadd.f32 %v1606, %v1781
        %v1818 = vadd.f32 %v1607, %v1784
        %v1819 = vrot.slane %v407, 2
        %v1820 = vrot.slane %v340, 2
        %v1821 = vsel %vm1031, %v1819, %v1820
        %v1822 = vrot.slane %v424, 2
        %v1823 = vsel %vm1031, %v1820, %v1822
        %v1826 = vpack.c.bf16 %v1823, %v1821
        %s1827 = scalar_lea.vmem %s1, 10
        %v1828 = vld [vmem:[%s1827] sm:$0x3]
        %v1830 = vsel %vm605, %v1826, 0
        %v1833 = vsel %vm654, %v1828, 0
        %1835 = vmatprep.subr.bf16.mxu0 0
        %1836 = vmatpush1.bf16.msra.mxu0 %v1833
        %1837 = vmatprep.subr.bf16.mxu0 0
        %1838 = vmatpush1.bf16.msra.mxu0 0
        %1839 = vmatprep.subr.bf16.mxu0 0
        %1840 = vmatpush1.bf16.msra.mxu0 0
        %1841 = vmatprep.subr.bf16.mxu0 0
        %1842 = vmatpush1.bf16.msra.mxu0 0
        %1843 = vmatprep.subr.bf16.mxu0 0
        %1844 = vmatpush1.bf16.msra.mxu0 0
        %1845 = vmatprep.subr.bf16.mxu0 0
        %1846 = vmatpush1.bf16.msra.mxu0 0
        %1847 = vmatprep.subr.bf16.mxu0 0
        %1848 = vmatpush1.bf16.msra.mxu0 0
        %1849 = vmatprep.subr.bf16.mxu0 0
        %1850 = vmatpush1.bf16.msra.mxu0 0
        %1851 = vmatprep.subr.bf16.mxu0 0
        %1852 = vmatpush1.bf16.msra.mxu0 0
        %1853 = vmatprep.subr.bf16.mxu0 0
        %1854 = vmatpush1.bf16.msra.mxu0 0
        %1855 = vmatprep.subr.bf16.mxu0 0
        %1856 = vmatpush1.bf16.msra.mxu0 0
        %1857 = vmatprep.subr.bf16.mxu0 0
        %1858 = vmatpush1.bf16.msra.mxu0 0
        %1859 = vmatprep.subr.bf16.mxu0 0
        %1860 = vmatpush1.bf16.msra.mxu0 0
        %1861 = vmatprep.subr.bf16.mxu0 0
        %1862 = vmatpush1.bf16.msra.mxu0 0
        %1863 = vmatprep.subr.bf16.mxu0 0
        %1864 = vmatpush1.bf16.msra.mxu0 0
        %1865 = vmatprep.subr.bf16.mxu0 0
        %1866 = vmatpush1.bf16.msra.mxu0 0
        %1867 = vmatprep.mubr.bf16.mxu0 0
        %1868 = vmatmul.mubr.bf16.gmra.mrb[0].mxu0 %v1166
        %v1869 = vpop.f32.mrb[0].mxu0
        %v1870 = vadd.f32 0.0, %v1869
        %v1871 = vpop.f32.mrb[0].mxu0
        %v1872 = vpop.f32.mrb[0].mxu0
        %v1873 = vadd.f32 0.0, %v1872
        %v1874 = vpop.f32.mrb[0].mxu0
        %1875 = vmatprep.mubr.bf16.mxu0 0
        %1876 = vmatmul.mubr.bf16.gmra.mrb[0].mxu0 %v1169
        %v1877 = vpop.f32.mrb[0].mxu0
        %v1878 = vadd.f32 0.0, %v1877
        %v1879 = vpop.f32.mrb[0].mxu0
        %v1880 = vpop.f32.mrb[0].mxu0
        %v1881 = vadd.f32 0.0, %v1880
        %v1882 = vpop.f32.mrb[0].mxu0
        %1883 = vmatprep.mubr.bf16.mxu0 0
        %1884 = vmatmul.mubr.bf16.gmra.mrb[0].mxu0 %v1172
        %v1885 = vpop.f32.mrb[0].mxu0
        %v1886 = vadd.f32 0.0, %v1885
        %v1887 = vpop.f32.mrb[0].mxu0
        %v1888 = vpop.f32.mrb[0].mxu0
        %v1889 = vadd.f32 0.0, %v1888
        %v1890 = vpop.f32.mrb[0].mxu0
        %1891 = vmatprep.mubr.bf16.mxu0 0
        %1892 = vmatmul.mubr.bf16.gmra.mrb[0].mxu0 %v1175
        %v1893 = vpop.f32.mrb[0].mxu0
        %v1894 = vadd.f32 0.0, %v1893
        %v1895 = vpop.f32.mrb[0].mxu0
        %v1896 = vpop.f32.mrb[0].mxu0
        %v1897 = vadd.f32 0.0, %v1896
        %v1898 = vpop.f32.mrb[0].mxu0
        %1899 = vmatprep.mubr.bf16.mxu0 0
        %1900 = vmatmul.mubr.bf16.gmra.mrb[0].mxu0 %v1178
        %v1901 = vpop.f32.mrb[0].mxu0
        %v1902 = vadd.f32 0.0, %v1901
        %v1903 = vpop.f32.mrb[0].mxu0
        %v1904 = vpop.f32.mrb[0].mxu0
        %v1905 = vadd.f32 0.0, %v1904
        %v1906 = vpop.f32.mrb[0].mxu0
        %1907 = vmatprep.mubr.bf16.mxu0 0
        %1908 = vmatmul.mubr.bf16.gmra.mrb[0].mxu0 %v1181
        %v1909 = vpop.f32.mrb[0].mxu0
        %v1910 = vadd.f32 0.0, %v1909
        %v1911 = vpop.f32.mrb[0].mxu0
        %v1912 = vpop.f32.mrb[0].mxu0
        %v1913 = vadd.f32 0.0, %v1912
        %v1914 = vpop.f32.mrb[0].mxu0
        %1915 = vmatprep.mubr.bf16.mxu0 0
        %1916 = vmatmul.mubr.bf16.gmra.mrb[0].mxu0 %v1184
        %v1917 = vpop.f32.mrb[0].mxu0
        %v1918 = vadd.f32 0.0, %v1917
        %v1919 = vpop.f32.mrb[0].mxu0
        %v1920 = vpop.f32.mrb[0].mxu0
        %v1921 = vadd.f32 0.0, %v1920
        %v1922 = vpop.f32.mrb[0].mxu0
        %1923 = vmatprep.mubr.bf16.mxu0 0
        %1924 = vmatmul.mubr.bf16.gmra.mrb[0].mxu0 %v1187
        %v1925 = vpop.f32.mrb[0].mxu0
        %v1926 = vadd.f32 0.0, %v1925
        %v1927 = vpop.f32.mrb[0].mxu0
        %v1928 = vpop.f32.mrb[0].mxu0
        %v1929 = vadd.f32 0.0, %v1928
        %v1930 = vpop.f32.mrb[0].mxu0
        %1931 = vmatprep.mubr.bf16.mxu0 0
        %1932 = vmatmul.mubr.bf16.gmra.mrb[0].mxu0 %v1190
        %v1933 = vpop.f32.mrb[0].mxu0
        %v1934 = vadd.f32 0.0, %v1933
        %v1935 = vpop.f32.mrb[0].mxu0
        %v1936 = vpop.f32.mrb[0].mxu0
        %v1937 = vadd.f32 0.0, %v1936
        %v1938 = vpop.f32.mrb[0].mxu0
        %1939 = vmatprep.mubr.bf16.mxu0 0
        %1940 = vmatmul.mubr.bf16.gmra.mrb[0].mxu0 %v1193
        %v1941 = vpop.f32.mrb[0].mxu0
        %v1942 = vadd.f32 0.0, %v1941
        %v1943 = vpop.f32.mrb[0].mxu0
        %v1944 = vpop.f32.mrb[0].mxu0
        %v1945 = vadd.f32 0.0, %v1944
        %v1946 = vpop.f32.mrb[0].mxu0
        %1947 = vmatprep.mubr.bf16.mxu0 0
        %1948 = vmatmul.mubr.bf16.gmra.mrb[0].mxu0 %v1196
        %v1949 = vpop.f32.mrb[0].mxu0
        %v1950 = vadd.f32 0.0, %v1949
        %v1951 = vpop.f32.mrb[0].mxu0
        %v1952 = vpop.f32.mrb[0].mxu0
        %v1953 = vadd.f32 0.0, %v1952
        %v1954 = vpop.f32.mrb[0].mxu0
        %1955 = vmatprep.mubr.bf16.mxu0 0
        %1956 = vmatmul.mubr.bf16.gmra.mrb[0].mxu0 %v1199
        %v1957 = vpop.f32.mrb[0].mxu0
        %v1958 = vadd.f32 0.0, %v1957
        %v1959 = vpop.f32.mrb[0].mxu0
        %v1960 = vpop.f32.mrb[0].mxu0
        %v1961 = vadd.f32 0.0, %v1960
        %v1962 = vpop.f32.mrb[0].mxu0
        %1963 = vmatprep.mubr.bf16.mxu0 0
        %1964 = vmatmul.mubr.bf16.gmra.mrb[0].mxu0 %v1202
        %v1965 = vpop.f32.mrb[0].mxu0
        %v1966 = vadd.f32 0.0, %v1965
        %v1967 = vpop.f32.mrb[0].mxu0
        %v1968 = vpop.f32.mrb[0].mxu0
        %v1969 = vadd.f32 0.0, %v1968
        %v1970 = vpop.f32.mrb[0].mxu0
        %1971 = vmatprep.mubr.bf16.mxu0 0
        %1972 = vmatmul.mubr.bf16.gmra.mrb[0].mxu0 %v1205
        %v1973 = vpop.f32.mrb[0].mxu0
        %v1974 = vadd.f32 0.0, %v1973
        %v1975 = vpop.f32.mrb[0].mxu0
        %v1976 = vpop.f32.mrb[0].mxu0
        %v1977 = vadd.f32 0.0, %v1976
        %v1978 = vpop.f32.mrb[0].mxu0
        %1979 = vmatprep.mubr.bf16.mxu0 0
        %1980 = vmatmul.mubr.bf16.gmra.mrb[0].mxu0 %v1208
        %v1981 = vpop.f32.mrb[0].mxu0
        %v1982 = vadd.f32 0.0, %v1981
        %v1983 = vpop.f32.mrb[0].mxu0
        %v1984 = vpop.f32.mrb[0].mxu0
        %v1985 = vadd.f32 0.0, %v1984
        %v1986 = vpop.f32.mrb[0].mxu0
        %1987 = vmatprep.mubr.bf16.mxu0 0
        %1988 = vmatmul.mubr.bf16.gmra.mrb[0].mxu0 %v1830
        %v1989 = vpop.f32.mrb[0].mxu0
        %v1990 = vadd.f32 0.0, %v1989
        %v1991 = vpop.f32.mrb[0].mxu0
        %v1992 = vpop.f32.mrb[0].mxu0
        %v1993 = vadd.f32 0.0, %v1992
        %v1994 = vpop.f32.mrb[0].mxu0
        %1995 = vdwg.mxu0
        %v1996 = vadd.f32 %v1787, %v1870
        %v1997 = vadd.f32 %v1788, %v1873
        %v1998 = vadd.f32 %v1789, %v1878
        %v1999 = vadd.f32 %v1790, %v1881
        %v2000 = vadd.f32 %v1791, %v1886
        %v2001 = vadd.f32 %v1792, %v1889
        %v2002 = vadd.f32 %v1793, %v1894
        %v2003 = vadd.f32 %v1794, %v1897
        %v2004 = vadd.f32 %v1795, %v1902
        %v2005 = vadd.f32 %v1796, %v1905
        %v2006 = vadd.f32 %v1797, %v1910
        %v2007 = vadd.f32 %v1798, %v1913
        %v2008 = vadd.f32 %v1799, %v1918
        %v2009 = vadd.f32 %v1800, %v1921
        %v2010 = vadd.f32 %v1801, %v1926
        %v2011 = vadd.f32 %v1802, %v1929
        %v2012 = vadd.f32 %v1803, %v1934
        %v2013 = vadd.f32 %v1804, %v1937
        %v2014 = vadd.f32 %v1805, %v1942
        %v2015 = vadd.f32 %v1806, %v1945
        %v2016 = vadd.f32 %v1807, %v1950
        %v2017 = vadd.f32 %v1808, %v1953
        %v2018 = vadd.f32 %v1809, %v1958
        %v2019 = vadd.f32 %v1810, %v1961
        %v2020 = vadd.f32 %v1811, %v1966
        %v2021 = vadd.f32 %v1812, %v1969
        %v2022 = vadd.f32 %v1813, %v1974
        %v2023 = vadd.f32 %v1814, %v1977
        %v2024 = vadd.f32 %v1815, %v1982
        %v2025 = vadd.f32 %v1816, %v1985
        %v2026 = vadd.f32 %v1817, %v1990
        %v2027 = vadd.f32 %v1818, %v1993
        %s2028 = scalar_lea.vmem %s1, 12
        %v2029 = vld [vmem:[%s2028] sm:$0x3]
        %v2031 = vsel %vm654, %v2029, 0
        %2033 = vmatprep.subr.bf16.mxu0 0
        %2034 = vmatpush1.bf16.msra.mxu0 %v2031
        %2035 = vmatprep.subr.bf16.mxu0 0
        %2036 = vmatpush1.bf16.msra.mxu0 0
        %2037 = vmatprep.subr.bf16.mxu0 0
        %2038 = vmatpush1.bf16.msra.mxu0 0
        %2039 = vmatprep.subr.bf16.mxu0 0
        %2040 = vmatpush1.bf16.msra.mxu0 0
        %2041 = vmatprep.subr.bf16.mxu0 0
        %2042 = vmatpush1.bf16.msra.mxu0 0
        %2043 = vmatprep.subr.bf16.mxu0 0
        %2044 = vmatpush1.bf16.msra.mxu0 0
        %2045 = vmatprep.subr.bf16.mxu0 0
        %2046 = vmatpush1.bf16.msra.mxu0 0
        %2047 = vmatprep.subr.bf16.mxu0 0
        %2048 = vmatpush1.bf16.msra.mxu0 0
        %2049 = vmatprep.subr.bf16.mxu0 0
        %2050 = vmatpush1.bf16.msra.mxu0 0
        %2051 = vmatprep.subr.bf16.mxu0 0
        %2052 = vmatpush1.bf16.msra.mxu0 0
        %2053 = vmatprep.subr.bf16.mxu0 0
        %2054 = vmatpush1.bf16.msra.mxu0 0
        %2055 = vmatprep.subr.bf16.mxu0 0
        %2056 = vmatpush1.bf16.msra.mxu0 0
        %2057 = vmatprep.subr.bf16.mxu0 0
        %2058 = vmatpush1.bf16.msra.mxu0 0
        %2059 = vmatprep.subr.bf16.mxu0 0
        %2060 = vmatpush1.bf16.msra.mxu0 0
        %2061 = vmatprep.subr.bf16.mxu0 0
        %2062 = vmatpush1.bf16.msra.mxu0 0
        %2063 = vmatprep.subr.bf16.mxu0 0
        %2064 = vmatpush1.bf16.msra.mxu0 0
        %2065 = vmatprep.mubr.bf16.mxu0 0
        %2066 = vmatmul.mubr.bf16.gmra.mrb[0].mxu0 %v826
        %v2067 = vpop.f32.mrb[0].mxu0
        %v2068 = vadd.f32 0.0, %v2067
        %v2069 = vpop.f32.mrb[0].mxu0
        %v2070 = vpop.f32.mrb[0].mxu0
        %v2071 = vadd.f32 0.0, %v2070
        %v2072 = vpop.f32.mrb[0].mxu0
        %2073 = vmatprep.mubr.bf16.mxu0 0
        %2074 = vmatmul.mubr.bf16.gmra.mrb[0].mxu0 %v829
        %v2075 = vpop.f32.mrb[0].mxu0
        %v2076 = vadd.f32 0.0, %v2075
        %v2077 = vpop.f32.mrb[0].mxu0
        %v2078 = vpop.f32.mrb[0].mxu0
        %v2079 = vadd.f32 0.0, %v2078
        %v2080 = vpop.f32.mrb[0].mxu0
        %2081 = vmatprep.mubr.bf16.mxu0 0
        %2082 = vmatmul.mubr.bf16.gmra.mrb[0].mxu0 %v832
        %v2083 = vpop.f32.mrb[0].mxu0
        %v2084 = vadd.f32 0.0, %v2083
        %v2085 = vpop.f32.mrb[0].mxu0
        %v2086 = vpop.f32.mrb[0].mxu0
        %v2087 = vadd.f32 0.0, %v2086
        %v2088 = vpop.f32.mrb[0].mxu0
        %2089 = vmatprep.mubr.bf16.mxu0 0
        %2090 = vmatmul.mubr.bf16.gmra.mrb[0].mxu0 %v835
        %v2091 = vpop.f32.mrb[0].mxu0
        %v2092 = vadd.f32 0.0, %v2091
        %v2093 = vpop.f32.mrb[0].mxu0
        %v2094 = vpop.f32.mrb[0].mxu0
        %v2095 = vadd.f32 0.0, %v2094
        %v2096 = vpop.f32.mrb[0].mxu0
        %2097 = vmatprep.mubr.bf16.mxu0 0
        %2098 = vmatmul.mubr.bf16.gmra.mrb[0].mxu0 %v838
        %v2099 = vpop.f32.mrb[0].mxu0
        %v2100 = vadd.f32 0.0, %v2099
        %v2101 = vpop.f32.mrb[0].mxu0
        %v2102 = vpop.f32.mrb[0].mxu0
        %v2103 = vadd.f32 0.0, %v2102
        %v2104 = vpop.f32.mrb[0].mxu0
        %2105 = vmatprep.mubr.bf16.mxu0 0
        %2106 = vmatmul.mubr.bf16.gmra.mrb[0].mxu0 %v841
        %v2107 = vpop.f32.mrb[0].mxu0
        %v2108 = vadd.f32 0.0, %v2107
        %v2109 = vpop.f32.mrb[0].mxu0
        %v2110 = vpop.f32.mrb[0].mxu0
        %v2111 = vadd.f32 0.0, %v2110
        %v2112 = vpop.f32.mrb[0].mxu0
        %2113 = vmatprep.mubr.bf16.mxu0 0
        %2114 = vmatmul.mubr.bf16.gmra.mrb[0].mxu0 %v844
        %v2115 = vpop.f32.mrb[0].mxu0
        %v2116 = vadd.f32 0.0, %v2115
        %v2117 = vpop.f32.mrb[0].mxu0
        %v2118 = vpop.f32.mrb[0].mxu0
        %v2119 = vadd.f32 0.0, %v2118
        %v2120 = vpop.f32.mrb[0].mxu0
        %2121 = vmatprep.mubr.bf16.mxu0 0
        %2122 = vmatmul.mubr.bf16.gmra.mrb[0].mxu0 %v847
        %v2123 = vpop.f32.mrb[0].mxu0
        %v2124 = vadd.f32 0.0, %v2123
        %v2125 = vpop.f32.mrb[0].mxu0
        %v2126 = vpop.f32.mrb[0].mxu0
        %v2127 = vadd.f32 0.0, %v2126
        %v2128 = vpop.f32.mrb[0].mxu0
        %2129 = vmatprep.mubr.bf16.mxu0 0
        %2130 = vmatmul.mubr.bf16.gmra.mrb[0].mxu0 %v850
        %v2131 = vpop.f32.mrb[0].mxu0
        %v2132 = vadd.f32 0.0, %v2131
        %v2133 = vpop.f32.mrb[0].mxu0
        %v2134 = vpop.f32.mrb[0].mxu0
        %v2135 = vadd.f32 0.0, %v2134
        %v2136 = vpop.f32.mrb[0].mxu0
        %2137 = vmatprep.mubr.bf16.mxu0 0
        %2138 = vmatmul.mubr.bf16.gmra.mrb[0].mxu0 %v853
        %v2139 = vpop.f32.mrb[0].mxu0
        %v2140 = vadd.f32 0.0, %v2139
        %v2141 = vpop.f32.mrb[0].mxu0
        %v2142 = vpop.f32.mrb[0].mxu0
        %v2143 = vadd.f32 0.0, %v2142
        %v2144 = vpop.f32.mrb[0].mxu0
        %2145 = vmatprep.mubr.bf16.mxu0 0
        %2146 = vmatmul.mubr.bf16.gmra.mrb[0].mxu0 %v856
        %v2147 = vpop.f32.mrb[0].mxu0
        %v2148 = vadd.f32 0.0, %v2147
        %v2149 = vpop.f32.mrb[0].mxu0
        %v2150 = vpop.f32.mrb[0].mxu0
        %v2151 = vadd.f32 0.0, %v2150
        %v2152 = vpop.f32.mrb[0].mxu0
        %2153 = vmatprep.mubr.bf16.mxu0 0
        %2154 = vmatmul.mubr.bf16.gmra.mrb[0].mxu0 %v859
        %v2155 = vpop.f32.mrb[0].mxu0
        %v2156 = vadd.f32 0.0, %v2155
        %v2157 = vpop.f32.mrb[0].mxu0
        %v2158 = vpop.f32.mrb[0].mxu0
        %v2159 = vadd.f32 0.0, %v2158
        %v2160 = vpop.f32.mrb[0].mxu0
        %2161 = vmatprep.mubr.bf16.mxu0 0
        %2162 = vmatmul.mubr.bf16.gmra.mrb[0].mxu0 %v862
        %v2163 = vpop.f32.mrb[0].mxu0
        %v2164 = vadd.f32 0.0, %v2163
        %v2165 = vpop.f32.mrb[0].mxu0
        %v2166 = vpop.f32.mrb[0].mxu0
        %v2167 = vadd.f32 0.0, %v2166
        %v2168 = vpop.f32.mrb[0].mxu0
        %2169 = vmatprep.mubr.bf16.mxu0 0
        %2170 = vmatmul.mubr.bf16.gmra.mrb[0].mxu0 %v865
        %v2171 = vpop.f32.mrb[0].mxu0
        %v2172 = vadd.f32 0.0, %v2171
        %v2173 = vpop.f32.mrb[0].mxu0
        %v2174 = vpop.f32.mrb[0].mxu0
        %v2175 = vadd.f32 0.0, %v2174
        %v2176 = vpop.f32.mrb[0].mxu0
        %2177 = vmatprep.mubr.bf16.mxu0 0
        %2178 = vmatmul.mubr.bf16.gmra.mrb[0].mxu0 %v1410
        %v2179 = vpop.f32.mrb[0].mxu0
        %v2180 = vadd.f32 0.0, %v2179
        %v2181 = vpop.f32.mrb[0].mxu0
        %v2182 = vpop.f32.mrb[0].mxu0
        %v2183 = vadd.f32 0.0, %v2182
        %v2184 = vpop.f32.mrb[0].mxu0
        %2185 = vmatprep.mubr.bf16.mxu0 0
        %2186 = vmatmul.mubr.bf16.gmra.mrb[0].mxu0 %v820
        %v2187 = vpop.f32.mrb[0].mxu0
        %v2188 = vadd.f32 0.0, %v2187
        %v2189 = vpop.f32.mrb[0].mxu0
        %v2190 = vpop.f32.mrb[0].mxu0
        %v2191 = vadd.f32 0.0, %v2190
        %v2192 = vpop.f32.mrb[0].mxu0
        %2193 = vdwg.mxu0
        %v2194 = vadd.f32 %v1996, %v2068
        %v2195 = vadd.f32 %v1997, %v2071
        %v2196 = vadd.f32 %v1998, %v2076
        %v2197 = vadd.f32 %v1999, %v2079
        %v2198 = vadd.f32 %v2000, %v2084
        %v2199 = vadd.f32 %v2001, %v2087
        %v2200 = vadd.f32 %v2002, %v2092
        %v2201 = vadd.f32 %v2003, %v2095
        %v2202 = vadd.f32 %v2004, %v2100
        %v2203 = vadd.f32 %v2005, %v2103
        %v2204 = vadd.f32 %v2006, %v2108
        %v2205 = vadd.f32 %v2007, %v2111
        %v2206 = vadd.f32 %v2008, %v2116
        %v2207 = vadd.f32 %v2009, %v2119
        %v2208 = vadd.f32 %v2010, %v2124
        %v2209 = vadd.f32 %v2011, %v2127
        %v2210 = vadd.f32 %v2012, %v2132
        %v2211 = vadd.f32 %v2013, %v2135
        %v2212 = vadd.f32 %v2014, %v2140
        %v2213 = vadd.f32 %v2015, %v2143
        %v2214 = vadd.f32 %v2016, %v2148
        %v2215 = vadd.f32 %v2017, %v2151
        %v2216 = vadd.f32 %v2018, %v2156
        %v2217 = vadd.f32 %v2019, %v2159
        %v2218 = vadd.f32 %v2020, %v2164
        %v2219 = vadd.f32 %v2021, %v2167
        %v2220 = vadd.f32 %v2022, %v2172
        %v2221 = vadd.f32 %v2023, %v2175
        %v2222 = vadd.f32 %v2024, %v2180
        %v2223 = vadd.f32 %v2025, %v2183
        %v2224 = vadd.f32 %v2026, %v2188
        %v2225 = vadd.f32 %v2027, %v2191
        %s2226 = scalar_lea.vmem %s1, 14
        %v2227 = vld [vmem:[%s2226] sm:$0x3]
        %v2229 = vsel %vm654, %v2227, 0
        %2231 = vmatprep.subr.bf16.mxu0 0
        %2232 = vmatpush1.bf16.msra.mxu0 %v2229
        %2233 = vmatprep.subr.bf16.mxu0 0
        %2234 = vmatpush1.bf16.msra.mxu0 0
        %2235 = vmatprep.subr.bf16.mxu0 0
        %2236 = vmatpush1.bf16.msra.mxu0 0
        %2237 = vmatprep.subr.bf16.mxu0 0
        %2238 = vmatpush1.bf16.msra.mxu0 0
        %2239 = vmatprep.subr.bf16.mxu0 0
        %2240 = vmatpush1.bf16.msra.mxu0 0
        %2241 = vmatprep.subr.bf16.mxu0 0
        %2242 = vmatpush1.bf16.msra.mxu0 0
        %2243 = vmatprep.subr.bf16.mxu0 0
        %2244 = vmatpush1.bf16.msra.mxu0 0
        %2245 = vmatprep.subr.bf16.mxu0 0
        %2246 = vmatpush1.bf16.msra.mxu0 0
        %2247 = vmatprep.subr.bf16.mxu0 0
        %2248 = vmatpush1.bf16.msra.mxu0 0
        %2249 = vmatprep.subr.bf16.mxu0 0
        %2250 = vmatpush1.bf16.msra.mxu0 0
        %2251 = vmatprep.subr.bf16.mxu0 0
        %2252 = vmatpush1.bf16.msra.mxu0 0
        %2253 = vmatprep.subr.bf16.mxu0 0
        %2254 = vmatpush1.bf16.msra.mxu0 0
        %2255 = vmatprep.subr.bf16.mxu0 0
        %2256 = vmatpush1.bf16.msra.mxu0 0
        %2257 = vmatprep.subr.bf16.mxu0 0
        %2258 = vmatpush1.bf16.msra.mxu0 0
        %2259 = vmatprep.subr.bf16.mxu0 0
        %2260 = vmatpush1.bf16.msra.mxu0 0
        %2261 = vmatprep.subr.bf16.mxu0 0
        %2262 = vmatpush1.bf16.msra.mxu0 0
        %2263 = vmatprep.mubr.bf16.mxu0 0
        %2264 = vmatmul.mubr.bf16.gmra.mrb[0].mxu0 %v613
        %v2265 = vpop.f32.mrb[0].mxu0
        %v2266 = vadd.f32 0.0, %v2265
        %v2267 = vpop.f32.mrb[0].mxu0
        %v2268 = vpop.f32.mrb[0].mxu0
        %v2269 = vadd.f32 0.0, %v2268
        %v2270 = vpop.f32.mrb[0].mxu0
        %2271 = vmatprep.mubr.bf16.mxu0 0
        %2272 = vmatmul.mubr.bf16.gmra.mrb[0].mxu0 %v616
        %v2273 = vpop.f32.mrb[0].mxu0
        %v2274 = vadd.f32 0.0, %v2273
        %v2275 = vpop.f32.mrb[0].mxu0
        %v2276 = vpop.f32.mrb[0].mxu0
        %v2277 = vadd.f32 0.0, %v2276
        %v2278 = vpop.f32.mrb[0].mxu0
        %2279 = vmatprep.mubr.bf16.mxu0 0
        %2280 = vmatmul.mubr.bf16.gmra.mrb[0].mxu0 %v619
        %v2281 = vpop.f32.mrb[0].mxu0
        %v2282 = vadd.f32 0.0, %v2281
        %v2283 = vpop.f32.mrb[0].mxu0
        %v2284 = vpop.f32.mrb[0].mxu0
        %v2285 = vadd.f32 0.0, %v2284
        %v2286 = vpop.f32.mrb[0].mxu0
        %2287 = vmatprep.mubr.bf16.mxu0 0
        %2288 = vmatmul.mubr.bf16.gmra.mrb[0].mxu0 %v622
        %v2289 = vpop.f32.mrb[0].mxu0
        %v2290 = vadd.f32 0.0, %v2289
        %v2291 = vpop.f32.mrb[0].mxu0
        %v2292 = vpop.f32.mrb[0].mxu0
        %v2293 = vadd.f32 0.0, %v2292
        %v2294 = vpop.f32.mrb[0].mxu0
        %2295 = vmatprep.mubr.bf16.mxu0 0
        %2296 = vmatmul.mubr.bf16.gmra.mrb[0].mxu0 %v625
        %v2297 = vpop.f32.mrb[0].mxu0
        %v2298 = vadd.f32 0.0, %v2297
        %v2299 = vpop.f32.mrb[0].mxu0
        %v2300 = vpop.f32.mrb[0].mxu0
        %v2301 = vadd.f32 0.0, %v2300
        %v2302 = vpop.f32.mrb[0].mxu0
        %2303 = vmatprep.mubr.bf16.mxu0 0
        %2304 = vmatmul.mubr.bf16.gmra.mrb[0].mxu0 %v628
        %v2305 = vpop.f32.mrb[0].mxu0
        %v2306 = vadd.f32 0.0, %v2305
        %v2307 = vpop.f32.mrb[0].mxu0
        %v2308 = vpop.f32.mrb[0].mxu0
        %v2309 = vadd.f32 0.0, %v2308
        %v2310 = vpop.f32.mrb[0].mxu0
        %2311 = vmatprep.mubr.bf16.mxu0 0
        %2312 = vmatmul.mubr.bf16.gmra.mrb[0].mxu0 %v631
        %v2313 = vpop.f32.mrb[0].mxu0
        %v2314 = vadd.f32 0.0, %v2313
        %v2315 = vpop.f32.mrb[0].mxu0
        %v2316 = vpop.f32.mrb[0].mxu0
        %v2317 = vadd.f32 0.0, %v2316
        %v2318 = vpop.f32.mrb[0].mxu0
        %2319 = vmatprep.mubr.bf16.mxu0 0
        %2320 = vmatmul.mubr.bf16.gmra.mrb[0].mxu0 %v634
        %v2321 = vpop.f32.mrb[0].mxu0
        %v2322 = vadd.f32 0.0, %v2321
        %v2323 = vpop.f32.mrb[0].mxu0
        %v2324 = vpop.f32.mrb[0].mxu0
        %v2325 = vadd.f32 0.0, %v2324
        %v2326 = vpop.f32.mrb[0].mxu0
        %2327 = vmatprep.mubr.bf16.mxu0 0
        %2328 = vmatmul.mubr.bf16.gmra.mrb[0].mxu0 %v637
        %v2329 = vpop.f32.mrb[0].mxu0
        %v2330 = vadd.f32 0.0, %v2329
        %v2331 = vpop.f32.mrb[0].mxu0
        %v2332 = vpop.f32.mrb[0].mxu0
        %v2333 = vadd.f32 0.0, %v2332
        %v2334 = vpop.f32.mrb[0].mxu0
        %2335 = vmatprep.mubr.bf16.mxu0 0
        %2336 = vmatmul.mubr.bf16.gmra.mrb[0].mxu0 %v640
        %v2337 = vpop.f32.mrb[0].mxu0
        %v2338 = vadd.f32 0.0, %v2337
        %v2339 = vpop.f32.mrb[0].mxu0
        %v2340 = vpop.f32.mrb[0].mxu0
        %v2341 = vadd.f32 0.0, %v2340
        %v2342 = vpop.f32.mrb[0].mxu0
        %2343 = vmatprep.mubr.bf16.mxu0 0
        %2344 = vmatmul.mubr.bf16.gmra.mrb[0].mxu0 %v643
        %v2345 = vpop.f32.mrb[0].mxu0
        %v2346 = vadd.f32 0.0, %v2345
        %v2347 = vpop.f32.mrb[0].mxu0
        %v2348 = vpop.f32.mrb[0].mxu0
        %v2349 = vadd.f32 0.0, %v2348
        %v2350 = vpop.f32.mrb[0].mxu0
        %2351 = vmatprep.mubr.bf16.mxu0 0
        %2352 = vmatmul.mubr.bf16.gmra.mrb[0].mxu0 %v646
        %v2353 = vpop.f32.mrb[0].mxu0
        %v2354 = vadd.f32 0.0, %v2353
        %v2355 = vpop.f32.mrb[0].mxu0
        %v2356 = vpop.f32.mrb[0].mxu0
        %v2357 = vadd.f32 0.0, %v2356
        %v2358 = vpop.f32.mrb[0].mxu0
        %2359 = vmatprep.mubr.bf16.mxu0 0
        %2360 = vmatmul.mubr.bf16.gmra.mrb[0].mxu0 %v649
        %v2361 = vpop.f32.mrb[0].mxu0
        %v2362 = vadd.f32 0.0, %v2361
        %v2363 = vpop.f32.mrb[0].mxu0
        %v2364 = vpop.f32.mrb[0].mxu0
        %v2365 = vadd.f32 0.0, %v2364
        %v2366 = vpop.f32.mrb[0].mxu0
        %2367 = vmatprep.mubr.bf16.mxu0 0
        %2368 = vmatmul.mubr.bf16.gmra.mrb[0].mxu0 %v652
        %v2369 = vpop.f32.mrb[0].mxu0
        %v2370 = vadd.f32 0.0, %v2369
        %v2371 = vpop.f32.mrb[0].mxu0
        %v2372 = vpop.f32.mrb[0].mxu0
        %v2373 = vadd.f32 0.0, %v2372
        %v2374 = vpop.f32.mrb[0].mxu0
        %2375 = vmatprep.mubr.bf16.mxu0 0
        %2376 = vmatmul.mubr.bf16.gmra.mrb[0].mxu0 %v1621
        %v2377 = vpop.f32.mrb[0].mxu0
        %v2378 = vadd.f32 0.0, %v2377
        %v2379 = vpop.f32.mrb[0].mxu0
        %v2380 = vpop.f32.mrb[0].mxu0
        %v2381 = vadd.f32 0.0, %v2380
        %v2382 = vpop.f32.mrb[0].mxu0
        %2383 = vmatprep.mubr.bf16.mxu0 0
        %2384 = vmatmul.mubr.bf16.gmra.mrb[0].mxu0 %v607
        %v2385 = vpop.f32.mrb[0].mxu0
        %v2386 = vadd.f32 0.0, %v2385
        %v2387 = vpop.f32.mrb[0].mxu0
        %v2388 = vpop.f32.mrb[0].mxu0
        %v2389 = vadd.f32 0.0, %v2388
        %v2390 = vpop.f32.mrb[0].mxu0
        %2391 = vdwg.mxu0
        %v2392 = vadd.f32 %v2194, %v2266
        %v2393 = vadd.f32 %v2195, %v2269
        %v2394 = vadd.f32 %v2196, %v2274
        %v2395 = vadd.f32 %v2197, %v2277
        %v2396 = vadd.f32 %v2198, %v2282
        %v2397 = vadd.f32 %v2199, %v2285
        %v2398 = vadd.f32 %v2200, %v2290
        %v2399 = vadd.f32 %v2201, %v2293
        %v2400 = vadd.f32 %v2202, %v2298
        %v2401 = vadd.f32 %v2203, %v2301
        %v2402 = vadd.f32 %v2204, %v2306
        %v2403 = vadd.f32 %v2205, %v2309
        %v2404 = vadd.f32 %v2206, %v2314
        %v2405 = vadd.f32 %v2207, %v2317
        %v2406 = vadd.f32 %v2208, %v2322
        %v2407 = vadd.f32 %v2209, %v2325
        %v2408 = vadd.f32 %v2210, %v2330
        %v2409 = vadd.f32 %v2211, %v2333
        %v2410 = vadd.f32 %v2212, %v2338
        %v2411 = vadd.f32 %v2213, %v2341
        %v2412 = vadd.f32 %v2214, %v2346
        %v2413 = vadd.f32 %v2215, %v2349
        %v2414 = vadd.f32 %v2216, %v2354
        %v2415 = vadd.f32 %v2217, %v2357
        %v2416 = vadd.f32 %v2218, %v2362
        %v2417 = vadd.f32 %v2219, %v2365
        %v2418 = vadd.f32 %v2220, %v2370
        %v2419 = vadd.f32 %v2221, %v2373
        %v2420 = vadd.f32 %v2222, %v2378
        %v2421 = vadd.f32 %v2223, %v2381
        %v2422 = vadd.f32 %v2224, %v2386
        %v2423 = vadd.f32 %v2225, %v2389
        %s2424 = scalar_lea.vmem %s1, 16
        %v2425 = vld [vmem:[%s2424] sm:$0x3]
        %v2427 = vsel %vm654, %v2425, 0
        %2429 = vmatprep.subr.bf16.mxu0 0
        %2430 = vmatpush1.bf16.msra.mxu0 %v2427
        %2431 = vmatprep.subr.bf16.mxu0 0
        %2432 = vmatpush1.bf16.msra.mxu0 0
        %2433 = vmatprep.subr.bf16.mxu0 0
        %2434 = vmatpush1.bf16.msra.mxu0 0
        %2435 = vmatprep.subr.bf16.mxu0 0
        %2436 = vmatpush1.bf16.msra.mxu0 0
        %2437 = vmatprep.subr.bf16.mxu0 0
        %2438 = vmatpush1.bf16.msra.mxu0 0
        %2439 = vmatprep.subr.bf16.mxu0 0
        %2440 = vmatpush1.bf16.msra.mxu0 0
        %2441 = vmatprep.subr.bf16.mxu0 0
        %2442 = vmatpush1.bf16.msra.mxu0 0
        %2443 = vmatprep.subr.bf16.mxu0 0
        %2444 = vmatpush1.bf16.msra.mxu0 0
        %2445 = vmatprep.subr.bf16.mxu0 0
        %2446 = vmatpush1.bf16.msra.mxu0 0
        %2447 = vmatprep.subr.bf16.mxu0 0
        %2448 = vmatpush1.bf16.msra.mxu0 0
        %2449 = vmatprep.subr.bf16.mxu0 0
        %2450 = vmatpush1.bf16.msra.mxu0 0
        %2451 = vmatprep.subr.bf16.mxu0 0
        %2452 = vmatpush1.bf16.msra.mxu0 0
        %2453 = vmatprep.subr.bf16.mxu0 0
        %2454 = vmatpush1.bf16.msra.mxu0 0
        %2455 = vmatprep.subr.bf16.mxu0 0
        %2456 = vmatpush1.bf16.msra.mxu0 0
        %2457 = vmatprep.subr.bf16.mxu0 0
        %2458 = vmatpush1.bf16.msra.mxu0 0
        %2459 = vmatprep.subr.bf16.mxu0 0
        %2460 = vmatpush1.bf16.msra.mxu0 0
        %2461 = vmatprep.mubr.bf16.mxu0 0
        %2462 = vmatmul.mubr.bf16.gmra.mrb[0].mxu0 %v1169
        %v2463 = vpop.f32.mrb[0].mxu0
        %v2464 = vadd.f32 0.0, %v2463
        %v2465 = vpop.f32.mrb[0].mxu0
        %v2466 = vpop.f32.mrb[0].mxu0
        %v2467 = vadd.f32 0.0, %v2466
        %v2468 = vpop.f32.mrb[0].mxu0
        %2469 = vmatprep.mubr.bf16.mxu0 0
        %2470 = vmatmul.mubr.bf16.gmra.mrb[0].mxu0 %v1172
        %v2471 = vpop.f32.mrb[0].mxu0
        %v2472 = vadd.f32 0.0, %v2471
        %v2473 = vpop.f32.mrb[0].mxu0
        %v2474 = vpop.f32.mrb[0].mxu0
        %v2475 = vadd.f32 0.0, %v2474
        %v2476 = vpop.f32.mrb[0].mxu0
        %2477 = vmatprep.mubr.bf16.mxu0 0
        %2478 = vmatmul.mubr.bf16.gmra.mrb[0].mxu0 %v1175
        %v2479 = vpop.f32.mrb[0].mxu0
        %v2480 = vadd.f32 0.0, %v2479
        %v2481 = vpop.f32.mrb[0].mxu0
        %v2482 = vpop.f32.mrb[0].mxu0
        %v2483 = vadd.f32 0.0, %v2482
        %v2484 = vpop.f32.mrb[0].mxu0
        %2485 = vmatprep.mubr.bf16.mxu0 0
        %2486 = vmatmul.mubr.bf16.gmra.mrb[0].mxu0 %v1178
        %v2487 = vpop.f32.mrb[0].mxu0
        %v2488 = vadd.f32 0.0, %v2487
        %v2489 = vpop.f32.mrb[0].mxu0
        %v2490 = vpop.f32.mrb[0].mxu0
        %v2491 = vadd.f32 0.0, %v2490
        %v2492 = vpop.f32.mrb[0].mxu0
        %2493 = vmatprep.mubr.bf16.mxu0 0
        %2494 = vmatmul.mubr.bf16.gmra.mrb[0].mxu0 %v1181
        %v2495 = vpop.f32.mrb[0].mxu0
        %v2496 = vadd.f32 0.0, %v2495
        %v2497 = vpop.f32.mrb[0].mxu0
        %v2498 = vpop.f32.mrb[0].mxu0
        %v2499 = vadd.f32 0.0, %v2498
        %v2500 = vpop.f32.mrb[0].mxu0
        %2501 = vmatprep.mubr.bf16.mxu0 0
        %2502 = vmatmul.mubr.bf16.gmra.mrb[0].mxu0 %v1184
        %v2503 = vpop.f32.mrb[0].mxu0
        %v2504 = vadd.f32 0.0, %v2503
        %v2505 = vpop.f32.mrb[0].mxu0
        %v2506 = vpop.f32.mrb[0].mxu0
        %v2507 = vadd.f32 0.0, %v2506
        %v2508 = vpop.f32.mrb[0].mxu0
        %2509 = vmatprep.mubr.bf16.mxu0 0
        %2510 = vmatmul.mubr.bf16.gmra.mrb[0].mxu0 %v1187
        %v2511 = vpop.f32.mrb[0].mxu0
        %v2512 = vadd.f32 0.0, %v2511
        %v2513 = vpop.f32.mrb[0].mxu0
        %v2514 = vpop.f32.mrb[0].mxu0
        %v2515 = vadd.f32 0.0, %v2514
        %v2516 = vpop.f32.mrb[0].mxu0
        %2517 = vmatprep.mubr.bf16.mxu0 0
        %2518 = vmatmul.mubr.bf16.gmra.mrb[0].mxu0 %v1190
        %v2519 = vpop.f32.mrb[0].mxu0
        %v2520 = vadd.f32 0.0, %v2519
        %v2521 = vpop.f32.mrb[0].mxu0
        %v2522 = vpop.f32.mrb[0].mxu0
        %v2523 = vadd.f32 0.0, %v2522
        %v2524 = vpop.f32.mrb[0].mxu0
        %2525 = vmatprep.mubr.bf16.mxu0 0
        %2526 = vmatmul.mubr.bf16.gmra.mrb[0].mxu0 %v1193
        %v2527 = vpop.f32.mrb[0].mxu0
        %v2528 = vadd.f32 0.0, %v2527
        %v2529 = vpop.f32.mrb[0].mxu0
        %v2530 = vpop.f32.mrb[0].mxu0
        %v2531 = vadd.f32 0.0, %v2530
        %v2532 = vpop.f32.mrb[0].mxu0
        %2533 = vmatprep.mubr.bf16.mxu0 0
        %2534 = vmatmul.mubr.bf16.gmra.mrb[0].mxu0 %v1196
        %v2535 = vpop.f32.mrb[0].mxu0
        %v2536 = vadd.f32 0.0, %v2535
        %v2537 = vpop.f32.mrb[0].mxu0
        %v2538 = vpop.f32.mrb[0].mxu0
        %v2539 = vadd.f32 0.0, %v2538
        %v2540 = vpop.f32.mrb[0].mxu0
        %2541 = vmatprep.mubr.bf16.mxu0 0
        %2542 = vmatmul.mubr.bf16.gmra.mrb[0].mxu0 %v1199
        %v2543 = vpop.f32.mrb[0].mxu0
        %v2544 = vadd.f32 0.0, %v2543
        %v2545 = vpop.f32.mrb[0].mxu0
        %v2546 = vpop.f32.mrb[0].mxu0
        %v2547 = vadd.f32 0.0, %v2546
        %v2548 = vpop.f32.mrb[0].mxu0
        %2549 = vmatprep.mubr.bf16.mxu0 0
        %2550 = vmatmul.mubr.bf16.gmra.mrb[0].mxu0 %v1202
        %v2551 = vpop.f32.mrb[0].mxu0
        %v2552 = vadd.f32 0.0, %v2551
        %v2553 = vpop.f32.mrb[0].mxu0
        %v2554 = vpop.f32.mrb[0].mxu0
        %v2555 = vadd.f32 0.0, %v2554
        %v2556 = vpop.f32.mrb[0].mxu0
        %2557 = vmatprep.mubr.bf16.mxu0 0
        %2558 = vmatmul.mubr.bf16.gmra.mrb[0].mxu0 %v1205
        %v2559 = vpop.f32.mrb[0].mxu0
        %v2560 = vadd.f32 0.0, %v2559
        %v2561 = vpop.f32.mrb[0].mxu0
        %v2562 = vpop.f32.mrb[0].mxu0
        %v2563 = vadd.f32 0.0, %v2562
        %v2564 = vpop.f32.mrb[0].mxu0
        %2565 = vmatprep.mubr.bf16.mxu0 0
        %2566 = vmatmul.mubr.bf16.gmra.mrb[0].mxu0 %v1208
        %v2567 = vpop.f32.mrb[0].mxu0
        %v2568 = vadd.f32 0.0, %v2567
        %v2569 = vpop.f32.mrb[0].mxu0
        %v2570 = vpop.f32.mrb[0].mxu0
        %v2571 = vadd.f32 0.0, %v2570
        %v2572 = vpop.f32.mrb[0].mxu0
        %2573 = vmatprep.mubr.bf16.mxu0 0
        %2574 = vmatmul.mubr.bf16.gmra.mrb[0].mxu0 %v1830
        %v2575 = vpop.f32.mrb[0].mxu0
        %v2576 = vadd.f32 0.0, %v2575
        %v2577 = vpop.f32.mrb[0].mxu0
        %v2578 = vpop.f32.mrb[0].mxu0
        %v2579 = vadd.f32 0.0, %v2578
        %v2580 = vpop.f32.mrb[0].mxu0
        %2581 = vmatprep.mubr.bf16.mxu0 0
        %2582 = vmatmul.mubr.bf16.gmra.mrb[0].mxu0 %v1163
        %v2583 = vpop.f32.mrb[0].mxu0
        %v2584 = vadd.f32 0.0, %v2583
        %v2585 = vpop.f32.mrb[0].mxu0
        %v2586 = vpop.f32.mrb[0].mxu0
        %v2587 = vadd.f32 0.0, %v2586
        %v2588 = vpop.f32.mrb[0].mxu0
        %2589 = vdwg.mxu0
        %v2590 = vadd.f32 %v2392, %v2464
        %v2591 = vadd.f32 %v2393, %v2467
        %v2592 = vadd.f32 %v2394, %v2472
        %v2593 = vadd.f32 %v2395, %v2475
        %v2594 = vadd.f32 %v2396, %v2480
        %v2595 = vadd.f32 %v2397, %v2483
        %v2596 = vadd.f32 %v2398, %v2488
        %v2597 = vadd.f32 %v2399, %v2491
        %v2598 = vadd.f32 %v2400, %v2496
        %v2599 = vadd.f32 %v2401, %v2499
        %v2600 = vadd.f32 %v2402, %v2504
        %v2601 = vadd.f32 %v2403, %v2507
        %v2602 = vadd.f32 %v2404, %v2512
        %v2603 = vadd.f32 %v2405, %v2515
        %v2604 = vadd.f32 %v2406, %v2520
        %v2605 = vadd.f32 %v2407, %v2523
        %v2606 = vadd.f32 %v2408, %v2528
        %v2607 = vadd.f32 %v2409, %v2531
        %v2608 = vadd.f32 %v2410, %v2536
        %v2609 = vadd.f32 %v2411, %v2539
        %v2610 = vadd.f32 %v2412, %v2544
        %v2611 = vadd.f32 %v2413, %v2547
        %v2612 = vadd.f32 %v2414, %v2552
        %v2613 = vadd.f32 %v2415, %v2555
        %v2614 = vadd.f32 %v2416, %v2560
        %v2615 = vadd.f32 %v2417, %v2563
        %v2616 = vadd.f32 %v2418, %v2568
        %v2617 = vadd.f32 %v2419, %v2571
        %v2618 = vadd.f32 %v2420, %v2576
        %v2619 = vadd.f32 %v2421, %v2579
        %v2620 = vadd.f32 %v2422, %v2584
        %v2621 = vadd.f32 %v2423, %v2587
        %v2623 = vlaneseq
        %v2624 = vshrl.u32 %v2623, 7
        %v2625 = vsub.s32 0, %v2624
        %v2626 = vrot.slane %v256, %v2625
        %v2628 = vadd.f32 %v2590, %v2626
        %v2629 = vadd.f32 %v2591, %v2626
        %v2630 = vadd.f32 %v2592, %v2626
        %v2631 = vadd.f32 %v2593, %v2626
        %v2632 = vadd.f32 %v2594, %v2626
        %v2633 = vadd.f32 %v2595, %v2626
        %v2634 = vadd.f32 %v2596, %v2626
        %v2635 = vadd.f32 %v2597, %v2626
        %v2636 = vadd.f32 %v2598, %v2626
        %v2637 = vadd.f32 %v2599, %v2626
        %v2638 = vadd.f32 %v2600, %v2626
        %v2639 = vadd.f32 %v2601, %v2626
        %v2640 = vadd.f32 %v2602, %v2626
        %v2641 = vadd.f32 %v2603, %v2626
        %v2642 = vadd.f32 %v2604, %v2626
        %v2643 = vadd.f32 %v2605, %v2626
        %v2644 = vadd.f32 %v2606, %v2626
        %v2645 = vadd.f32 %v2607, %v2626
        %v2646 = vadd.f32 %v2608, %v2626
        %v2647 = vadd.f32 %v2609, %v2626
        %v2648 = vadd.f32 %v2610, %v2626
        %v2649 = vadd.f32 %v2611, %v2626
        %v2650 = vadd.f32 %v2612, %v2626
        %v2651 = vadd.f32 %v2613, %v2626
        %v2652 = vadd.f32 %v2614, %v2626
        %v2653 = vadd.f32 %v2615, %v2626
        %v2654 = vadd.f32 %v2616, %v2626
        %v2655 = vadd.f32 %v2617, %v2626
        %v2656 = vadd.f32 %v2618, %v2626
        %v2657 = vadd.f32 %v2619, %v2626
        %v2658 = vadd.f32 %v2620, %v2626
        %v2659 = vadd.f32 %v2621, %v2626
        %v2660 = vmax.f32 %v2628, 0.0
        %v2661 = vmax.f32 %v2629, 0.0
        %v2662 = vmax.f32 %v2630, 0.0
        %v2663 = vmax.f32 %v2631, 0.0
        %v2664 = vmax.f32 %v2632, 0.0
        %v2665 = vmax.f32 %v2633, 0.0
        %v2666 = vmax.f32 %v2634, 0.0
        %v2667 = vmax.f32 %v2635, 0.0
        %v2668 = vmax.f32 %v2636, 0.0
        %v2669 = vmax.f32 %v2637, 0.0
        %v2670 = vmax.f32 %v2638, 0.0
        %v2671 = vmax.f32 %v2639, 0.0
        %v2672 = vmax.f32 %v2640, 0.0
        %v2673 = vmax.f32 %v2641, 0.0
        %v2674 = vmax.f32 %v2642, 0.0
        %v2675 = vmax.f32 %v2643, 0.0
        %v2676 = vmax.f32 %v2644, 0.0
        %v2677 = vmax.f32 %v2645, 0.0
        %v2678 = vmax.f32 %v2646, 0.0
        %v2679 = vmax.f32 %v2647, 0.0
        %v2680 = vmax.f32 %v2648, 0.0
        %v2681 = vmax.f32 %v2649, 0.0
        %v2682 = vmax.f32 %v2650, 0.0
        %v2683 = vmax.f32 %v2651, 0.0
        %v2684 = vmax.f32 %v2652, 0.0
        %v2685 = vmax.f32 %v2653, 0.0
        %v2686 = vmax.f32 %v2654, 0.0
        %v2687 = vmax.f32 %v2655, 0.0
        %v2688 = vmax.f32 %v2656, 0.0
        %v2689 = vmax.f32 %v2657, 0.0
        %v2690 = vmax.f32 %v2658, 0.0
        %v2691 = vmax.f32 %v2659, 0.0
        %v2724 = vcombine.high %v2660, %v2660
        %v2726 = vunpack.c.l.s4 1983009808
        %v2727 = vunpack.c.0.s8 %v2726
        %v2728 = vlaneseq
        %v2729 = vshrl.u32 %v2728, 7
        %v2730 = vsub.s32 %v2727, %v2729
        %v2731 = vrot.slane %v2660, %v2730
        %v2733 = vunpack.c.l.s4 1983009808
        %v2734 = vunpack.c.0.s8 %v2733
        %v2735 = vlaneseq
        %v2736 = vshrl.u32 %v2735, 7
        %v2737 = vsub.s32 %v2734, %v2736
        %v2738 = vrot.slane %v2724, %v2737
        %v2739 = vcombine.high %v2731, %v2731
        %v2740 = vcombine.high %v2738, %v2738
        %v2741 = vcombine.high %v2661, %v2661
        %v2743 = vunpack.c.l.s4 1983009808
        %v2744 = vunpack.c.0.s8 %v2743
        %v2745 = vlaneseq
        %v2746 = vshrl.u32 %v2745, 7
        %v2747 = vsub.s32 %v2744, %v2746
        %v2748 = vrot.slane %v2661, %v2747
        %v2750 = vunpack.c.l.s4 1983009808
        %v2751 = vunpack.c.0.s8 %v2750
        %v2752 = vlaneseq
        %v2753 = vshrl.u32 %v2752, 7
        %v2754 = vsub.s32 %v2751, %v2753
        %v2755 = vrot.slane %v2741, %v2754
        %v2756 = vcombine.high %v2748, %v2748
        %v2757 = vcombine.high %v2755, %v2755
        %v2758 = vcombine.high %v2662, %v2662
        %v2760 = vunpack.c.l.s4 1983009808
        %v2761 = vunpack.c.0.s8 %v2760
        %v2762 = vlaneseq
        %v2763 = vshrl.u32 %v2762, 7
        %v2764 = vsub.s32 %v2761, %v2763
        %v2765 = vrot.slane %v2662, %v2764
        %v2767 = vunpack.c.l.s4 1983009808
        %v2768 = vunpack.c.0.s8 %v2767
        %v2769 = vlaneseq
        %v2770 = vshrl.u32 %v2769, 7
        %v2771 = vsub.s32 %v2768, %v2770
        %v2772 = vrot.slane %v2758, %v2771
        %v2773 = vcombine.high %v2765, %v2765
        %v2774 = vcombine.high %v2772, %v2772
        %v2775 = vcombine.high %v2663, %v2663
        %v2777 = vunpack.c.l.s4 1983009808
        %v2778 = vunpack.c.0.s8 %v2777
        %v2779 = vlaneseq
        %v2780 = vshrl.u32 %v2779, 7
        %v2781 = vsub.s32 %v2778, %v2780
        %v2782 = vrot.slane %v2663, %v2781
        %v2784 = vunpack.c.l.s4 1983009808
        %v2785 = vunpack.c.0.s8 %v2784
        %v2786 = vlaneseq
        %v2787 = vshrl.u32 %v2786, 7
        %v2788 = vsub.s32 %v2785, %v2787
        %v2789 = vrot.slane %v2775, %v2788
        %v2790 = vcombine.high %v2782, %v2782
        %v2791 = vcombine.high %v2789, %v2789
        %v2792 = vcombine.high %v2664, %v2664
        %v2794 = vunpack.c.l.s4 1983009808
        %v2795 = vunpack.c.0.s8 %v2794
        %v2796 = vlaneseq
        %v2797 = vshrl.u32 %v2796, 7
        %v2798 = vsub.s32 %v2795, %v2797
        %v2799 = vrot.slane %v2664, %v2798
        %v2801 = vunpack.c.l.s4 1983009808
        %v2802 = vunpack.c.0.s8 %v2801
        %v2803 = vlaneseq
        %v2804 = vshrl.u32 %v2803, 7
        %v2805 = vsub.s32 %v2802, %v2804
        %v2806 = vrot.slane %v2792, %v2805
        %v2807 = vcombine.high %v2799, %v2799
        %v2808 = vcombine.high %v2806, %v2806
        %v2809 = vcombine.high %v2665, %v2665
        %v2811 = vunpack.c.l.s4 1983009808
        %v2812 = vunpack.c.0.s8 %v2811
        %v2813 = vlaneseq
        %v2814 = vshrl.u32 %v2813, 7
        %v2815 = vsub.s32 %v2812, %v2814
        %v2816 = vrot.slane %v2665, %v2815
        %v2818 = vunpack.c.l.s4 1983009808
        %v2819 = vunpack.c.0.s8 %v2818
        %v2820 = vlaneseq
        %v2821 = vshrl.u32 %v2820, 7
        %v2822 = vsub.s32 %v2819, %v2821
        %v2823 = vrot.slane %v2809, %v2822
        %v2824 = vcombine.high %v2816, %v2816
        %v2825 = vcombine.high %v2823, %v2823
        %v2826 = vcombine.high %v2666, %v2666
        %v2828 = vunpack.c.l.s4 1983009808
        %v2829 = vunpack.c.0.s8 %v2828
        %v2830 = vlaneseq
        %v2831 = vshrl.u32 %v2830, 7
        %v2832 = vsub.s32 %v2829, %v2831
        %v2833 = vrot.slane %v2666, %v2832
        %v2835 = vunpack.c.l.s4 1983009808
        %v2836 = vunpack.c.0.s8 %v2835
        %v2837 = vlaneseq
        %v2838 = vshrl.u32 %v2837, 7
        %v2839 = vsub.s32 %v2836, %v2838
        %v2840 = vrot.slane %v2826, %v2839
        %v2841 = vcombine.high %v2833, %v2833
        %v2842 = vcombine.high %v2840, %v2840
        %v2843 = vcombine.high %v2667, %v2667
        %v2845 = vunpack.c.l.s4 1983009808
        %v2846 = vunpack.c.0.s8 %v2845
        %v2847 = vlaneseq
        %v2848 = vshrl.u32 %v2847, 7
        %v2849 = vsub.s32 %v2846, %v2848
        %v2850 = vrot.slane %v2667, %v2849
        %v2852 = vunpack.c.l.s4 1983009808
        %v2853 = vunpack.c.0.s8 %v2852
        %v2854 = vlaneseq
        %v2855 = vshrl.u32 %v2854, 7
        %v2856 = vsub.s32 %v2853, %v2855
        %v2857 = vrot.slane %v2843, %v2856
        %v2858 = vcombine.high %v2850, %v2850
        %v2859 = vcombine.high %v2857, %v2857
        %v2860 = vcombine.high %v2668, %v2668
        %v2862 = vunpack.c.l.s4 1983009808
        %v2863 = vunpack.c.0.s8 %v2862
        %v2864 = vlaneseq
        %v2865 = vshrl.u32 %v2864, 7
        %v2866 = vsub.s32 %v2863, %v2865
        %v2867 = vrot.slane %v2668, %v2866
        %v2869 = vunpack.c.l.s4 1983009808
        %v2870 = vunpack.c.0.s8 %v2869
        %v2871 = vlaneseq
        %v2872 = vshrl.u32 %v2871, 7
        %v2873 = vsub.s32 %v2870, %v2872
        %v2874 = vrot.slane %v2860, %v2873
        %v2875 = vcombine.high %v2867, %v2867
        %v2876 = vcombine.high %v2874, %v2874
        %v2877 = vcombine.high %v2669, %v2669
        %v2879 = vunpack.c.l.s4 1983009808
        %v2880 = vunpack.c.0.s8 %v2879
        %v2881 = vlaneseq
        %v2882 = vshrl.u32 %v2881, 7
        %v2883 = vsub.s32 %v2880, %v2882
        %v2884 = vrot.slane %v2669, %v2883
        %v2886 = vunpack.c.l.s4 1983009808
        %v2887 = vunpack.c.0.s8 %v2886
        %v2888 = vlaneseq
        %v2889 = vshrl.u32 %v2888, 7
        %v2890 = vsub.s32 %v2887, %v2889
        %v2891 = vrot.slane %v2877, %v2890
        %v2892 = vcombine.high %v2884, %v2884
        %v2893 = vcombine.high %v2891, %v2891
        %v2894 = vcombine.high %v2670, %v2670
        %v2896 = vunpack.c.l.s4 1983009808
        %v2897 = vunpack.c.0.s8 %v2896
        %v2898 = vlaneseq
        %v2899 = vshrl.u32 %v2898, 7
        %v2900 = vsub.s32 %v2897, %v2899
        %v2901 = vrot.slane %v2670, %v2900
        %v2903 = vunpack.c.l.s4 1983009808
        %v2904 = vunpack.c.0.s8 %v2903
        %v2905 = vlaneseq
        %v2906 = vshrl.u32 %v2905, 7
        %v2907 = vsub.s32 %v2904, %v2906
        %v2908 = vrot.slane %v2894, %v2907
        %v2909 = vcombine.high %v2901, %v2901
        %v2910 = vcombine.high %v2908, %v2908
        %v2911 = vcombine.high %v2671, %v2671
        %v2913 = vunpack.c.l.s4 1983009808
        %v2914 = vunpack.c.0.s8 %v2913
        %v2915 = vlaneseq
        %v2916 = vshrl.u32 %v2915, 7
        %v2917 = vsub.s32 %v2914, %v2916
        %v2918 = vrot.slane %v2671, %v2917
        %v2920 = vunpack.c.l.s4 1983009808
        %v2921 = vunpack.c.0.s8 %v2920
        %v2922 = vlaneseq
        %v2923 = vshrl.u32 %v2922, 7
        %v2924 = vsub.s32 %v2921, %v2923
        %v2925 = vrot.slane %v2911, %v2924
        %v2926 = vcombine.high %v2918, %v2918
        %v2927 = vcombine.high %v2925, %v2925
        %v2928 = vcombine.high %v2672, %v2672
        %v2930 = vunpack.c.l.s4 1983009808
        %v2931 = vunpack.c.0.s8 %v2930
        %v2932 = vlaneseq
        %v2933 = vshrl.u32 %v2932, 7
        %v2934 = vsub.s32 %v2931, %v2933
        %v2935 = vrot.slane %v2672, %v2934
        %v2937 = vunpack.c.l.s4 1983009808
        %v2938 = vunpack.c.0.s8 %v2937
        %v2939 = vlaneseq
        %v2940 = vshrl.u32 %v2939, 7
        %v2941 = vsub.s32 %v2938, %v2940
        %v2942 = vrot.slane %v2928, %v2941
        %v2943 = vcombine.high %v2935, %v2935
        %v2944 = vcombine.high %v2942, %v2942
        %v2945 = vcombine.high %v2673, %v2673
        %v2947 = vunpack.c.l.s4 1983009808
        %v2948 = vunpack.c.0.s8 %v2947
        %v2949 = vlaneseq
        %v2950 = vshrl.u32 %v2949, 7
        %v2951 = vsub.s32 %v2948, %v2950
        %v2952 = vrot.slane %v2673, %v2951
        %v2954 = vunpack.c.l.s4 1983009808
        %v2955 = vunpack.c.0.s8 %v2954
        %v2956 = vlaneseq
        %v2957 = vshrl.u32 %v2956, 7
        %v2958 = vsub.s32 %v2955, %v2957
        %v2959 = vrot.slane %v2945, %v2958
        %v2960 = vcombine.high %v2952, %v2952
        %v2961 = vcombine.high %v2959, %v2959
        %v2962 = vcombine.high %v2674, %v2674
        %v2964 = vunpack.c.l.s4 1983009808
        %v2965 = vunpack.c.0.s8 %v2964
        %v2966 = vlaneseq
        %v2967 = vshrl.u32 %v2966, 7
        %v2968 = vsub.s32 %v2965, %v2967
        %v2969 = vrot.slane %v2674, %v2968
        %v2971 = vunpack.c.l.s4 1983009808
        %v2972 = vunpack.c.0.s8 %v2971
        %v2973 = vlaneseq
        %v2974 = vshrl.u32 %v2973, 7
        %v2975 = vsub.s32 %v2972, %v2974
        %v2976 = vrot.slane %v2962, %v2975
        %v2977 = vcombine.high %v2969, %v2969
        %v2978 = vcombine.high %v2976, %v2976
        %v2979 = vcombine.high %v2675, %v2675
        %v2981 = vunpack.c.l.s4 1983009808
        %v2982 = vunpack.c.0.s8 %v2981
        %v2983 = vlaneseq
        %v2984 = vshrl.u32 %v2983, 7
        %v2985 = vsub.s32 %v2982, %v2984
        %v2986 = vrot.slane %v2675, %v2985
        %v2988 = vunpack.c.l.s4 1983009808
        %v2989 = vunpack.c.0.s8 %v2988
        %v2990 = vlaneseq
        %v2991 = vshrl.u32 %v2990, 7
        %v2992 = vsub.s32 %v2989, %v2991
        %v2993 = vrot.slane %v2979, %v2992
        %v2994 = vcombine.high %v2986, %v2986
        %v2995 = vcombine.high %v2993, %v2993
        %v2996 = vcombine.high %v2676, %v2676
        %v2998 = vunpack.c.l.s4 1983009808
        %v2999 = vunpack.c.0.s8 %v2998
        %v3000 = vlaneseq
        %v3001 = vshrl.u32 %v3000, 7
        %v3002 = vsub.s32 %v2999, %v3001
        %v3003 = vrot.slane %v2676, %v3002
        %v3005 = vunpack.c.l.s4 1983009808
        %v3006 = vunpack.c.0.s8 %v3005
        %v3007 = vlaneseq
        %v3008 = vshrl.u32 %v3007, 7
        %v3009 = vsub.s32 %v3006, %v3008
        %v3010 = vrot.slane %v2996, %v3009
        %v3011 = vcombine.high %v3003, %v3003
        %v3012 = vcombine.high %v3010, %v3010
        %v3013 = vcombine.high %v2677, %v2677
        %v3015 = vunpack.c.l.s4 1983009808
        %v3016 = vunpack.c.0.s8 %v3015
        %v3017 = vlaneseq
        %v3018 = vshrl.u32 %v3017, 7
        %v3019 = vsub.s32 %v3016, %v3018
        %v3020 = vrot.slane %v2677, %v3019
        %v3022 = vunpack.c.l.s4 1983009808
        %v3023 = vunpack.c.0.s8 %v3022
        %v3024 = vlaneseq
        %v3025 = vshrl.u32 %v3024, 7
        %v3026 = vsub.s32 %v3023, %v3025
        %v3027 = vrot.slane %v3013, %v3026
        %v3028 = vcombine.high %v3020, %v3020
        %v3029 = vcombine.high %v3027, %v3027
        %v3030 = vcombine.high %v2678, %v2678
        %v3032 = vunpack.c.l.s4 1983009808
        %v3033 = vunpack.c.0.s8 %v3032
        %v3034 = vlaneseq
        %v3035 = vshrl.u32 %v3034, 7
        %v3036 = vsub.s32 %v3033, %v3035
        %v3037 = vrot.slane %v2678, %v3036
        %v3039 = vunpack.c.l.s4 1983009808
        %v3040 = vunpack.c.0.s8 %v3039
        %v3041 = vlaneseq
        %v3042 = vshrl.u32 %v3041, 7
        %v3043 = vsub.s32 %v3040, %v3042
        %v3044 = vrot.slane %v3030, %v3043
        %v3045 = vcombine.high %v3037, %v3037
        %v3046 = vcombine.high %v3044, %v3044
        %v3047 = vcombine.high %v2679, %v2679
        %v3049 = vunpack.c.l.s4 1983009808
        %v3050 = vunpack.c.0.s8 %v3049
        %v3051 = vlaneseq
        %v3052 = vshrl.u32 %v3051, 7
        %v3053 = vsub.s32 %v3050, %v3052
        %v3054 = vrot.slane %v2679, %v3053
        %v3056 = vunpack.c.l.s4 1983009808
        %v3057 = vunpack.c.0.s8 %v3056
        %v3058 = vlaneseq
        %v3059 = vshrl.u32 %v3058, 7
        %v3060 = vsub.s32 %v3057, %v3059
        %v3061 = vrot.slane %v3047, %v3060
        %v3062 = vcombine.high %v3054, %v3054
        %v3063 = vcombine.high %v3061, %v3061
        %v3064 = vcombine.high %v2680, %v2680
        %v3066 = vunpack.c.l.s4 1983009808
        %v3067 = vunpack.c.0.s8 %v3066
        %v3068 = vlaneseq
        %v3069 = vshrl.u32 %v3068, 7
        %v3070 = vsub.s32 %v3067, %v3069
        %v3071 = vrot.slane %v2680, %v3070
        %v3073 = vunpack.c.l.s4 1983009808
        %v3074 = vunpack.c.0.s8 %v3073
        %v3075 = vlaneseq
        %v3076 = vshrl.u32 %v3075, 7
        %v3077 = vsub.s32 %v3074, %v3076
        %v3078 = vrot.slane %v3064, %v3077
        %v3079 = vcombine.high %v3071, %v3071
        %v3080 = vcombine.high %v3078, %v3078
        %v3081 = vcombine.high %v2681, %v2681
        %v3083 = vunpack.c.l.s4 1983009808
        %v3084 = vunpack.c.0.s8 %v3083
        %v3085 = vlaneseq
        %v3086 = vshrl.u32 %v3085, 7
        %v3087 = vsub.s32 %v3084, %v3086
        %v3088 = vrot.slane %v2681, %v3087
        %v3090 = vunpack.c.l.s4 1983009808
        %v3091 = vunpack.c.0.s8 %v3090
        %v3092 = vlaneseq
        %v3093 = vshrl.u32 %v3092, 7
        %v3094 = vsub.s32 %v3091, %v3093
        %v3095 = vrot.slane %v3081, %v3094
        %v3096 = vcombine.high %v3088, %v3088
        %v3097 = vcombine.high %v3095, %v3095
        %v3098 = vcombine.high %v2682, %v2682
        %v3100 = vunpack.c.l.s4 1983009808
        %v3101 = vunpack.c.0.s8 %v3100
        %v3102 = vlaneseq
        %v3103 = vshrl.u32 %v3102, 7
        %v3104 = vsub.s32 %v3101, %v3103
        %v3105 = vrot.slane %v2682, %v3104
        %v3107 = vunpack.c.l.s4 1983009808
        %v3108 = vunpack.c.0.s8 %v3107
        %v3109 = vlaneseq
        %v3110 = vshrl.u32 %v3109, 7
        %v3111 = vsub.s32 %v3108, %v3110
        %v3112 = vrot.slane %v3098, %v3111
        %v3113 = vcombine.high %v3105, %v3105
        %v3114 = vcombine.high %v3112, %v3112
        %v3115 = vcombine.high %v2683, %v2683
        %v3117 = vunpack.c.l.s4 1983009808
        %v3118 = vunpack.c.0.s8 %v3117
        %v3119 = vlaneseq
        %v3120 = vshrl.u32 %v3119, 7
        %v3121 = vsub.s32 %v3118, %v3120
        %v3122 = vrot.slane %v2683, %v3121
        %v3124 = vunpack.c.l.s4 1983009808
        %v3125 = vunpack.c.0.s8 %v3124
        %v3126 = vlaneseq
        %v3127 = vshrl.u32 %v3126, 7
        %v3128 = vsub.s32 %v3125, %v3127
        %v3129 = vrot.slane %v3115, %v3128
        %v3130 = vcombine.high %v3122, %v3122
        %v3131 = vcombine.high %v3129, %v3129
        %v3132 = vcombine.high %v2684, %v2684
        %v3134 = vunpack.c.l.s4 1983009808
        %v3135 = vunpack.c.0.s8 %v3134
        %v3136 = vlaneseq
        %v3137 = vshrl.u32 %v3136, 7
        %v3138 = vsub.s32 %v3135, %v3137
        %v3139 = vrot.slane %v2684, %v3138
        %v3141 = vunpack.c.l.s4 1983009808
        %v3142 = vunpack.c.0.s8 %v3141
        %v3143 = vlaneseq
        %v3144 = vshrl.u32 %v3143, 7
        %v3145 = vsub.s32 %v3142, %v3144
        %v3146 = vrot.slane %v3132, %v3145
        %v3147 = vcombine.high %v3139, %v3139
        %v3148 = vcombine.high %v3146, %v3146
        %v3149 = vcombine.high %v2685, %v2685
        %v3151 = vunpack.c.l.s4 1983009808
        %v3152 = vunpack.c.0.s8 %v3151
        %v3153 = vlaneseq
        %v3154 = vshrl.u32 %v3153, 7
        %v3155 = vsub.s32 %v3152, %v3154
        %v3156 = vrot.slane %v2685, %v3155
        %v3158 = vunpack.c.l.s4 1983009808
        %v3159 = vunpack.c.0.s8 %v3158
        %v3160 = vlaneseq
        %v3161 = vshrl.u32 %v3160, 7
        %v3162 = vsub.s32 %v3159, %v3161
        %v3163 = vrot.slane %v3149, %v3162
        %v3164 = vcombine.high %v3156, %v3156
        %v3165 = vcombine.high %v3163, %v3163
        %v3166 = vcombine.high %v2686, %v2686
        %v3168 = vunpack.c.l.s4 1983009808
        %v3169 = vunpack.c.0.s8 %v3168
        %v3170 = vlaneseq
        %v3171 = vshrl.u32 %v3170, 7
        %v3172 = vsub.s32 %v3169, %v3171
        %v3173 = vrot.slane %v2686, %v3172
        %v3175 = vunpack.c.l.s4 1983009808
        %v3176 = vunpack.c.0.s8 %v3175
        %v3177 = vlaneseq
        %v3178 = vshrl.u32 %v3177, 7
        %v3179 = vsub.s32 %v3176, %v3178
        %v3180 = vrot.slane %v3166, %v3179
        %v3181 = vcombine.high %v3173, %v3173
        %v3182 = vcombine.high %v3180, %v3180
        %v3183 = vcombine.high %v2687, %v2687
        %v3185 = vunpack.c.l.s4 1983009808
        %v3186 = vunpack.c.0.s8 %v3185
        %v3187 = vlaneseq
        %v3188 = vshrl.u32 %v3187, 7
        %v3189 = vsub.s32 %v3186, %v3188
        %v3190 = vrot.slane %v2687, %v3189
        %v3192 = vunpack.c.l.s4 1983009808
        %v3193 = vunpack.c.0.s8 %v3192
        %v3194 = vlaneseq
        %v3195 = vshrl.u32 %v3194, 7
        %v3196 = vsub.s32 %v3193, %v3195
        %v3197 = vrot.slane %v3183, %v3196
        %v3198 = vcombine.high %v3190, %v3190
        %v3199 = vcombine.high %v3197, %v3197
        %v3200 = vcombine.high %v2688, %v2688
        %v3202 = vunpack.c.l.s4 1983009808
        %v3203 = vunpack.c.0.s8 %v3202
        %v3204 = vlaneseq
        %v3205 = vshrl.u32 %v3204, 7
        %v3206 = vsub.s32 %v3203, %v3205
        %v3207 = vrot.slane %v2688, %v3206
        %v3209 = vunpack.c.l.s4 1983009808
        %v3210 = vunpack.c.0.s8 %v3209
        %v3211 = vlaneseq
        %v3212 = vshrl.u32 %v3211, 7
        %v3213 = vsub.s32 %v3210, %v3212
        %v3214 = vrot.slane %v3200, %v3213
        %v3215 = vcombine.high %v3207, %v3207
        %v3216 = vcombine.high %v3214, %v3214
        %v3217 = vcombine.high %v2689, %v2689
        %v3219 = vunpack.c.l.s4 1983009808
        %v3220 = vunpack.c.0.s8 %v3219
        %v3221 = vlaneseq
        %v3222 = vshrl.u32 %v3221, 7
        %v3223 = vsub.s32 %v3220, %v3222
        %v3224 = vrot.slane %v2689, %v3223
        %v3226 = vunpack.c.l.s4 1983009808
        %v3227 = vunpack.c.0.s8 %v3226
        %v3228 = vlaneseq
        %v3229 = vshrl.u32 %v3228, 7
        %v3230 = vsub.s32 %v3227, %v3229
        %v3231 = vrot.slane %v3217, %v3230
        %v3232 = vcombine.high %v3224, %v3224
        %v3233 = vcombine.high %v3231, %v3231
        %v3234 = vcombine.high %v2690, %v2690
        %v3236 = vunpack.c.l.s4 1983009808
        %v3237 = vunpack.c.0.s8 %v3236
        %v3238 = vlaneseq
        %v3239 = vshrl.u32 %v3238, 7
        %v3240 = vsub.s32 %v3237, %v3239
        %v3241 = vrot.slane %v2690, %v3240
        %v3243 = vunpack.c.l.s4 1983009808
        %v3244 = vunpack.c.0.s8 %v3243
        %v3245 = vlaneseq
        %v3246 = vshrl.u32 %v3245, 7
        %v3247 = vsub.s32 %v3244, %v3246
        %v3248 = vrot.slane %v3234, %v3247
        %v3249 = vcombine.high %v3241, %v3241
        %v3250 = vcombine.high %v3248, %v3248
        %v3251 = vcombine.high %v2691, %v2691
        %v3253 = vunpack.c.l.s4 1983009808
        %v3254 = vunpack.c.0.s8 %v3253
        %v3255 = vlaneseq
        %v3256 = vshrl.u32 %v3255, 7
        %v3257 = vsub.s32 %v3254, %v3256
        %v3258 = vrot.slane %v2691, %v3257
        %v3260 = vunpack.c.l.s4 1983009808
        %v3261 = vunpack.c.0.s8 %v3260
        %v3262 = vlaneseq
        %v3263 = vshrl.u32 %v3262, 7
        %v3264 = vsub.s32 %v3261, %v3263
        %v3265 = vrot.slane %v3251, %v3264
        %v3266 = vcombine.high %v3258, %v3258
        %v3267 = vcombine.high %v3265, %v3265
        %vm3396 = vcmask 58368
        %v3397 = vsel %vm3396, %v2731, -inf
        %v3398 = vrot.slane %v3397, 4
        %v3399 = vmax.f32 %v3397, %v3398
        %v3400 = vrot.slane %v3399, 2
        %v3401 = vmax.f32 %v3399, %v3400
        %v3402 = vrot.slane %v3401, 1
        %v3403 = vmax.f32 %v3401, %v3402
        %v3404 = vsel %vm3396, %v2739, -inf
        %v3405 = vrot.slane %v3404, 4
        %v3406 = vmax.f32 %v3404, %v3405
        %v3407 = vrot.slane %v3406, 2
        %v3408 = vmax.f32 %v3406, %v3407
        %v3409 = vrot.slane %v3408, 1
        %v3410 = vmax.f32 %v3408, %v3409
        %v3411 = vsel %vm3396, %v2738, -inf
        %v3412 = vrot.slane %v3411, 4
        %v3413 = vmax.f32 %v3411, %v3412
        %v3414 = vrot.slane %v3413, 2
        %v3415 = vmax.f32 %v3413, %v3414
        %v3416 = vrot.slane %v3415, 1
        %v3417 = vmax.f32 %v3415, %v3416
        %v3418 = vsel %vm3396, %v2740, -inf
        %v3419 = vrot.slane %v3418, 4
        %v3420 = vmax.f32 %v3418, %v3419
        %v3421 = vrot.slane %v3420, 2
        %v3422 = vmax.f32 %v3420, %v3421
        %v3423 = vrot.slane %v3422, 1
        %v3424 = vmax.f32 %v3422, %v3423
        %v3425 = vsel %vm3396, %v2748, -inf
        %v3426 = vrot.slane %v3425, 4
        %v3427 = vmax.f32 %v3425, %v3426
        %v3428 = vrot.slane %v3427, 2
        %v3429 = vmax.f32 %v3427, %v3428
        %v3430 = vrot.slane %v3429, 1
        %v3431 = vmax.f32 %v3429, %v3430
        %v3432 = vsel %vm3396, %v2756, -inf
        %v3433 = vrot.slane %v3432, 4
        %v3434 = vmax.f32 %v3432, %v3433
        %v3435 = vrot.slane %v3434, 2
        %v3436 = vmax.f32 %v3434, %v3435
        %v3437 = vrot.slane %v3436, 1
        %v3438 = vmax.f32 %v3436, %v3437
        %v3439 = vsel %vm3396, %v2755, -inf
        %v3440 = vrot.slane %v3439, 4
        %v3441 = vmax.f32 %v3439, %v3440
        %v3442 = vrot.slane %v3441, 2
        %v3443 = vmax.f32 %v3441, %v3442
        %v3444 = vrot.slane %v3443, 1
        %v3445 = vmax.f32 %v3443, %v3444
        %v3446 = vsel %vm3396, %v2757, -inf
        %v3447 = vrot.slane %v3446, 4
        %v3448 = vmax.f32 %v3446, %v3447
        %v3449 = vrot.slane %v3448, 2
        %v3450 = vmax.f32 %v3448, %v3449
        %v3451 = vrot.slane %v3450, 1
        %v3452 = vmax.f32 %v3450, %v3451
        %v3453 = vsel %vm3396, %v2765, -inf
        %v3454 = vrot.slane %v3453, 4
        %v3455 = vmax.f32 %v3453, %v3454
        %v3456 = vrot.slane %v3455, 2
        %v3457 = vmax.f32 %v3455, %v3456
        %v3458 = vrot.slane %v3457, 1
        %v3459 = vmax.f32 %v3457, %v3458
        %v3460 = vsel %vm3396, %v2773, -inf
        %v3461 = vrot.slane %v3460, 4
        %v3462 = vmax.f32 %v3460, %v3461
        %v3463 = vrot.slane %v3462, 2
        %v3464 = vmax.f32 %v3462, %v3463
        %v3465 = vrot.slane %v3464, 1
        %v3466 = vmax.f32 %v3464, %v3465
        %v3467 = vsel %vm3396, %v2772, -inf
        %v3468 = vrot.slane %v3467, 4
        %v3469 = vmax.f32 %v3467, %v3468
        %v3470 = vrot.slane %v3469, 2
        %v3471 = vmax.f32 %v3469, %v3470
        %v3472 = vrot.slane %v3471, 1
        %v3473 = vmax.f32 %v3471, %v3472
        %v3474 = vsel %vm3396, %v2774, -inf
        %v3475 = vrot.slane %v3474, 4
        %v3476 = vmax.f32 %v3474, %v3475
        %v3477 = vrot.slane %v3476, 2
        %v3478 = vmax.f32 %v3476, %v3477
        %v3479 = vrot.slane %v3478, 1
        %v3480 = vmax.f32 %v3478, %v3479
        %v3481 = vsel %vm3396, %v2782, -inf
        %v3482 = vrot.slane %v3481, 4
        %v3483 = vmax.f32 %v3481, %v3482
        %v3484 = vrot.slane %v3483, 2
        %v3485 = vmax.f32 %v3483, %v3484
        %v3486 = vrot.slane %v3485, 1
        %v3487 = vmax.f32 %v3485, %v3486
        %v3488 = vsel %vm3396, %v2790, -inf
        %v3489 = vrot.slane %v3488, 4
        %v3490 = vmax.f32 %v3488, %v3489
        %v3491 = vrot.slane %v3490, 2
        %v3492 = vmax.f32 %v3490, %v3491
        %v3493 = vrot.slane %v3492, 1
        %v3494 = vmax.f32 %v3492, %v3493
        %v3495 = vsel %vm3396, %v2789, -inf
        %v3496 = vrot.slane %v3495, 4
        %v3497 = vmax.f32 %v3495, %v3496
        %v3498 = vrot.slane %v3497, 2
        %v3499 = vmax.f32 %v3497, %v3498
        %v3500 = vrot.slane %v3499, 1
        %v3501 = vmax.f32 %v3499, %v3500
        %v3502 = vsel %vm3396, %v2791, -inf
        %v3503 = vrot.slane %v3502, 4
        %v3504 = vmax.f32 %v3502, %v3503
        %v3505 = vrot.slane %v3504, 2
        %v3506 = vmax.f32 %v3504, %v3505
        %v3507 = vrot.slane %v3506, 1
        %v3508 = vmax.f32 %v3506, %v3507
        %v3509 = vsel %vm3396, %v2799, -inf
        %v3510 = vrot.slane %v3509, 4
        %v3511 = vmax.f32 %v3509, %v3510
        %v3512 = vrot.slane %v3511, 2
        %v3513 = vmax.f32 %v3511, %v3512
        %v3514 = vrot.slane %v3513, 1
        %v3515 = vmax.f32 %v3513, %v3514
        %v3516 = vsel %vm3396, %v2807, -inf
        %v3517 = vrot.slane %v3516, 4
        %v3518 = vmax.f32 %v3516, %v3517
        %v3519 = vrot.slane %v3518, 2
        %v3520 = vmax.f32 %v3518, %v3519
        %v3521 = vrot.slane %v3520, 1
        %v3522 = vmax.f32 %v3520, %v3521
        %v3523 = vsel %vm3396, %v2806, -inf
        %v3524 = vrot.slane %v3523, 4
        %v3525 = vmax.f32 %v3523, %v3524
        %v3526 = vrot.slane %v3525, 2
        %v3527 = vmax.f32 %v3525, %v3526
        %v3528 = vrot.slane %v3527, 1
        %v3529 = vmax.f32 %v3527, %v3528
        %v3530 = vsel %vm3396, %v2808, -inf
        %v3531 = vrot.slane %v3530, 4
        %v3532 = vmax.f32 %v3530, %v3531
        %v3533 = vrot.slane %v3532, 2
        %v3534 = vmax.f32 %v3532, %v3533
        %v3535 = vrot.slane %v3534, 1
        %v3536 = vmax.f32 %v3534, %v3535
        %v3537 = vsel %vm3396, %v2816, -inf
        %v3538 = vrot.slane %v3537, 4
        %v3539 = vmax.f32 %v3537, %v3538
        %v3540 = vrot.slane %v3539, 2
        %v3541 = vmax.f32 %v3539, %v3540
        %v3542 = vrot.slane %v3541, 1
        %v3543 = vmax.f32 %v3541, %v3542
        %v3544 = vsel %vm3396, %v2824, -inf
        %v3545 = vrot.slane %v3544, 4
        %v3546 = vmax.f32 %v3544, %v3545
        %v3547 = vrot.slane %v3546, 2
        %v3548 = vmax.f32 %v3546, %v3547
        %v3549 = vrot.slane %v3548, 1
        %v3550 = vmax.f32 %v3548, %v3549
        %v3551 = vsel %vm3396, %v2823, -inf
        %v3552 = vrot.slane %v3551, 4
        %v3553 = vmax.f32 %v3551, %v3552
        %v3554 = vrot.slane %v3553, 2
        %v3555 = vmax.f32 %v3553, %v3554
        %v3556 = vrot.slane %v3555, 1
        %v3557 = vmax.f32 %v3555, %v3556
        %v3558 = vsel %vm3396, %v2825, -inf
        %v3559 = vrot.slane %v3558, 4
        %v3560 = vmax.f32 %v3558, %v3559
        %v3561 = vrot.slane %v3560, 2
        %v3562 = vmax.f32 %v3560, %v3561
        %v3563 = vrot.slane %v3562, 1
        %v3564 = vmax.f32 %v3562, %v3563
        %v3565 = vsel %vm3396, %v2833, -inf
        %v3566 = vrot.slane %v3565, 4
        %v3567 = vmax.f32 %v3565, %v3566
        %v3568 = vrot.slane %v3567, 2
        %v3569 = vmax.f32 %v3567, %v3568
        %v3570 = vrot.slane %v3569, 1
        %v3571 = vmax.f32 %v3569, %v3570
        %v3572 = vsel %vm3396, %v2841, -inf
        %v3573 = vrot.slane %v3572, 4
        %v3574 = vmax.f32 %v3572, %v3573
        %v3575 = vrot.slane %v3574, 2
        %v3576 = vmax.f32 %v3574, %v3575
        %v3577 = vrot.slane %v3576, 1
        %v3578 = vmax.f32 %v3576, %v3577
        %v3579 = vsel %vm3396, %v2840, -inf
        %v3580 = vrot.slane %v3579, 4
        %v3581 = vmax.f32 %v3579, %v3580
        %v3582 = vrot.slane %v3581, 2
        %v3583 = vmax.f32 %v3581, %v3582
        %v3584 = vrot.slane %v3583, 1
        %v3585 = vmax.f32 %v3583, %v3584
        %v3586 = vsel %vm3396, %v2842, -inf
        %v3587 = vrot.slane %v3586, 4
        %v3588 = vmax.f32 %v3586, %v3587
        %v3589 = vrot.slane %v3588, 2
        %v3590 = vmax.f32 %v3588, %v3589
        %v3591 = vrot.slane %v3590, 1
        %v3592 = vmax.f32 %v3590, %v3591
        %v3593 = vsel %vm3396, %v2850, -inf
        %v3594 = vrot.slane %v3593, 4
        %v3595 = vmax.f32 %v3593, %v3594
        %v3596 = vrot.slane %v3595, 2
        %v3597 = vmax.f32 %v3595, %v3596
        %v3598 = vrot.slane %v3597, 1
        %v3599 = vmax.f32 %v3597, %v3598
        %v3600 = vsel %vm3396, %v2858, -inf
        %v3601 = vrot.slane %v3600, 4
        %v3602 = vmax.f32 %v3600, %v3601
        %v3603 = vrot.slane %v3602, 2
        %v3604 = vmax.f32 %v3602, %v3603
        %v3605 = vrot.slane %v3604, 1
        %v3606 = vmax.f32 %v3604, %v3605
        %v3607 = vsel %vm3396, %v2857, -inf
        %v3608 = vrot.slane %v3607, 4
        %v3609 = vmax.f32 %v3607, %v3608
        %v3610 = vrot.slane %v3609, 2
        %v3611 = vmax.f32 %v3609, %v3610
        %v3612 = vrot.slane %v3611, 1
        %v3613 = vmax.f32 %v3611, %v3612
        %v3614 = vsel %vm3396, %v2859, -inf
        %v3615 = vrot.slane %v3614, 4
        %v3616 = vmax.f32 %v3614, %v3615
        %v3617 = vrot.slane %v3616, 2
        %v3618 = vmax.f32 %v3616, %v3617
        %v3619 = vrot.slane %v3618, 1
        %v3620 = vmax.f32 %v3618, %v3619
        %v3621 = vsel %vm3396, %v2867, -inf
        %v3622 = vrot.slane %v3621, 4
        %v3623 = vmax.f32 %v3621, %v3622
        %v3624 = vrot.slane %v3623, 2
        %v3625 = vmax.f32 %v3623, %v3624
        %v3626 = vrot.slane %v3625, 1
        %v3627 = vmax.f32 %v3625, %v3626
        %v3628 = vsel %vm3396, %v2875, -inf
        %v3629 = vrot.slane %v3628, 4
        %v3630 = vmax.f32 %v3628, %v3629
        %v3631 = vrot.slane %v3630, 2
        %v3632 = vmax.f32 %v3630, %v3631
        %v3633 = vrot.slane %v3632, 1
        %v3634 = vmax.f32 %v3632, %v3633
        %v3635 = vsel %vm3396, %v2874, -inf
        %v3636 = vrot.slane %v3635, 4
        %v3637 = vmax.f32 %v3635, %v3636
        %v3638 = vrot.slane %v3637, 2
        %v3639 = vmax.f32 %v3637, %v3638
        %v3640 = vrot.slane %v3639, 1
        %v3641 = vmax.f32 %v3639, %v3640
        %v3642 = vsel %vm3396, %v2876, -inf
        %v3643 = vrot.slane %v3642, 4
        %v3644 = vmax.f32 %v3642, %v3643
        %v3645 = vrot.slane %v3644, 2
        %v3646 = vmax.f32 %v3644, %v3645
        %v3647 = vrot.slane %v3646, 1
        %v3648 = vmax.f32 %v3646, %v3647
        %v3649 = vsel %vm3396, %v2884, -inf
        %v3650 = vrot.slane %v3649, 4
        %v3651 = vmax.f32 %v3649, %v3650
        %v3652 = vrot.slane %v3651, 2
        %v3653 = vmax.f32 %v3651, %v3652
        %v3654 = vrot.slane %v3653, 1
        %v3655 = vmax.f32 %v3653, %v3654
        %v3656 = vsel %vm3396, %v2892, -inf
        %v3657 = vrot.slane %v3656, 4
        %v3658 = vmax.f32 %v3656, %v3657
        %v3659 = vrot.slane %v3658, 2
        %v3660 = vmax.f32 %v3658, %v3659
        %v3661 = vrot.slane %v3660, 1
        %v3662 = vmax.f32 %v3660, %v3661
        %v3663 = vsel %vm3396, %v2891, -inf
        %v3664 = vrot.slane %v3663, 4
        %v3665 = vmax.f32 %v3663, %v3664
        %v3666 = vrot.slane %v3665, 2
        %v3667 = vmax.f32 %v3665, %v3666
        %v3668 = vrot.slane %v3667, 1
        %v3669 = vmax.f32 %v3667, %v3668
        %v3670 = vsel %vm3396, %v2893, -inf
        %v3671 = vrot.slane %v3670, 4
        %v3672 = vmax.f32 %v3670, %v3671
        %v3673 = vrot.slane %v3672, 2
        %v3674 = vmax.f32 %v3672, %v3673
        %v3675 = vrot.slane %v3674, 1
        %v3676 = vmax.f32 %v3674, %v3675
        %v3677 = vsel %vm3396, %v2901, -inf
        %v3678 = vrot.slane %v3677, 4
        %v3679 = vmax.f32 %v3677, %v3678
        %v3680 = vrot.slane %v3679, 2
        %v3681 = vmax.f32 %v3679, %v3680
        %v3682 = vrot.slane %v3681, 1
        %v3683 = vmax.f32 %v3681, %v3682
        %v3684 = vsel %vm3396, %v2909, -inf
        %v3685 = vrot.slane %v3684, 4
        %v3686 = vmax.f32 %v3684, %v3685
        %v3687 = vrot.slane %v3686, 2
        %v3688 = vmax.f32 %v3686, %v3687
        %v3689 = vrot.slane %v3688, 1
        %v3690 = vmax.f32 %v3688, %v3689
        %v3691 = vsel %vm3396, %v2908, -inf
        %v3692 = vrot.slane %v3691, 4
        %v3693 = vmax.f32 %v3691, %v3692
        %v3694 = vrot.slane %v3693, 2
        %v3695 = vmax.f32 %v3693, %v3694
        %v3696 = vrot.slane %v3695, 1
        %v3697 = vmax.f32 %v3695, %v3696
        %v3698 = vsel %vm3396, %v2910, -inf
        %v3699 = vrot.slane %v3698, 4
        %v3700 = vmax.f32 %v3698, %v3699
        %v3701 = vrot.slane %v3700, 2
        %v3702 = vmax.f32 %v3700, %v3701
        %v3703 = vrot.slane %v3702, 1
        %v3704 = vmax.f32 %v3702, %v3703
        %v3705 = vsel %vm3396, %v2918, -inf
        %v3706 = vrot.slane %v3705, 4
        %v3707 = vmax.f32 %v3705, %v3706
        %v3708 = vrot.slane %v3707, 2
        %v3709 = vmax.f32 %v3707, %v3708
        %v3710 = vrot.slane %v3709, 1
        %v3711 = vmax.f32 %v3709, %v3710
        %v3712 = vsel %vm3396, %v2926, -inf
        %v3713 = vrot.slane %v3712, 4
        %v3714 = vmax.f32 %v3712, %v3713
        %v3715 = vrot.slane %v3714, 2
        %v3716 = vmax.f32 %v3714, %v3715
        %v3717 = vrot.slane %v3716, 1
        %v3718 = vmax.f32 %v3716, %v3717
        %v3719 = vsel %vm3396, %v2925, -inf
        %v3720 = vrot.slane %v3719, 4
        %v3721 = vmax.f32 %v3719, %v3720
        %v3722 = vrot.slane %v3721, 2
        %v3723 = vmax.f32 %v3721, %v3722
        %v3724 = vrot.slane %v3723, 1
        %v3725 = vmax.f32 %v3723, %v3724
        %v3726 = vsel %vm3396, %v2927, -inf
        %v3727 = vrot.slane %v3726, 4
        %v3728 = vmax.f32 %v3726, %v3727
        %v3729 = vrot.slane %v3728, 2
        %v3730 = vmax.f32 %v3728, %v3729
        %v3731 = vrot.slane %v3730, 1
        %v3732 = vmax.f32 %v3730, %v3731
        %v3733 = vsel %vm3396, %v2935, -inf
        %v3734 = vrot.slane %v3733, 4
        %v3735 = vmax.f32 %v3733, %v3734
        %v3736 = vrot.slane %v3735, 2
        %v3737 = vmax.f32 %v3735, %v3736
        %v3738 = vrot.slane %v3737, 1
        %v3739 = vmax.f32 %v3737, %v3738
        %v3740 = vsel %vm3396, %v2943, -inf
        %v3741 = vrot.slane %v3740, 4
        %v3742 = vmax.f32 %v3740, %v3741
        %v3743 = vrot.slane %v3742, 2
        %v3744 = vmax.f32 %v3742, %v3743
        %v3745 = vrot.slane %v3744, 1
        %v3746 = vmax.f32 %v3744, %v3745
        %v3747 = vsel %vm3396, %v2942, -inf
        %v3748 = vrot.slane %v3747, 4
        %v3749 = vmax.f32 %v3747, %v3748
        %v3750 = vrot.slane %v3749, 2
        %v3751 = vmax.f32 %v3749, %v3750
        %v3752 = vrot.slane %v3751, 1
        %v3753 = vmax.f32 %v3751, %v3752
        %v3754 = vsel %vm3396, %v2944, -inf
        %v3755 = vrot.slane %v3754, 4
        %v3756 = vmax.f32 %v3754, %v3755
        %v3757 = vrot.slane %v3756, 2
        %v3758 = vmax.f32 %v3756, %v3757
        %v3759 = vrot.slane %v3758, 1
        %v3760 = vmax.f32 %v3758, %v3759
        %v3761 = vsel %vm3396, %v2952, -inf
        %v3762 = vrot.slane %v3761, 4
        %v3763 = vmax.f32 %v3761, %v3762
        %v3764 = vrot.slane %v3763, 2
        %v3765 = vmax.f32 %v3763, %v3764
        %v3766 = vrot.slane %v3765, 1
        %v3767 = vmax.f32 %v3765, %v3766
        %v3768 = vsel %vm3396, %v2960, -inf
        %v3769 = vrot.slane %v3768, 4
        %v3770 = vmax.f32 %v3768, %v3769
        %v3771 = vrot.slane %v3770, 2
        %v3772 = vmax.f32 %v3770, %v3771
        %v3773 = vrot.slane %v3772, 1
        %v3774 = vmax.f32 %v3772, %v3773
        %v3775 = vsel %vm3396, %v2959, -inf
        %v3776 = vrot.slane %v3775, 4
        %v3777 = vmax.f32 %v3775, %v3776
        %v3778 = vrot.slane %v3777, 2
        %v3779 = vmax.f32 %v3777, %v3778
        %v3780 = vrot.slane %v3779, 1
        %v3781 = vmax.f32 %v3779, %v3780
        %v3782 = vsel %vm3396, %v2961, -inf
        %v3783 = vrot.slane %v3782, 4
        %v3784 = vmax.f32 %v3782, %v3783
        %v3785 = vrot.slane %v3784, 2
        %v3786 = vmax.f32 %v3784, %v3785
        %v3787 = vrot.slane %v3786, 1
        %v3788 = vmax.f32 %v3786, %v3787
        %v3789 = vsel %vm3396, %v2969, -inf
        %v3790 = vrot.slane %v3789, 4
        %v3791 = vmax.f32 %v3789, %v3790
        %v3792 = vrot.slane %v3791, 2
        %v3793 = vmax.f32 %v3791, %v3792
        %v3794 = vrot.slane %v3793, 1
        %v3795 = vmax.f32 %v3793, %v3794
        %v3796 = vsel %vm3396, %v2977, -inf
        %v3797 = vrot.slane %v3796, 4
        %v3798 = vmax.f32 %v3796, %v3797
        %v3799 = vrot.slane %v3798, 2
        %v3800 = vmax.f32 %v3798, %v3799
        %v3801 = vrot.slane %v3800, 1
        %v3802 = vmax.f32 %v3800, %v3801
        %v3803 = vsel %vm3396, %v2976, -inf
        %v3804 = vrot.slane %v3803, 4
        %v3805 = vmax.f32 %v3803, %v3804
        %v3806 = vrot.slane %v3805, 2
        %v3807 = vmax.f32 %v3805, %v3806
        %v3808 = vrot.slane %v3807, 1
        %v3809 = vmax.f32 %v3807, %v3808
        %v3810 = vsel %vm3396, %v2978, -inf
        %v3811 = vrot.slane %v3810, 4
        %v3812 = vmax.f32 %v3810, %v3811
        %v3813 = vrot.slane %v3812, 2
        %v3814 = vmax.f32 %v3812, %v3813
        %v3815 = vrot.slane %v3814, 1
        %v3816 = vmax.f32 %v3814, %v3815
        %v3817 = vsel %vm3396, %v2986, -inf
        %v3818 = vrot.slane %v3817, 4
        %v3819 = vmax.f32 %v3817, %v3818
        %v3820 = vrot.slane %v3819, 2
        %v3821 = vmax.f32 %v3819, %v3820
        %v3822 = vrot.slane %v3821, 1
        %v3823 = vmax.f32 %v3821, %v3822
        %v3824 = vsel %vm3396, %v2994, -inf
        %v3825 = vrot.slane %v3824, 4
        %v3826 = vmax.f32 %v3824, %v3825
        %v3827 = vrot.slane %v3826, 2
        %v3828 = vmax.f32 %v3826, %v3827
        %v3829 = vrot.slane %v3828, 1
        %v3830 = vmax.f32 %v3828, %v3829
        %v3831 = vsel %vm3396, %v2993, -inf
        %v3832 = vrot.slane %v3831, 4
        %v3833 = vmax.f32 %v3831, %v3832
        %v3834 = vrot.slane %v3833, 2
        %v3835 = vmax.f32 %v3833, %v3834
        %v3836 = vrot.slane %v3835, 1
        %v3837 = vmax.f32 %v3835, %v3836
        %v3838 = vsel %vm3396, %v2995, -inf
        %v3839 = vrot.slane %v3838, 4
        %v3840 = vmax.f32 %v3838, %v3839
        %v3841 = vrot.slane %v3840, 2
        %v3842 = vmax.f32 %v3840, %v3841
        %v3843 = vrot.slane %v3842, 1
        %v3844 = vmax.f32 %v3842, %v3843
        %v3845 = vsel %vm3396, %v3003, -inf
        %v3846 = vrot.slane %v3845, 4
        %v3847 = vmax.f32 %v3845, %v3846
        %v3848 = vrot.slane %v3847, 2
        %v3849 = vmax.f32 %v3847, %v3848
        %v3850 = vrot.slane %v3849, 1
        %v3851 = vmax.f32 %v3849, %v3850
        %v3852 = vsel %vm3396, %v3011, -inf
        %v3853 = vrot.slane %v3852, 4
        %v3854 = vmax.f32 %v3852, %v3853
        %v3855 = vrot.slane %v3854, 2
        %v3856 = vmax.f32 %v3854, %v3855
        %v3857 = vrot.slane %v3856, 1
        %v3858 = vmax.f32 %v3856, %v3857
        %v3859 = vsel %vm3396, %v3010, -inf
        %v3860 = vrot.slane %v3859, 4
        %v3861 = vmax.f32 %v3859, %v3860
        %v3862 = vrot.slane %v3861, 2
        %v3863 = vmax.f32 %v3861, %v3862
        %v3864 = vrot.slane %v3863, 1
        %v3865 = vmax.f32 %v3863, %v3864
        %v3866 = vsel %vm3396, %v3012, -inf
        %v3867 = vrot.slane %v3866, 4
        %v3868 = vmax.f32 %v3866, %v3867
        %v3869 = vrot.slane %v3868, 2
        %v3870 = vmax.f32 %v3868, %v3869
        %v3871 = vrot.slane %v3870, 1
        %v3872 = vmax.f32 %v3870, %v3871
        %v3873 = vsel %vm3396, %v3020, -inf
        %v3874 = vrot.slane %v3873, 4
        %v3875 = vmax.f32 %v3873, %v3874
        %v3876 = vrot.slane %v3875, 2
        %v3877 = vmax.f32 %v3875, %v3876
        %v3878 = vrot.slane %v3877, 1
        %v3879 = vmax.f32 %v3877, %v3878
        %v3880 = vsel %vm3396, %v3028, -inf
        %v3881 = vrot.slane %v3880, 4
        %v3882 = vmax.f32 %v3880, %v3881
        %v3883 = vrot.slane %v3882, 2
        %v3884 = vmax.f32 %v3882, %v3883
        %v3885 = vrot.slane %v3884, 1
        %v3886 = vmax.f32 %v3884, %v3885
        %v3887 = vsel %vm3396, %v3027, -inf
        %v3888 = vrot.slane %v3887, 4
        %v3889 = vmax.f32 %v3887, %v3888
        %v3890 = vrot.slane %v3889, 2
        %v3891 = vmax.f32 %v3889, %v3890
        %v3892 = vrot.slane %v3891, 1
        %v3893 = vmax.f32 %v3891, %v3892
        %v3894 = vsel %vm3396, %v3029, -inf
        %v3895 = vrot.slane %v3894, 4
        %v3896 = vmax.f32 %v3894, %v3895
        %v3897 = vrot.slane %v3896, 2
        %v3898 = vmax.f32 %v3896, %v3897
        %v3899 = vrot.slane %v3898, 1
        %v3900 = vmax.f32 %v3898, %v3899
        %v3901 = vsel %vm3396, %v3037, -inf
        %v3902 = vrot.slane %v3901, 4
        %v3903 = vmax.f32 %v3901, %v3902
        %v3904 = vrot.slane %v3903, 2
        %v3905 = vmax.f32 %v3903, %v3904
        %v3906 = vrot.slane %v3905, 1
        %v3907 = vmax.f32 %v3905, %v3906
        %v3908 = vsel %vm3396, %v3045, -inf
        %v3909 = vrot.slane %v3908, 4
        %v3910 = vmax.f32 %v3908, %v3909
        %v3911 = vrot.slane %v3910, 2
        %v3912 = vmax.f32 %v3910, %v3911
        %v3913 = vrot.slane %v3912, 1
        %v3914 = vmax.f32 %v3912, %v3913
        %v3915 = vsel %vm3396, %v3044, -inf
        %v3916 = vrot.slane %v3915, 4
        %v3917 = vmax.f32 %v3915, %v3916
        %v3918 = vrot.slane %v3917, 2
        %v3919 = vmax.f32 %v3917, %v3918
        %v3920 = vrot.slane %v3919, 1
        %v3921 = vmax.f32 %v3919, %v3920
        %v3922 = vsel %vm3396, %v3046, -inf
        %v3923 = vrot.slane %v3922, 4
        %v3924 = vmax.f32 %v3922, %v3923
        %v3925 = vrot.slane %v3924, 2
        %v3926 = vmax.f32 %v3924, %v3925
        %v3927 = vrot.slane %v3926, 1
        %v3928 = vmax.f32 %v3926, %v3927
        %v3929 = vsel %vm3396, %v3054, -inf
        %v3930 = vrot.slane %v3929, 4
        %v3931 = vmax.f32 %v3929, %v3930
        %v3932 = vrot.slane %v3931, 2
        %v3933 = vmax.f32 %v3931, %v3932
        %v3934 = vrot.slane %v3933, 1
        %v3935 = vmax.f32 %v3933, %v3934
        %v3936 = vsel %vm3396, %v3062, -inf
        %v3937 = vrot.slane %v3936, 4
        %v3938 = vmax.f32 %v3936, %v3937
        %v3939 = vrot.slane %v3938, 2
        %v3940 = vmax.f32 %v3938, %v3939
        %v3941 = vrot.slane %v3940, 1
        %v3942 = vmax.f32 %v3940, %v3941
        %v3943 = vsel %vm3396, %v3061, -inf
        %v3944 = vrot.slane %v3943, 4
        %v3945 = vmax.f32 %v3943, %v3944
        %v3946 = vrot.slane %v3945, 2
        %v3947 = vmax.f32 %v3945, %v3946
        %v3948 = vrot.slane %v3947, 1
        %v3949 = vmax.f32 %v3947, %v3948
        %v3950 = vsel %vm3396, %v3063, -inf
        %v3951 = vrot.slane %v3950, 4
        %v3952 = vmax.f32 %v3950, %v3951
        %v3953 = vrot.slane %v3952, 2
        %v3954 = vmax.f32 %v3952, %v3953
        %v3955 = vrot.slane %v3954, 1
        %v3956 = vmax.f32 %v3954, %v3955
        %v3957 = vsel %vm3396, %v3071, -inf
        %v3958 = vrot.slane %v3957, 4
        %v3959 = vmax.f32 %v3957, %v3958
        %v3960 = vrot.slane %v3959, 2
        %v3961 = vmax.f32 %v3959, %v3960
        %v3962 = vrot.slane %v3961, 1
        %v3963 = vmax.f32 %v3961, %v3962
        %v3964 = vsel %vm3396, %v3079, -inf
        %v3965 = vrot.slane %v3964, 4
        %v3966 = vmax.f32 %v3964, %v3965
        %v3967 = vrot.slane %v3966, 2
        %v3968 = vmax.f32 %v3966, %v3967
        %v3969 = vrot.slane %v3968, 1
        %v3970 = vmax.f32 %v3968, %v3969
        %v3971 = vsel %vm3396, %v3078, -inf
        %v3972 = vrot.slane %v3971, 4
        %v3973 = vmax.f32 %v3971, %v3972
        %v3974 = vrot.slane %v3973, 2
        %v3975 = vmax.f32 %v3973, %v3974
        %v3976 = vrot.slane %v3975, 1
        %v3977 = vmax.f32 %v3975, %v3976
        %v3978 = vsel %vm3396, %v3080, -inf
        %v3979 = vrot.slane %v3978, 4
        %v3980 = vmax.f32 %v3978, %v3979
        %v3981 = vrot.slane %v3980, 2
        %v3982 = vmax.f32 %v3980, %v3981
        %v3983 = vrot.slane %v3982, 1
        %v3984 = vmax.f32 %v3982, %v3983
        %v3985 = vsel %vm3396, %v3088, -inf
        %v3986 = vrot.slane %v3985, 4
        %v3987 = vmax.f32 %v3985, %v3986
        %v3988 = vrot.slane %v3987, 2
        %v3989 = vmax.f32 %v3987, %v3988
        %v3990 = vrot.slane %v3989, 1
        %v3991 = vmax.f32 %v3989, %v3990
        %v3992 = vsel %vm3396, %v3096, -inf
        %v3993 = vrot.slane %v3992, 4
        %v3994 = vmax.f32 %v3992, %v3993
        %v3995 = vrot.slane %v3994, 2
        %v3996 = vmax.f32 %v3994, %v3995
        %v3997 = vrot.slane %v3996, 1
        %v3998 = vmax.f32 %v3996, %v3997
        %v3999 = vsel %vm3396, %v3095, -inf
        %v4000 = vrot.slane %v3999, 4
        %v4001 = vmax.f32 %v3999, %v4000
        %v4002 = vrot.slane %v4001, 2
        %v4003 = vmax.f32 %v4001, %v4002
        %v4004 = vrot.slane %v4003, 1
        %v4005 = vmax.f32 %v4003, %v4004
        %v4006 = vsel %vm3396, %v3097, -inf
        %v4007 = vrot.slane %v4006, 4
        %v4008 = vmax.f32 %v4006, %v4007
        %v4009 = vrot.slane %v4008, 2
        %v4010 = vmax.f32 %v4008, %v4009
        %v4011 = vrot.slane %v4010, 1
        %v4012 = vmax.f32 %v4010, %v4011
        %v4013 = vsel %vm3396, %v3105, -inf
        %v4014 = vrot.slane %v4013, 4
        %v4015 = vmax.f32 %v4013, %v4014
        %v4016 = vrot.slane %v4015, 2
        %v4017 = vmax.f32 %v4015, %v4016
        %v4018 = vrot.slane %v4017, 1
        %v4019 = vmax.f32 %v4017, %v4018
        %v4020 = vsel %vm3396, %v3113, -inf
        %v4021 = vrot.slane %v4020, 4
        %v4022 = vmax.f32 %v4020, %v4021
        %v4023 = vrot.slane %v4022, 2
        %v4024 = vmax.f32 %v4022, %v4023
        %v4025 = vrot.slane %v4024, 1
        %v4026 = vmax.f32 %v4024, %v4025
        %v4027 = vsel %vm3396, %v3112, -inf
        %v4028 = vrot.slane %v4027, 4
        %v4029 = vmax.f32 %v4027, %v4028
        %v4030 = vrot.slane %v4029, 2
        %v4031 = vmax.f32 %v4029, %v4030
        %v4032 = vrot.slane %v4031, 1
        %v4033 = vmax.f32 %v4031, %v4032
        %v4034 = vsel %vm3396, %v3114, -inf
        %v4035 = vrot.slane %v4034, 4
        %v4036 = vmax.f32 %v4034, %v4035
        %v4037 = vrot.slane %v4036, 2
        %v4038 = vmax.f32 %v4036, %v4037
        %v4039 = vrot.slane %v4038, 1
        %v4040 = vmax.f32 %v4038, %v4039
        %v4041 = vsel %vm3396, %v3122, -inf
        %v4042 = vrot.slane %v4041, 4
        %v4043 = vmax.f32 %v4041, %v4042
        %v4044 = vrot.slane %v4043, 2
        %v4045 = vmax.f32 %v4043, %v4044
        %v4046 = vrot.slane %v4045, 1
        %v4047 = vmax.f32 %v4045, %v4046
        %v4048 = vsel %vm3396, %v3130, -inf
        %v4049 = vrot.slane %v4048, 4
        %v4050 = vmax.f32 %v4048, %v4049
        %v4051 = vrot.slane %v4050, 2
        %v4052 = vmax.f32 %v4050, %v4051
        %v4053 = vrot.slane %v4052, 1
        %v4054 = vmax.f32 %v4052, %v4053
        %v4055 = vsel %vm3396, %v3129, -inf
        %v4056 = vrot.slane %v4055, 4
        %v4057 = vmax.f32 %v4055, %v4056
        %v4058 = vrot.slane %v4057, 2
        %v4059 = vmax.f32 %v4057, %v4058
        %v4060 = vrot.slane %v4059, 1
        %v4061 = vmax.f32 %v4059, %v4060
        %v4062 = vsel %vm3396, %v3131, -inf
        %v4063 = vrot.slane %v4062, 4
        %v4064 = vmax.f32 %v4062, %v4063
        %v4065 = vrot.slane %v4064, 2
        %v4066 = vmax.f32 %v4064, %v4065
        %v4067 = vrot.slane %v4066, 1
        %v4068 = vmax.f32 %v4066, %v4067
        %v4069 = vsel %vm3396, %v3139, -inf
        %v4070 = vrot.slane %v4069, 4
        %v4071 = vmax.f32 %v4069, %v4070
        %v4072 = vrot.slane %v4071, 2
        %v4073 = vmax.f32 %v4071, %v4072
        %v4074 = vrot.slane %v4073, 1
        %v4075 = vmax.f32 %v4073, %v4074
        %v4076 = vsel %vm3396, %v3147, -inf
        %v4077 = vrot.slane %v4076, 4
        %v4078 = vmax.f32 %v4076, %v4077
        %v4079 = vrot.slane %v4078, 2
        %v4080 = vmax.f32 %v4078, %v4079
        %v4081 = vrot.slane %v4080, 1
        %v4082 = vmax.f32 %v4080, %v4081
        %v4083 = vsel %vm3396, %v3146, -inf
        %v4084 = vrot.slane %v4083, 4
        %v4085 = vmax.f32 %v4083, %v4084
        %v4086 = vrot.slane %v4085, 2
        %v4087 = vmax.f32 %v4085, %v4086
        %v4088 = vrot.slane %v4087, 1
        %v4089 = vmax.f32 %v4087, %v4088
        %v4090 = vsel %vm3396, %v3148, -inf
        %v4091 = vrot.slane %v4090, 4
        %v4092 = vmax.f32 %v4090, %v4091
        %v4093 = vrot.slane %v4092, 2
        %v4094 = vmax.f32 %v4092, %v4093
        %v4095 = vrot.slane %v4094, 1
        %v4096 = vmax.f32 %v4094, %v4095
        %v4097 = vsel %vm3396, %v3156, -inf
        %v4098 = vrot.slane %v4097, 4
        %v4099 = vmax.f32 %v4097, %v4098
        %v4100 = vrot.slane %v4099, 2
        %v4101 = vmax.f32 %v4099, %v4100
        %v4102 = vrot.slane %v4101, 1
        %v4103 = vmax.f32 %v4101, %v4102
        %v4104 = vsel %vm3396, %v3164, -inf
        %v4105 = vrot.slane %v4104, 4
        %v4106 = vmax.f32 %v4104, %v4105
        %v4107 = vrot.slane %v4106, 2
        %v4108 = vmax.f32 %v4106, %v4107
        %v4109 = vrot.slane %v4108, 1
        %v4110 = vmax.f32 %v4108, %v4109
        %v4111 = vsel %vm3396, %v3163, -inf
        %v4112 = vrot.slane %v4111, 4
        %v4113 = vmax.f32 %v4111, %v4112
        %v4114 = vrot.slane %v4113, 2
        %v4115 = vmax.f32 %v4113, %v4114
        %v4116 = vrot.slane %v4115, 1
        %v4117 = vmax.f32 %v4115, %v4116
        %v4118 = vsel %vm3396, %v3165, -inf
        %v4119 = vrot.slane %v4118, 4
        %v4120 = vmax.f32 %v4118, %v4119
        %v4121 = vrot.slane %v4120, 2
        %v4122 = vmax.f32 %v4120, %v4121
        %v4123 = vrot.slane %v4122, 1
        %v4124 = vmax.f32 %v4122, %v4123
        %v4125 = vsel %vm3396, %v3173, -inf
        %v4126 = vrot.slane %v4125, 4
        %v4127 = vmax.f32 %v4125, %v4126
        %v4128 = vrot.slane %v4127, 2
        %v4129 = vmax.f32 %v4127, %v4128
        %v4130 = vrot.slane %v4129, 1
        %v4131 = vmax.f32 %v4129, %v4130
        %v4132 = vsel %vm3396, %v3181, -inf
        %v4133 = vrot.slane %v4132, 4
        %v4134 = vmax.f32 %v4132, %v4133
        %v4135 = vrot.slane %v4134, 2
        %v4136 = vmax.f32 %v4134, %v4135
        %v4137 = vrot.slane %v4136, 1
        %v4138 = vmax.f32 %v4136, %v4137
        %v4139 = vsel %vm3396, %v3180, -inf
        %v4140 = vrot.slane %v4139, 4
        %v4141 = vmax.f32 %v4139, %v4140
        %v4142 = vrot.slane %v4141, 2
        %v4143 = vmax.f32 %v4141, %v4142
        %v4144 = vrot.slane %v4143, 1
        %v4145 = vmax.f32 %v4143, %v4144
        %v4146 = vsel %vm3396, %v3182, -inf
        %v4147 = vrot.slane %v4146, 4
        %v4148 = vmax.f32 %v4146, %v4147
        %v4149 = vrot.slane %v4148, 2
        %v4150 = vmax.f32 %v4148, %v4149
        %v4151 = vrot.slane %v4150, 1
        %v4152 = vmax.f32 %v4150, %v4151
        %v4153 = vsel %vm3396, %v3190, -inf
        %v4154 = vrot.slane %v4153, 4
        %v4155 = vmax.f32 %v4153, %v4154
        %v4156 = vrot.slane %v4155, 2
        %v4157 = vmax.f32 %v4155, %v4156
        %v4158 = vrot.slane %v4157, 1
        %v4159 = vmax.f32 %v4157, %v4158
        %v4160 = vsel %vm3396, %v3198, -inf
        %v4161 = vrot.slane %v4160, 4
        %v4162 = vmax.f32 %v4160, %v4161
        %v4163 = vrot.slane %v4162, 2
        %v4164 = vmax.f32 %v4162, %v4163
        %v4165 = vrot.slane %v4164, 1
        %v4166 = vmax.f32 %v4164, %v4165
        %v4167 = vsel %vm3396, %v3197, -inf
        %v4168 = vrot.slane %v4167, 4
        %v4169 = vmax.f32 %v4167, %v4168
        %v4170 = vrot.slane %v4169, 2
        %v4171 = vmax.f32 %v4169, %v4170
        %v4172 = vrot.slane %v4171, 1
        %v4173 = vmax.f32 %v4171, %v4172
        %v4174 = vsel %vm3396, %v3199, -inf
        %v4175 = vrot.slane %v4174, 4
        %v4176 = vmax.f32 %v4174, %v4175
        %v4177 = vrot.slane %v4176, 2
        %v4178 = vmax.f32 %v4176, %v4177
        %v4179 = vrot.slane %v4178, 1
        %v4180 = vmax.f32 %v4178, %v4179
        %v4181 = vsel %vm3396, %v3207, -inf
        %v4182 = vrot.slane %v4181, 4
        %v4183 = vmax.f32 %v4181, %v4182
        %v4184 = vrot.slane %v4183, 2
        %v4185 = vmax.f32 %v4183, %v4184
        %v4186 = vrot.slane %v4185, 1
        %v4187 = vmax.f32 %v4185, %v4186
        %v4188 = vsel %vm3396, %v3215, -inf
        %v4189 = vrot.slane %v4188, 4
        %v4190 = vmax.f32 %v4188, %v4189
        %v4191 = vrot.slane %v4190, 2
        %v4192 = vmax.f32 %v4190, %v4191
        %v4193 = vrot.slane %v4192, 1
        %v4194 = vmax.f32 %v4192, %v4193
        %v4195 = vsel %vm3396, %v3214, -inf
        %v4196 = vrot.slane %v4195, 4
        %v4197 = vmax.f32 %v4195, %v4196
        %v4198 = vrot.slane %v4197, 2
        %v4199 = vmax.f32 %v4197, %v4198
        %v4200 = vrot.slane %v4199, 1
        %v4201 = vmax.f32 %v4199, %v4200
        %v4202 = vsel %vm3396, %v3216, -inf
        %v4203 = vrot.slane %v4202, 4
        %v4204 = vmax.f32 %v4202, %v4203
        %v4205 = vrot.slane %v4204, 2
        %v4206 = vmax.f32 %v4204, %v4205
        %v4207 = vrot.slane %v4206, 1
        %v4208 = vmax.f32 %v4206, %v4207
        %v4209 = vsel %vm3396, %v3224, -inf
        %v4210 = vrot.slane %v4209, 4
        %v4211 = vmax.f32 %v4209, %v4210
        %v4212 = vrot.slane %v4211, 2
        %v4213 = vmax.f32 %v4211, %v4212
        %v4214 = vrot.slane %v4213, 1
        %v4215 = vmax.f32 %v4213, %v4214
        %v4216 = vsel %vm3396, %v3232, -inf
        %v4217 = vrot.slane %v4216, 4
        %v4218 = vmax.f32 %v4216, %v4217
        %v4219 = vrot.slane %v4218, 2
        %v4220 = vmax.f32 %v4218, %v4219
        %v4221 = vrot.slane %v4220, 1
        %v4222 = vmax.f32 %v4220, %v4221
        %v4223 = vsel %vm3396, %v3231, -inf
        %v4224 = vrot.slane %v4223, 4
        %v4225 = vmax.f32 %v4223, %v4224
        %v4226 = vrot.slane %v4225, 2
        %v4227 = vmax.f32 %v4225, %v4226
        %v4228 = vrot.slane %v4227, 1
        %v4229 = vmax.f32 %v4227, %v4228
        %v4230 = vsel %vm3396, %v3233, -inf
        %v4231 = vrot.slane %v4230, 4
        %v4232 = vmax.f32 %v4230, %v4231
        %v4233 = vrot.slane %v4232, 2
        %v4234 = vmax.f32 %v4232, %v4233
        %v4235 = vrot.slane %v4234, 1
        %v4236 = vmax.f32 %v4234, %v4235
        %v4237 = vsel %vm3396, %v3241, -inf
        %v4238 = vrot.slane %v4237, 4
        %v4239 = vmax.f32 %v4237, %v4238
        %v4240 = vrot.slane %v4239, 2
        %v4241 = vmax.f32 %v4239, %v4240
        %v4242 = vrot.slane %v4241, 1
        %v4243 = vmax.f32 %v4241, %v4242
        %v4244 = vsel %vm3396, %v3249, -inf
        %v4245 = vrot.slane %v4244, 4
        %v4246 = vmax.f32 %v4244, %v4245
        %v4247 = vrot.slane %v4246, 2
        %v4248 = vmax.f32 %v4246, %v4247
        %v4249 = vrot.slane %v4248, 1
        %v4250 = vmax.f32 %v4248, %v4249
        %v4251 = vsel %vm3396, %v3248, -inf
        %v4252 = vrot.slane %v4251, 4
        %v4253 = vmax.f32 %v4251, %v4252
        %v4254 = vrot.slane %v4253, 2
        %v4255 = vmax.f32 %v4253, %v4254
        %v4256 = vrot.slane %v4255, 1
        %v4257 = vmax.f32 %v4255, %v4256
        %v4258 = vsel %vm3396, %v3250, -inf
        %v4259 = vrot.slane %v4258, 4
        %v4260 = vmax.f32 %v4258, %v4259
        %v4261 = vrot.slane %v4260, 2
        %v4262 = vmax.f32 %v4260, %v4261
        %v4263 = vrot.slane %v4262, 1
        %v4264 = vmax.f32 %v4262, %v4263
        %v4265 = vsel %vm3396, %v3258, -inf
        %v4266 = vrot.slane %v4265, 4
        %v4267 = vmax.f32 %v4265, %v4266
        %v4268 = vrot.slane %v4267, 2
        %v4269 = vmax.f32 %v4267, %v4268
        %v4270 = vrot.slane %v4269, 1
        %v4271 = vmax.f32 %v4269, %v4270
        %v4272 = vsel %vm3396, %v3266, -inf
        %v4273 = vrot.slane %v4272, 4
        %v4274 = vmax.f32 %v4272, %v4273
        %v4275 = vrot.slane %v4274, 2
        %v4276 = vmax.f32 %v4274, %v4275
        %v4277 = vrot.slane %v4276, 1
        %v4278 = vmax.f32 %v4276, %v4277
        %v4279 = vsel %vm3396, %v3265, -inf
        %v4280 = vrot.slane %v4279, 4
        %v4281 = vmax.f32 %v4279, %v4280
        %v4282 = vrot.slane %v4281, 2
        %v4283 = vmax.f32 %v4281, %v4282
        %v4284 = vrot.slane %v4283, 1
        %v4285 = vmax.f32 %v4283, %v4284
        %v4286 = vsel %vm3396, %v3267, -inf
        %v4287 = vrot.slane %v4286, 4
        %v4288 = vmax.f32 %v4286, %v4287
        %v4289 = vrot.slane %v4288, 2
        %v4290 = vmax.f32 %v4288, %v4289
        %v4291 = vrot.slane %v4290, 1
        %v4292 = vmax.f32 %v4290, %v4291
        %vm4293 = vcmask 64512
        %v4294 = vsel %vm4293, %v3403, -inf
        %v4295 = vsel %vm4293, %v3459, -inf
        %v4296 = vmax.f32 %v4294, %v4295
        %v4297 = vsel %vm4293, %v3410, -inf
        %v4298 = vsel %vm4293, %v3466, -inf
        %v4299 = vmax.f32 %v4297, %v4298
        %v4300 = vsel %vm4293, %v3417, -inf
        %v4301 = vsel %vm4293, %v3473, -inf
        %v4302 = vmax.f32 %v4300, %v4301
        %v4303 = vsel %vm4293, %v3424, -inf
        %v4304 = vsel %vm4293, %v3480, -inf
        %v4305 = vmax.f32 %v4303, %v4304
        %v4306 = vsel %vm4293, %v3431, -inf
        %v4307 = vsel %vm4293, %v3487, -inf
        %v4308 = vmax.f32 %v4306, %v4307
        %v4309 = vsel %vm4293, %v3438, -inf
        %v4310 = vsel %vm4293, %v3494, -inf
        %v4311 = vmax.f32 %v4309, %v4310
        %v4312 = vsel %vm4293, %v3445, -inf
        %v4313 = vsel %vm4293, %v3501, -inf
        %v4314 = vmax.f32 %v4312, %v4313
        %v4315 = vsel %vm4293, %v3452, -inf
        %v4316 = vsel %vm4293, %v3508, -inf
        %v4317 = vmax.f32 %v4315, %v4316
        %v4318 = vsel %vm4293, %v3515, -inf
        %v4319 = vsel %vm4293, %v3571, -inf
        %v4320 = vmax.f32 %v4318, %v4319
        %v4321 = vsel %vm4293, %v3522, -inf
        %v4322 = vsel %vm4293, %v3578, -inf
        %v4323 = vmax.f32 %v4321, %v4322
        %v4324 = vsel %vm4293, %v3529, -inf
        %v4325 = vsel %vm4293, %v3585, -inf
        %v4326 = vmax.f32 %v4324, %v4325
        %v4327 = vsel %vm4293, %v3536, -inf
        %v4328 = vsel %vm4293, %v3592, -inf
        %v4329 = vmax.f32 %v4327, %v4328
        %v4330 = vsel %vm4293, %v3543, -inf
        %v4331 = vsel %vm4293, %v3599, -inf
        %v4332 = vmax.f32 %v4330, %v4331
        %v4333 = vsel %vm4293, %v3550, -inf
        %v4334 = vsel %vm4293, %v3606, -inf
        %v4335 = vmax.f32 %v4333, %v4334
        %v4336 = vsel %vm4293, %v3557, -inf
        %v4337 = vsel %vm4293, %v3613, -inf
        %v4338 = vmax.f32 %v4336, %v4337
        %v4339 = vsel %vm4293, %v3564, -inf
        %v4340 = vsel %vm4293, %v3620, -inf
        %v4341 = vmax.f32 %v4339, %v4340
        %v4342 = vsel %vm4293, %v3627, -inf
        %v4343 = vsel %vm4293, %v3683, -inf
        %v4344 = vmax.f32 %v4342, %v4343
        %v4345 = vsel %vm4293, %v3634, -inf
        %v4346 = vsel %vm4293, %v3690, -inf
        %v4347 = vmax.f32 %v4345, %v4346
        %v4348 = vsel %vm4293, %v3641, -inf
        %v4349 = vsel %vm4293, %v3697, -inf
        %v4350 = vmax.f32 %v4348, %v4349
        %v4351 = vsel %vm4293, %v3648, -inf
        %v4352 = vsel %vm4293, %v3704, -inf
        %v4353 = vmax.f32 %v4351, %v4352
        %v4354 = vsel %vm4293, %v3655, -inf
        %v4355 = vsel %vm4293, %v3711, -inf
        %v4356 = vmax.f32 %v4354, %v4355
        %v4357 = vsel %vm4293, %v3662, -inf
        %v4358 = vsel %vm4293, %v3718, -inf
        %v4359 = vmax.f32 %v4357, %v4358
        %v4360 = vsel %vm4293, %v3669, -inf
        %v4361 = vsel %vm4293, %v3725, -inf
        %v4362 = vmax.f32 %v4360, %v4361
        %v4363 = vsel %vm4293, %v3676, -inf
        %v4364 = vsel %vm4293, %v3732, -inf
        %v4365 = vmax.f32 %v4363, %v4364
        %v4366 = vsel %vm4293, %v3739, -inf
        %v4367 = vsel %vm4293, %v3795, -inf
        %v4368 = vmax.f32 %v4366, %v4367
        %v4369 = vsel %vm4293, %v3746, -inf
        %v4370 = vsel %vm4293, %v3802, -inf
        %v4371 = vmax.f32 %v4369, %v4370
        %v4372 = vsel %vm4293, %v3753, -inf
        %v4373 = vsel %vm4293, %v3809, -inf
        %v4374 = vmax.f32 %v4372, %v4373
        %v4375 = vsel %vm4293, %v3760, -inf
        %v4376 = vsel %vm4293, %v3816, -inf
        %v4377 = vmax.f32 %v4375, %v4376
        %v4378 = vsel %vm4293, %v3767, -inf
        %v4379 = vsel %vm4293, %v3823, -inf
        %v4380 = vmax.f32 %v4378, %v4379
        %v4381 = vsel %vm4293, %v3774, -inf
        %v4382 = vsel %vm4293, %v3830, -inf
        %v4383 = vmax.f32 %v4381, %v4382
        %v4384 = vsel %vm4293, %v3781, -inf
        %v4385 = vsel %vm4293, %v3837, -inf
        %v4386 = vmax.f32 %v4384, %v4385
        %v4387 = vsel %vm4293, %v3788, -inf
        %v4388 = vsel %vm4293, %v3844, -inf
        %v4389 = vmax.f32 %v4387, %v4388
        %v4390 = vsel %vm4293, %v3851, -inf
        %v4391 = vsel %vm4293, %v3907, -inf
        %v4392 = vmax.f32 %v4390, %v4391
        %v4393 = vsel %vm4293, %v3858, -inf
        %v4394 = vsel %vm4293, %v3914, -inf
        %v4395 = vmax.f32 %v4393, %v4394
        %v4396 = vsel %vm4293, %v3865, -inf
        %v4397 = vsel %vm4293, %v3921, -inf
        %v4398 = vmax.f32 %v4396, %v4397
        %v4399 = vsel %vm4293, %v3872, -inf
        %v4400 = vsel %vm4293, %v3928, -inf
        %v4401 = vmax.f32 %v4399, %v4400
        %v4402 = vsel %vm4293, %v3879, -inf
        %v4403 = vsel %vm4293, %v3935, -inf
        %v4404 = vmax.f32 %v4402, %v4403
        %v4405 = vsel %vm4293, %v3886, -inf
        %v4406 = vsel %vm4293, %v3942, -inf
        %v4407 = vmax.f32 %v4405, %v4406
        %v4408 = vsel %vm4293, %v3893, -inf
        %v4409 = vsel %vm4293, %v3949, -inf
        %v4410 = vmax.f32 %v4408, %v4409
        %v4411 = vsel %vm4293, %v3900, -inf
        %v4412 = vsel %vm4293, %v3956, -inf
        %v4413 = vmax.f32 %v4411, %v4412
        %v4414 = vsel %vm4293, %v3963, -inf
        %v4415 = vsel %vm4293, %v4019, -inf
        %v4416 = vmax.f32 %v4414, %v4415
        %v4417 = vsel %vm4293, %v3970, -inf
        %v4418 = vsel %vm4293, %v4026, -inf
        %v4419 = vmax.f32 %v4417, %v4418
        %v4420 = vsel %vm4293, %v3977, -inf
        %v4421 = vsel %vm4293, %v4033, -inf
        %v4422 = vmax.f32 %v4420, %v4421
        %v4423 = vsel %vm4293, %v3984, -inf
        %v4424 = vsel %vm4293, %v4040, -inf
        %v4425 = vmax.f32 %v4423, %v4424
        %v4426 = vsel %vm4293, %v3991, -inf
        %v4427 = vsel %vm4293, %v4047, -inf
        %v4428 = vmax.f32 %v4426, %v4427
        %v4429 = vsel %vm4293, %v3998, -inf
        %v4430 = vsel %vm4293, %v4054, -inf
        %v4431 = vmax.f32 %v4429, %v4430
        %v4432 = vsel %vm4293, %v4005, -inf
        %v4433 = vsel %vm4293, %v4061, -inf
        %v4434 = vmax.f32 %v4432, %v4433
        %v4435 = vsel %vm4293, %v4012, -inf
        %v4436 = vsel %vm4293, %v4068, -inf
        %v4437 = vmax.f32 %v4435, %v4436
        %v4438 = vsel %vm4293, %v4075, -inf
        %v4439 = vsel %vm4293, %v4131, -inf
        %v4440 = vmax.f32 %v4438, %v4439
        %v4441 = vsel %vm4293, %v4082, -inf
        %v4442 = vsel %vm4293, %v4138, -inf
        %v4443 = vmax.f32 %v4441, %v4442
        %v4444 = vsel %vm4293, %v4089, -inf
        %v4445 = vsel %vm4293, %v4145, -inf
        %v4446 = vmax.f32 %v4444, %v4445
        %v4447 = vsel %vm4293, %v4096, -inf
        %v4448 = vsel %vm4293, %v4152, -inf
        %v4449 = vmax.f32 %v4447, %v4448
        %v4450 = vsel %vm4293, %v4103, -inf
        %v4451 = vsel %vm4293, %v4159, -inf
        %v4452 = vmax.f32 %v4450, %v4451
        %v4453 = vsel %vm4293, %v4110, -inf
        %v4454 = vsel %vm4293, %v4166, -inf
        %v4455 = vmax.f32 %v4453, %v4454
        %v4456 = vsel %vm4293, %v4117, -inf
        %v4457 = vsel %vm4293, %v4173, -inf
        %v4458 = vmax.f32 %v4456, %v4457
        %v4459 = vsel %vm4293, %v4124, -inf
        %v4460 = vsel %vm4293, %v4180, -inf
        %v4461 = vmax.f32 %v4459, %v4460
        %v4462 = vsel %vm4293, %v4187, -inf
        %v4463 = vsel %vm4293, %v4243, -inf
        %v4464 = vmax.f32 %v4462, %v4463
        %v4465 = vsel %vm4293, %v4194, -inf
        %v4466 = vsel %vm4293, %v4250, -inf
        %v4467 = vmax.f32 %v4465, %v4466
        %v4468 = vsel %vm4293, %v4201, -inf
        %v4469 = vsel %vm4293, %v4257, -inf
        %v4470 = vmax.f32 %v4468, %v4469
        %v4471 = vsel %vm4293, %v4208, -inf
        %v4472 = vsel %vm4293, %v4264, -inf
        %v4473 = vmax.f32 %v4471, %v4472
        %v4474 = vsel %vm4293, %v4215, -inf
        %v4475 = vsel %vm4293, %v4271, -inf
        %v4476 = vmax.f32 %v4474, %v4475
        %v4477 = vsel %vm4293, %v4222, -inf
        %v4478 = vsel %vm4293, %v4278, -inf
        %v4479 = vmax.f32 %v4477, %v4478
        %v4480 = vsel %vm4293, %v4229, -inf
        %v4481 = vsel %vm4293, %v4285, -inf
        %v4482 = vmax.f32 %v4480, %v4481
        %v4483 = vsel %vm4293, %v4236, -inf
        %v4484 = vsel %vm4293, %v4292, -inf
        %v4485 = vmax.f32 %v4483, %v4484
        %v4486 = vld [vmem:[%s4] sm:$0x1]
        %vm4551 = vcmask 1041409
        %v4552 = vsel %vm4551, %v4299, %v4296
        %vm4553 = vcmask 1042434
        %v4554 = vsel %vm4553, %v4302, %v4552
        %vm4555 = vcmask 1043459
        %v4556 = vsel %vm4555, %v4305, %v4554
        %vm4557 = vcmask 1044484
        %v4558 = vsel %vm4557, %v4308, %v4556
        %vm4559 = vcmask 1045509
        %v4560 = vsel %vm4559, %v4311, %v4558
        %vm4561 = vcmask 1046534
        %v4562 = vsel %vm4561, %v4314, %v4560
        %vm4563 = vcmask 1047559
        %v4564 = vsel %vm4563, %v4317, %v4562
        %v4565 = vsel %vm4551, %v4323, %v4320
        %v4566 = vsel %vm4553, %v4326, %v4565
        %v4567 = vsel %vm4555, %v4329, %v4566
        %v4568 = vsel %vm4557, %v4332, %v4567
        %v4569 = vsel %vm4559, %v4335, %v4568
        %v4570 = vsel %vm4561, %v4338, %v4569
        %v4571 = vsel %vm4563, %v4341, %v4570
        %v4572 = vsel %vm4551, %v4347, %v4344
        %v4573 = vsel %vm4553, %v4350, %v4572
        %v4574 = vsel %vm4555, %v4353, %v4573
        %v4575 = vsel %vm4557, %v4356, %v4574
        %v4576 = vsel %vm4559, %v4359, %v4575
        %v4577 = vsel %vm4561, %v4362, %v4576
        %v4578 = vsel %vm4563, %v4365, %v4577
        %v4579 = vsel %vm4551, %v4371, %v4368
        %v4580 = vsel %vm4553, %v4374, %v4579
        %v4581 = vsel %vm4555, %v4377, %v4580
        %v4582 = vsel %vm4557, %v4380, %v4581
        %v4583 = vsel %vm4559, %v4383, %v4582
        %v4584 = vsel %vm4561, %v4386, %v4583
        %v4585 = vsel %vm4563, %v4389, %v4584
        %v4586 = vsel %vm4551, %v4395, %v4392
        %v4587 = vsel %vm4553, %v4398, %v4586
        %v4588 = vsel %vm4555, %v4401, %v4587
        %v4589 = vsel %vm4557, %v4404, %v4588
        %v4590 = vsel %vm4559, %v4407, %v4589
        %v4591 = vsel %vm4561, %v4410, %v4590
        %v4592 = vsel %vm4563, %v4413, %v4591
        %v4593 = vsel %vm4551, %v4419, %v4416
        %v4594 = vsel %vm4553, %v4422, %v4593
        %v4595 = vsel %vm4555, %v4425, %v4594
        %v4596 = vsel %vm4557, %v4428, %v4595
        %v4597 = vsel %vm4559, %v4431, %v4596
        %v4598 = vsel %vm4561, %v4434, %v4597
        %v4599 = vsel %vm4563, %v4437, %v4598
        %v4600 = vsel %vm4551, %v4443, %v4440
        %v4601 = vsel %vm4553, %v4446, %v4600
        %v4602 = vsel %vm4555, %v4449, %v4601
        %v4603 = vsel %vm4557, %v4452, %v4602
        %v4604 = vsel %vm4559, %v4455, %v4603
        %v4605 = vsel %vm4561, %v4458, %v4604
        %v4606 = vsel %vm4563, %v4461, %v4605
        %v4607 = vsel %vm4551, %v4467, %v4464
        %v4608 = vsel %vm4553, %v4470, %v4607
        %v4609 = vsel %vm4555, %v4473, %v4608
        %v4610 = vsel %vm4557, %v4476, %v4609
        %v4611 = vsel %vm4559, %v4479, %v4610
        %v4612 = vsel %vm4561, %v4482, %v4611
        %v4613 = vsel %vm4563, %v4485, %v4612
        %v4614 = vrot.slane %v4564, 7
        %v4615 = vrot.slane %v4571, 7
        %v4616 = vrot.slane %v4578, 7
        %v4617 = vrot.slane %v4585, 7
        %v4618 = vrot.slane %v4592, 7
        %v4619 = vrot.slane %v4599, 7
        %v4620 = vrot.slane %v4606, 7
        %v4621 = vrot.slane %v4613, 7
        %v4630 = vsel %vm290, 0.0, %v4614
        %v4631 = vsel %vm290, 0.0, %v4615
        %v4632 = vsel %vm290, 0.0, %v4616
        %v4633 = vsel %vm290, 0.0, %v4617
        %v4634 = vsel %vm290, 0.0, %v4618
        %v4635 = vsel %vm290, 0.0, %v4619
        %v4636 = vsel %vm290, 0.0, %v4620
        %v4637 = vsel %vm290, 0.0, %v4621
        %v4638 = vsel %vm290, %v4614, 0.0
        %v4639 = vsel %vm290, %v4615, 0.0
        %v4640 = vsel %vm290, %v4616, 0.0
        %v4641 = vsel %vm290, %v4617, 0.0
        %v4642 = vsel %vm290, %v4618, 0.0
        %v4643 = vsel %vm290, %v4619, 0.0
        %v4644 = vsel %vm290, %v4620, 0.0
        %v4645 = vsel %vm290, %v4621, 0.0
        %v4646 = vpack.c.bf16 %v4630, %v391
        %v4647 = vpack.c.bf16 %v4632, %v4631
        %v4648 = vpack.c.bf16 %v4634, %v4633
        %v4649 = vpack.c.bf16 %v4636, %v4635
        %v4650 = vld [vmem:[%s3] sm:$0xf]
        %v4665 = vsel %vm474, %v475, %v478
        %v4666 = vrot.slane %v4630, 1
        %v4667 = vrot.slane %v4638, 1
        %v4668 = vsel %vm474, %v4666, %v4667
        %v4669 = vrot.slane %v4631, 1
        %v4670 = vrot.slane %v4639, 1
        %v4671 = vsel %vm474, %v4669, %v4670
        %v4672 = vrot.slane %v4632, 1
        %v4673 = vrot.slane %v4640, 1
        %v4674 = vsel %vm474, %v4672, %v4673
        %v4675 = vrot.slane %v4633, 1
        %v4676 = vrot.slane %v4641, 1
        %v4677 = vsel %vm474, %v4675, %v4676
        %v4678 = vrot.slane %v4634, 1
        %v4679 = vrot.slane %v4642, 1
        %v4680 = vsel %vm474, %v4678, %v4679
        %v4681 = vrot.slane %v4635, 1
        %v4682 = vrot.slane %v4643, 1
        %v4683 = vsel %vm474, %v4681, %v4682
        %v4684 = vrot.slane %v4636, 1
        %v4685 = vrot.slane %v4644, 1
        %v4686 = vsel %vm474, %v4684, %v4685
        %v4695 = vpack.c.bf16 %v4668, %v4665
        %v4696 = vpack.c.bf16 %v4674, %v4671
        %v4697 = vpack.c.bf16 %v4680, %v4677
        %v4698 = vpack.c.bf16 %v4686, %v4683
        %s4699 = scalar_lea.vmem %s3, 4
        %v4700 = vld [vmem:[%s4699] sm:$0xf]
        %v4702 = vsel %vm4293, %v4695, 0
        %v4705 = vsel %vm4293, %v4696, 0
        %v4708 = vsel %vm4293, %v4697, 0
        %v4711 = vsel %vm4293, %v4698, 0
        %vm4713 = vcmask 1043456
        %v4715 = vsel %vm4713, %v4700, 0
        %4717 = vmatprep.subr.bf16.mxu0 0
        %4718 = vmatpush1.bf16.msra.mxu0 %v4715
        %4719 = vmatprep.subr.bf16.mxu0 0
        %4720 = vmatpush1.bf16.msra.mxu0 0
        %4721 = vmatprep.subr.bf16.mxu0 0
        %4722 = vmatpush1.bf16.msra.mxu0 0
        %4723 = vmatprep.subr.bf16.mxu0 0
        %4724 = vmatpush1.bf16.msra.mxu0 0
        %4725 = vmatprep.subr.bf16.mxu0 0
        %4726 = vmatpush1.bf16.msra.mxu0 0
        %4727 = vmatprep.subr.bf16.mxu0 0
        %4728 = vmatpush1.bf16.msra.mxu0 0
        %4729 = vmatprep.subr.bf16.mxu0 0
        %4730 = vmatpush1.bf16.msra.mxu0 0
        %4731 = vmatprep.subr.bf16.mxu0 0
        %4732 = vmatpush1.bf16.msra.mxu0 0
        %4733 = vmatprep.subr.bf16.mxu0 0
        %4734 = vmatpush1.bf16.msra.mxu0 0
        %4735 = vmatprep.subr.bf16.mxu0 0
        %4736 = vmatpush1.bf16.msra.mxu0 0
        %4737 = vmatprep.subr.bf16.mxu0 0
        %4738 = vmatpush1.bf16.msra.mxu0 0
        %4739 = vmatprep.subr.bf16.mxu0 0
        %4740 = vmatpush1.bf16.msra.mxu0 0
        %4741 = vmatprep.subr.bf16.mxu0 0
        %4742 = vmatpush1.bf16.msra.mxu0 0
        %4743 = vmatprep.subr.bf16.mxu0 0
        %4744 = vmatpush1.bf16.msra.mxu0 0
        %4745 = vmatprep.subr.bf16.mxu0 0
        %4746 = vmatpush1.bf16.msra.mxu0 0
        %4747 = vmatprep.subr.bf16.mxu0 0
        %4748 = vmatpush1.bf16.msra.mxu0 0
        %4749 = vmatprep.mubr.bf16.mxu0 0
        %4750 = vmatmul.mubr.bf16.gmra.mrb[0].mxu0 %v4702
        %v4751 = vpop.f32.mrb[0].mxu0
        %v4752 = vadd.f32 0.0, %v4751
        %v4753 = vpop.f32.mrb[0].mxu0
        %v4754 = vpop.f32.mrb[0].mxu0
        %v4755 = vadd.f32 0.0, %v4754
        %v4756 = vpop.f32.mrb[0].mxu0
        %4757 = vmatprep.mubr.bf16.mxu0 0
        %4758 = vmatmul.mubr.bf16.gmra.mrb[0].mxu0 %v4705
        %v4759 = vpop.f32.mrb[0].mxu0
        %v4760 = vadd.f32 0.0, %v4759
        %v4761 = vpop.f32.mrb[0].mxu0
        %v4762 = vpop.f32.mrb[0].mxu0
        %v4763 = vadd.f32 0.0, %v4762
        %v4764 = vpop.f32.mrb[0].mxu0
        %4765 = vmatprep.mubr.bf16.mxu0 0
        %4766 = vmatmul.mubr.bf16.gmra.mrb[0].mxu0 %v4708
        %v4767 = vpop.f32.mrb[0].mxu0
        %v4768 = vadd.f32 0.0, %v4767
        %v4769 = vpop.f32.mrb[0].mxu0
        %v4770 = vpop.f32.mrb[0].mxu0
        %v4771 = vadd.f32 0.0, %v4770
        %v4772 = vpop.f32.mrb[0].mxu0
        %4773 = vmatprep.mubr.bf16.mxu0 0
        %4774 = vmatmul.mubr.bf16.gmra.mrb[0].mxu0 %v4711
        %v4775 = vpop.f32.mrb[0].mxu0
        %v4776 = vadd.f32 0.0, %v4775
        %v4777 = vpop.f32.mrb[0].mxu0
        %v4778 = vpop.f32.mrb[0].mxu0
        %v4779 = vadd.f32 0.0, %v4778
        %v4780 = vpop.f32.mrb[0].mxu0
        %4781 = vdwg.mxu0
        %v4783 = vsel %vm4293, %v4646, 0
        %v4786 = vsel %vm4293, %v4647, 0
        %v4789 = vsel %vm4293, %v4648, 0
        %v4792 = vsel %vm4293, %v4649, 0
        %v4795 = vsel %vm4713, %v4650, 0
        %4797 = vmatprep.subr.bf16.mxu0 0
        %4798 = vmatpush1.bf16.msra.mxu0 %v4795
        %4799 = vmatprep.subr.bf16.mxu0 0
        %4800 = vmatpush1.bf16.msra.mxu0 0
        %4801 = vmatprep.subr.bf16.mxu0 0
        %4802 = vmatpush1.bf16.msra.mxu0 0
        %4803 = vmatprep.subr.bf16.mxu0 0
        %4804 = vmatpush1.bf16.msra.mxu0 0
        %4805 = vmatprep.subr.bf16.mxu0 0
        %4806 = vmatpush1.bf16.msra.mxu0 0
        %4807 = vmatprep.subr.bf16.mxu0 0
        %4808 = vmatpush1.bf16.msra.mxu0 0
        %4809 = vmatprep.subr.bf16.mxu0 0
        %4810 = vmatpush1.bf16.msra.mxu0 0
        %4811 = vmatprep.subr.bf16.mxu0 0
        %4812 = vmatpush1.bf16.msra.mxu0 0
        %4813 = vmatprep.subr.bf16.mxu0 0
        %4814 = vmatpush1.bf16.msra.mxu0 0
        %4815 = vmatprep.subr.bf16.mxu0 0
        %4816 = vmatpush1.bf16.msra.mxu0 0
        %4817 = vmatprep.subr.bf16.mxu0 0
        %4818 = vmatpush1.bf16.msra.mxu0 0
        %4819 = vmatprep.subr.bf16.mxu0 0
        %4820 = vmatpush1.bf16.msra.mxu0 0
        %4821 = vmatprep.subr.bf16.mxu0 0
        %4822 = vmatpush1.bf16.msra.mxu0 0
        %4823 = vmatprep.subr.bf16.mxu0 0
        %4824 = vmatpush1.bf16.msra.mxu0 0
        %4825 = vmatprep.subr.bf16.mxu0 0
        %4826 = vmatpush1.bf16.msra.mxu0 0
        %4827 = vmatprep.subr.bf16.mxu0 0
        %4828 = vmatpush1.bf16.msra.mxu0 0
        %4829 = vmatprep.mubr.bf16.mxu0 0
        %4830 = vmatmul.mubr.bf16.gmra.mrb[0].mxu0 %v4783
        %v4831 = vpop.f32.mrb[0].mxu0
        %v4832 = vadd.f32 %v4752, %v4831
        %v4833 = vpop.f32.mrb[0].mxu0
        %v4834 = vpop.f32.mrb[0].mxu0
        %v4835 = vadd.f32 %v4755, %v4834
        %v4836 = vpop.f32.mrb[0].mxu0
        %4837 = vmatprep.mubr.bf16.mxu0 0
        %4838 = vmatmul.mubr.bf16.gmra.mrb[0].mxu0 %v4786
        %v4839 = vpop.f32.mrb[0].mxu0
        %v4840 = vadd.f32 %v4760, %v4839
        %v4841 = vpop.f32.mrb[0].mxu0
        %v4842 = vpop.f32.mrb[0].mxu0
        %v4843 = vadd.f32 %v4763, %v4842
        %v4844 = vpop.f32.mrb[0].mxu0
        %4845 = vmatprep.mubr.bf16.mxu0 0
        %4846 = vmatmul.mubr.bf16.gmra.mrb[0].mxu0 %v4789
        %v4847 = vpop.f32.mrb[0].mxu0
        %v4848 = vadd.f32 %v4768, %v4847
        %v4849 = vpop.f32.mrb[0].mxu0
        %v4850 = vpop.f32.mrb[0].mxu0
        %v4851 = vadd.f32 %v4771, %v4850
        %v4852 = vpop.f32.mrb[0].mxu0
        %4853 = vmatprep.mubr.bf16.mxu0 0
        %4854 = vmatmul.mubr.bf16.gmra.mrb[0].mxu0 %v4792
        %v4855 = vpop.f32.mrb[0].mxu0
        %v4856 = vadd.f32 %v4776, %v4855
        %v4857 = vpop.f32.mrb[0].mxu0
        %v4858 = vpop.f32.mrb[0].mxu0
        %v4859 = vadd.f32 %v4779, %v4858
        %v4860 = vpop.f32.mrb[0].mxu0
        %4861 = vdwg.mxu0
        %v4862 = vsel %vm1031, %v1032, %v1035
        %v4863 = vrot.slane %v4630, 2
        %v4864 = vrot.slane %v4638, 2
        %v4865 = vsel %vm1031, %v4863, %v4864
        %v4866 = vrot.slane %v4631, 2
        %v4867 = vrot.slane %v4639, 2
        %v4868 = vsel %vm1031, %v4866, %v4867
        %v4869 = vrot.slane %v4632, 2
        %v4870 = vrot.slane %v4640, 2
        %v4871 = vsel %vm1031, %v4869, %v4870
        %v4872 = vrot.slane %v4633, 2
        %v4873 = vrot.slane %v4641, 2
        %v4874 = vsel %vm1031, %v4872, %v4873
        %v4875 = vrot.slane %v4634, 2
        %v4876 = vrot.slane %v4642, 2
        %v4877 = vsel %vm1031, %v4875, %v4876
        %v4878 = vrot.slane %v4635, 2
        %v4879 = vrot.slane %v4643, 2
        %v4880 = vsel %vm1031, %v4878, %v4879
        %v4881 = vrot.slane %v4636, 2
        %v4882 = vrot.slane %v4644, 2
        %v4883 = vsel %vm1031, %v4881, %v4882
        %v4892 = vpack.c.bf16 %v4865, %v4862
        %v4893 = vpack.c.bf16 %v4871, %v4868
        %v4894 = vpack.c.bf16 %v4877, %v4874
        %v4895 = vpack.c.bf16 %v4883, %v4880
        %s4896 = scalar_lea.vmem %s3, 8
        %v4897 = vld [vmem:[%s4896] sm:$0xf]
        %v4899 = vsel %vm4293, %v4892, 0
        %v4902 = vsel %vm4293, %v4893, 0
        %v4905 = vsel %vm4293, %v4894, 0
        %v4908 = vsel %vm4293, %v4895, 0
        %v4911 = vsel %vm4713, %v4897, 0
        %4913 = vmatprep.subr.bf16.mxu0 0
        %4914 = vmatpush1.bf16.msra.mxu0 %v4911
        %4915 = vmatprep.subr.bf16.mxu0 0
        %4916 = vmatpush1.bf16.msra.mxu0 0
        %4917 = vmatprep.subr.bf16.mxu0 0
        %4918 = vmatpush1.bf16.msra.mxu0 0
        %4919 = vmatprep.subr.bf16.mxu0 0
        %4920 = vmatpush1.bf16.msra.mxu0 0
        %4921 = vmatprep.subr.bf16.mxu0 0
        %4922 = vmatpush1.bf16.msra.mxu0 0
        %4923 = vmatprep.subr.bf16.mxu0 0
        %4924 = vmatpush1.bf16.msra.mxu0 0
        %4925 = vmatprep.subr.bf16.mxu0 0
        %4926 = vmatpush1.bf16.msra.mxu0 0
        %4927 = vmatprep.subr.bf16.mxu0 0
        %4928 = vmatpush1.bf16.msra.mxu0 0
        %4929 = vmatprep.subr.bf16.mxu0 0
        %4930 = vmatpush1.bf16.msra.mxu0 0
        %4931 = vmatprep.subr.bf16.mxu0 0
        %4932 = vmatpush1.bf16.msra.mxu0 0
        %4933 = vmatprep.subr.bf16.mxu0 0
        %4934 = vmatpush1.bf16.msra.mxu0 0
        %4935 = vmatprep.subr.bf16.mxu0 0
        %4936 = vmatpush1.bf16.msra.mxu0 0
        %4937 = vmatprep.subr.bf16.mxu0 0
        %4938 = vmatpush1.bf16.msra.mxu0 0
        %4939 = vmatprep.subr.bf16.mxu0 0
        %4940 = vmatpush1.bf16.msra.mxu0 0
        %4941 = vmatprep.subr.bf16.mxu0 0
        %4942 = vmatpush1.bf16.msra.mxu0 0
        %4943 = vmatprep.subr.bf16.mxu0 0
        %4944 = vmatpush1.bf16.msra.mxu0 0
        %4945 = vmatprep.mubr.bf16.mxu0 0
        %4946 = vmatmul.mubr.bf16.gmra.mrb[0].mxu0 %v4899
        %v4947 = vpop.f32.mrb[0].mxu0
        %v4948 = vadd.f32 0.0, %v4947
        %v4949 = vpop.f32.mrb[0].mxu0
        %v4950 = vpop.f32.mrb[0].mxu0
        %v4951 = vadd.f32 0.0, %v4950
        %v4952 = vpop.f32.mrb[0].mxu0
        %4953 = vmatprep.mubr.bf16.mxu0 0
        %4954 = vmatmul.mubr.bf16.gmra.mrb[0].mxu0 %v4902
        %v4955 = vpop.f32.mrb[0].mxu0
        %v4956 = vadd.f32 0.0, %v4955
        %v4957 = vpop.f32.mrb[0].mxu0
        %v4958 = vpop.f32.mrb[0].mxu0
        %v4959 = vadd.f32 0.0, %v4958
        %v4960 = vpop.f32.mrb[0].mxu0
        %4961 = vmatprep.mubr.bf16.mxu0 0
        %4962 = vmatmul.mubr.bf16.gmra.mrb[0].mxu0 %v4905
        %v4963 = vpop.f32.mrb[0].mxu0
        %v4964 = vadd.f32 0.0, %v4963
        %v4965 = vpop.f32.mrb[0].mxu0
        %v4966 = vpop.f32.mrb[0].mxu0
        %v4967 = vadd.f32 0.0, %v4966
        %v4968 = vpop.f32.mrb[0].mxu0
        %4969 = vmatprep.mubr.bf16.mxu0 0
        %4970 = vmatmul.mubr.bf16.gmra.mrb[0].mxu0 %v4908
        %v4971 = vpop.f32.mrb[0].mxu0
        %v4972 = vadd.f32 0.0, %v4971
        %v4973 = vpop.f32.mrb[0].mxu0
        %v4974 = vpop.f32.mrb[0].mxu0
        %v4975 = vadd.f32 0.0, %v4974
        %v4976 = vpop.f32.mrb[0].mxu0
        %4977 = vdwg.mxu0
        %v4978 = vadd.f32 %v4832, %v4948
        %v4979 = vadd.f32 %v4835, %v4951
        %v4980 = vadd.f32 %v4840, %v4956
        %v4981 = vadd.f32 %v4843, %v4959
        %v4982 = vadd.f32 %v4848, %v4964
        %v4983 = vadd.f32 %v4851, %v4967
        %v4984 = vadd.f32 %v4856, %v4972
        %v4985 = vadd.f32 %v4859, %v4975
        %v4986 = vpack.c.bf16 %v4631, %v4630
        %v4987 = vpack.c.bf16 %v4633, %v4632
        %v4988 = vpack.c.bf16 %v4635, %v4634
        %v4989 = vpack.c.bf16 %v4637, %v4636
        %s4990 = scalar_lea.vmem %s3, 12
        %v4991 = vld [vmem:[%s4990] sm:$0xf]
        %v4993 = vsel %vm4293, %v4986, 0
        %v4996 = vsel %vm4293, %v4987, 0
        %v4999 = vsel %vm4293, %v4988, 0
        %v5002 = vsel %vm4293, %v4989, 0
        %v5005 = vsel %vm4713, %v4991, 0
        %5007 = vmatprep.subr.bf16.mxu0 0
        %5008 = vmatpush1.bf16.msra.mxu0 %v5005
        %5009 = vmatprep.subr.bf16.mxu0 0
        %5010 = vmatpush1.bf16.msra.mxu0 0
        %5011 = vmatprep.subr.bf16.mxu0 0
        %5012 = vmatpush1.bf16.msra.mxu0 0
        %5013 = vmatprep.subr.bf16.mxu0 0
        %5014 = vmatpush1.bf16.msra.mxu0 0
        %5015 = vmatprep.subr.bf16.mxu0 0
        %5016 = vmatpush1.bf16.msra.mxu0 0
        %5017 = vmatprep.subr.bf16.mxu0 0
        %5018 = vmatpush1.bf16.msra.mxu0 0
        %5019 = vmatprep.subr.bf16.mxu0 0
        %5020 = vmatpush1.bf16.msra.mxu0 0
        %5021 = vmatprep.subr.bf16.mxu0 0
        %5022 = vmatpush1.bf16.msra.mxu0 0
        %5023 = vmatprep.subr.bf16.mxu0 0
        %5024 = vmatpush1.bf16.msra.mxu0 0
        %5025 = vmatprep.subr.bf16.mxu0 0
        %5026 = vmatpush1.bf16.msra.mxu0 0
        %5027 = vmatprep.subr.bf16.mxu0 0
        %5028 = vmatpush1.bf16.msra.mxu0 0
        %5029 = vmatprep.subr.bf16.mxu0 0
        %5030 = vmatpush1.bf16.msra.mxu0 0
        %5031 = vmatprep.subr.bf16.mxu0 0
        %5032 = vmatpush1.bf16.msra.mxu0 0
        %5033 = vmatprep.subr.bf16.mxu0 0
        %5034 = vmatpush1.bf16.msra.mxu0 0
        %5035 = vmatprep.subr.bf16.mxu0 0
        %5036 = vmatpush1.bf16.msra.mxu0 0
        %5037 = vmatprep.subr.bf16.mxu0 0
        %5038 = vmatpush1.bf16.msra.mxu0 0
        %5039 = vmatprep.mubr.bf16.mxu0 0
        %5040 = vmatmul.mubr.bf16.gmra.mrb[0].mxu0 %v4993
        %v5041 = vpop.f32.mrb[0].mxu0
        %v5042 = vadd.f32 0.0, %v5041
        %v5043 = vpop.f32.mrb[0].mxu0
        %v5044 = vpop.f32.mrb[0].mxu0
        %v5045 = vadd.f32 0.0, %v5044
        %v5046 = vpop.f32.mrb[0].mxu0
        %5047 = vmatprep.mubr.bf16.mxu0 0
        %5048 = vmatmul.mubr.bf16.gmra.mrb[0].mxu0 %v4996
        %v5049 = vpop.f32.mrb[0].mxu0
        %v5050 = vadd.f32 0.0, %v5049
        %v5051 = vpop.f32.mrb[0].mxu0
        %v5052 = vpop.f32.mrb[0].mxu0
        %v5053 = vadd.f32 0.0, %v5052
        %v5054 = vpop.f32.mrb[0].mxu0
        %5055 = vmatprep.mubr.bf16.mxu0 0
        %5056 = vmatmul.mubr.bf16.gmra.mrb[0].mxu0 %v4999
        %v5057 = vpop.f32.mrb[0].mxu0
        %v5058 = vadd.f32 0.0, %v5057
        %v5059 = vpop.f32.mrb[0].mxu0
        %v5060 = vpop.f32.mrb[0].mxu0
        %v5061 = vadd.f32 0.0, %v5060
        %v5062 = vpop.f32.mrb[0].mxu0
        %5063 = vmatprep.mubr.bf16.mxu0 0
        %5064 = vmatmul.mubr.bf16.gmra.mrb[0].mxu0 %v5002
        %v5065 = vpop.f32.mrb[0].mxu0
        %v5066 = vadd.f32 0.0, %v5065
        %v5067 = vpop.f32.mrb[0].mxu0
        %v5068 = vpop.f32.mrb[0].mxu0
        %v5069 = vadd.f32 0.0, %v5068
        %v5070 = vpop.f32.mrb[0].mxu0
        %5071 = vdwg.mxu0
        %v5072 = vadd.f32 %v4978, %v5042
        %v5073 = vadd.f32 %v4979, %v5045
        %v5074 = vadd.f32 %v4980, %v5050
        %v5075 = vadd.f32 %v4981, %v5053
        %v5076 = vadd.f32 %v4982, %v5058
        %v5077 = vadd.f32 %v4983, %v5061
        %v5078 = vadd.f32 %v4984, %v5066
        %v5079 = vadd.f32 %v4985, %v5069
        %v5082 = vrot.slane %v4637, 1
        %v5083 = vrot.slane %v4645, 1
        %v5084 = vsel %vm474, %v5082, %v5083
        %v5086 = vpack.c.bf16 %v4671, %v4668
        %v5087 = vpack.c.bf16 %v4677, %v4674
        %v5088 = vpack.c.bf16 %v4683, %v4680
        %v5089 = vpack.c.bf16 %v5084, %v4686
        %s5090 = scalar_lea.vmem %s3, 16
        %v5091 = vld [vmem:[%s5090] sm:$0xf]
        %v5093 = vsel %vm4293, %v5086, 0
        %v5096 = vsel %vm4293, %v5087, 0
        %v5099 = vsel %vm4293, %v5088, 0
        %v5102 = vsel %vm4293, %v5089, 0
        %v5105 = vsel %vm4713, %v5091, 0
        %5107 = vmatprep.subr.bf16.mxu0 0
        %5108 = vmatpush1.bf16.msra.mxu0 %v5105
        %5109 = vmatprep.subr.bf16.mxu0 0
        %5110 = vmatpush1.bf16.msra.mxu0 0
        %5111 = vmatprep.subr.bf16.mxu0 0
        %5112 = vmatpush1.bf16.msra.mxu0 0
        %5113 = vmatprep.subr.bf16.mxu0 0
        %5114 = vmatpush1.bf16.msra.mxu0 0
        %5115 = vmatprep.subr.bf16.mxu0 0
        %5116 = vmatpush1.bf16.msra.mxu0 0
        %5117 = vmatprep.subr.bf16.mxu0 0
        %5118 = vmatpush1.bf16.msra.mxu0 0
        %5119 = vmatprep.subr.bf16.mxu0 0
        %5120 = vmatpush1.bf16.msra.mxu0 0
        %5121 = vmatprep.subr.bf16.mxu0 0
        %5122 = vmatpush1.bf16.msra.mxu0 0
        %5123 = vmatprep.subr.bf16.mxu0 0
        %5124 = vmatpush1.bf16.msra.mxu0 0
        %5125 = vmatprep.subr.bf16.mxu0 0
        %5126 = vmatpush1.bf16.msra.mxu0 0
        %5127 = vmatprep.subr.bf16.mxu0 0
        %5128 = vmatpush1.bf16.msra.mxu0 0
        %5129 = vmatprep.subr.bf16.mxu0 0
        %5130 = vmatpush1.bf16.msra.mxu0 0
        %5131 = vmatprep.subr.bf16.mxu0 0
        %5132 = vmatpush1.bf16.msra.mxu0 0
        %5133 = vmatprep.subr.bf16.mxu0 0
        %5134 = vmatpush1.bf16.msra.mxu0 0
        %5135 = vmatprep.subr.bf16.mxu0 0
        %5136 = vmatpush1.bf16.msra.mxu0 0
        %5137 = vmatprep.subr.bf16.mxu0 0
        %5138 = vmatpush1.bf16.msra.mxu0 0
        %5139 = vmatprep.mubr.bf16.mxu0 0
        %5140 = vmatmul.mubr.bf16.gmra.mrb[0].mxu0 %v5093
        %v5141 = vpop.f32.mrb[0].mxu0
        %v5142 = vadd.f32 0.0, %v5141
        %v5143 = vpop.f32.mrb[0].mxu0
        %v5144 = vpop.f32.mrb[0].mxu0
        %v5145 = vadd.f32 0.0, %v5144
        %v5146 = vpop.f32.mrb[0].mxu0
        %5147 = vmatprep.mubr.bf16.mxu0 0
        %5148 = vmatmul.mubr.bf16.gmra.mrb[0].mxu0 %v5096
        %v5149 = vpop.f32.mrb[0].mxu0
        %v5150 = vadd.f32 0.0, %v5149
        %v5151 = vpop.f32.mrb[0].mxu0
        %v5152 = vpop.f32.mrb[0].mxu0
        %v5153 = vadd.f32 0.0, %v5152
        %v5154 = vpop.f32.mrb[0].mxu0
        %5155 = vmatprep.mubr.bf16.mxu0 0
        %5156 = vmatmul.mubr.bf16.gmra.mrb[0].mxu0 %v5099
        %v5157 = vpop.f32.mrb[0].mxu0
        %v5158 = vadd.f32 0.0, %v5157
        %v5159 = vpop.f32.mrb[0].mxu0
        %v5160 = vpop.f32.mrb[0].mxu0
        %v5161 = vadd.f32 0.0, %v5160
        %v5162 = vpop.f32.mrb[0].mxu0
        %5163 = vmatprep.mubr.bf16.mxu0 0
        %5164 = vmatmul.mubr.bf16.gmra.mrb[0].mxu0 %v5102
        %v5165 = vpop.f32.mrb[0].mxu0
        %v5166 = vadd.f32 0.0, %v5165
        %v5167 = vpop.f32.mrb[0].mxu0
        %v5168 = vpop.f32.mrb[0].mxu0
        %v5169 = vadd.f32 0.0, %v5168
        %v5170 = vpop.f32.mrb[0].mxu0
        %5171 = vdwg.mxu0
        %v5172 = vadd.f32 %v5072, %v5142
        %v5173 = vadd.f32 %v5073, %v5145
        %v5174 = vadd.f32 %v5074, %v5150
        %v5175 = vadd.f32 %v5075, %v5153
        %v5176 = vadd.f32 %v5076, %v5158
        %v5177 = vadd.f32 %v5077, %v5161
        %v5178 = vadd.f32 %v5078, %v5166
        %v5179 = vadd.f32 %v5079, %v5169
        %v5180 = vrot.slane %v4637, 2
        %v5181 = vrot.slane %v4645, 2
        %v5182 = vsel %vm1031, %v5180, %v5181
        %v5184 = vpack.c.bf16 %v4868, %v4865
        %v5185 = vpack.c.bf16 %v4874, %v4871
        %v5186 = vpack.c.bf16 %v4880, %v4877
        %v5187 = vpack.c.bf16 %v5182, %v4883
        %s5188 = scalar_lea.vmem %s3, 20
        %v5189 = vld [vmem:[%s5188] sm:$0xf]
        %v5191 = vsel %vm4293, %v5184, 0
        %v5194 = vsel %vm4293, %v5185, 0
        %v5197 = vsel %vm4293, %v5186, 0
        %v5200 = vsel %vm4293, %v5187, 0
        %v5203 = vsel %vm4713, %v5189, 0
        %5205 = vmatprep.subr.bf16.mxu0 0
        %5206 = vmatpush1.bf16.msra.mxu0 %v5203
        %5207 = vmatprep.subr.bf16.mxu0 0
        %5208 = vmatpush1.bf16.msra.mxu0 0
        %5209 = vmatprep.subr.bf16.mxu0 0
        %5210 = vmatpush1.bf16.msra.mxu0 0
        %5211 = vmatprep.subr.bf16.mxu0 0
        %5212 = vmatpush1.bf16.msra.mxu0 0
        %5213 = vmatprep.subr.bf16.mxu0 0
        %5214 = vmatpush1.bf16.msra.mxu0 0
        %5215 = vmatprep.subr.bf16.mxu0 0
        %5216 = vmatpush1.bf16.msra.mxu0 0
        %5217 = vmatprep.subr.bf16.mxu0 0
        %5218 = vmatpush1.bf16.msra.mxu0 0
        %5219 = vmatprep.subr.bf16.mxu0 0
        %5220 = vmatpush1.bf16.msra.mxu0 0
        %5221 = vmatprep.subr.bf16.mxu0 0
        %5222 = vmatpush1.bf16.msra.mxu0 0
        %5223 = vmatprep.subr.bf16.mxu0 0
        %5224 = vmatpush1.bf16.msra.mxu0 0
        %5225 = vmatprep.subr.bf16.mxu0 0
        %5226 = vmatpush1.bf16.msra.mxu0 0
        %5227 = vmatprep.subr.bf16.mxu0 0
        %5228 = vmatpush1.bf16.msra.mxu0 0
        %5229 = vmatprep.subr.bf16.mxu0 0
        %5230 = vmatpush1.bf16.msra.mxu0 0
        %5231 = vmatprep.subr.bf16.mxu0 0
        %5232 = vmatpush1.bf16.msra.mxu0 0
        %5233 = vmatprep.subr.bf16.mxu0 0
        %5234 = vmatpush1.bf16.msra.mxu0 0
        %5235 = vmatprep.subr.bf16.mxu0 0
        %5236 = vmatpush1.bf16.msra.mxu0 0
        %5237 = vmatprep.mubr.bf16.mxu0 0
        %5238 = vmatmul.mubr.bf16.gmra.mrb[0].mxu0 %v5191
        %v5239 = vpop.f32.mrb[0].mxu0
        %v5240 = vadd.f32 0.0, %v5239
        %v5241 = vpop.f32.mrb[0].mxu0
        %v5242 = vpop.f32.mrb[0].mxu0
        %v5243 = vadd.f32 0.0, %v5242
        %v5244 = vpop.f32.mrb[0].mxu0
        %5245 = vmatprep.mubr.bf16.mxu0 0
        %5246 = vmatmul.mubr.bf16.gmra.mrb[0].mxu0 %v5194
        %v5247 = vpop.f32.mrb[0].mxu0
        %v5248 = vadd.f32 0.0, %v5247
        %v5249 = vpop.f32.mrb[0].mxu0
        %v5250 = vpop.f32.mrb[0].mxu0
        %v5251 = vadd.f32 0.0, %v5250
        %v5252 = vpop.f32.mrb[0].mxu0
        %5253 = vmatprep.mubr.bf16.mxu0 0
        %5254 = vmatmul.mubr.bf16.gmra.mrb[0].mxu0 %v5197
        %v5255 = vpop.f32.mrb[0].mxu0
        %v5256 = vadd.f32 0.0, %v5255
        %v5257 = vpop.f32.mrb[0].mxu0
        %v5258 = vpop.f32.mrb[0].mxu0
        %v5259 = vadd.f32 0.0, %v5258
        %v5260 = vpop.f32.mrb[0].mxu0
        %5261 = vmatprep.mubr.bf16.mxu0 0
        %5262 = vmatmul.mubr.bf16.gmra.mrb[0].mxu0 %v5200
        %v5263 = vpop.f32.mrb[0].mxu0
        %v5264 = vadd.f32 0.0, %v5263
        %v5265 = vpop.f32.mrb[0].mxu0
        %v5266 = vpop.f32.mrb[0].mxu0
        %v5267 = vadd.f32 0.0, %v5266
        %v5268 = vpop.f32.mrb[0].mxu0
        %5269 = vdwg.mxu0
        %v5270 = vadd.f32 %v5172, %v5240
        %v5271 = vadd.f32 %v5173, %v5243
        %v5272 = vadd.f32 %v5174, %v5248
        %v5273 = vadd.f32 %v5175, %v5251
        %v5274 = vadd.f32 %v5176, %v5256
        %v5275 = vadd.f32 %v5177, %v5259
        %v5276 = vadd.f32 %v5178, %v5264
        %v5277 = vadd.f32 %v5179, %v5267
        %v5278 = vpack.c.bf16 %v391, %v4637
        %s5279 = scalar_lea.vmem %s3, 24
        %v5280 = vld [vmem:[%s5279] sm:$0xf]
        %v5282 = vsel %vm4293, %v5278, 0
        %v5285 = vsel %vm4713, %v5280, 0
        %5287 = vmatprep.subr.bf16.mxu0 0
        %5288 = vmatpush1.bf16.msra.mxu0 %v5285
        %5289 = vmatprep.subr.bf16.mxu0 0
        %5290 = vmatpush1.bf16.msra.mxu0 0
        %5291 = vmatprep.subr.bf16.mxu0 0
        %5292 = vmatpush1.bf16.msra.mxu0 0
        %5293 = vmatprep.subr.bf16.mxu0 0
        %5294 = vmatpush1.bf16.msra.mxu0 0
        %5295 = vmatprep.subr.bf16.mxu0 0
        %5296 = vmatpush1.bf16.msra.mxu0 0
        %5297 = vmatprep.subr.bf16.mxu0 0
        %5298 = vmatpush1.bf16.msra.mxu0 0
        %5299 = vmatprep.subr.bf16.mxu0 0
        %5300 = vmatpush1.bf16.msra.mxu0 0
        %5301 = vmatprep.subr.bf16.mxu0 0
        %5302 = vmatpush1.bf16.msra.mxu0 0
        %5303 = vmatprep.subr.bf16.mxu0 0
        %5304 = vmatpush1.bf16.msra.mxu0 0
        %5305 = vmatprep.subr.bf16.mxu0 0
        %5306 = vmatpush1.bf16.msra.mxu0 0
        %5307 = vmatprep.subr.bf16.mxu0 0
        %5308 = vmatpush1.bf16.msra.mxu0 0
        %5309 = vmatprep.subr.bf16.mxu0 0
        %5310 = vmatpush1.bf16.msra.mxu0 0
        %5311 = vmatprep.subr.bf16.mxu0 0
        %5312 = vmatpush1.bf16.msra.mxu0 0
        %5313 = vmatprep.subr.bf16.mxu0 0
        %5314 = vmatpush1.bf16.msra.mxu0 0
        %5315 = vmatprep.subr.bf16.mxu0 0
        %5316 = vmatpush1.bf16.msra.mxu0 0
        %5317 = vmatprep.subr.bf16.mxu0 0
        %5318 = vmatpush1.bf16.msra.mxu0 0
        %5319 = vmatprep.mubr.bf16.mxu0 0
        %5320 = vmatmul.mubr.bf16.gmra.mrb[0].mxu0 %v4786
        %v5321 = vpop.f32.mrb[0].mxu0
        %v5322 = vadd.f32 0.0, %v5321
        %v5323 = vpop.f32.mrb[0].mxu0
        %v5324 = vpop.f32.mrb[0].mxu0
        %v5325 = vadd.f32 0.0, %v5324
        %v5326 = vpop.f32.mrb[0].mxu0
        %5327 = vmatprep.mubr.bf16.mxu0 0
        %5328 = vmatmul.mubr.bf16.gmra.mrb[0].mxu0 %v4789
        %v5329 = vpop.f32.mrb[0].mxu0
        %v5330 = vadd.f32 0.0, %v5329
        %v5331 = vpop.f32.mrb[0].mxu0
        %v5332 = vpop.f32.mrb[0].mxu0
        %v5333 = vadd.f32 0.0, %v5332
        %v5334 = vpop.f32.mrb[0].mxu0
        %5335 = vmatprep.mubr.bf16.mxu0 0
        %5336 = vmatmul.mubr.bf16.gmra.mrb[0].mxu0 %v4792
        %v5337 = vpop.f32.mrb[0].mxu0
        %v5338 = vadd.f32 0.0, %v5337
        %v5339 = vpop.f32.mrb[0].mxu0
        %v5340 = vpop.f32.mrb[0].mxu0
        %v5341 = vadd.f32 0.0, %v5340
        %v5342 = vpop.f32.mrb[0].mxu0
        %5343 = vmatprep.mubr.bf16.mxu0 0
        %5344 = vmatmul.mubr.bf16.gmra.mrb[0].mxu0 %v5282
        %v5345 = vpop.f32.mrb[0].mxu0
        %v5346 = vadd.f32 0.0, %v5345
        %v5347 = vpop.f32.mrb[0].mxu0
        %v5348 = vpop.f32.mrb[0].mxu0
        %v5349 = vadd.f32 0.0, %v5348
        %v5350 = vpop.f32.mrb[0].mxu0
        %5351 = vdwg.mxu0
        %v5352 = vadd.f32 %v5270, %v5322
        %v5353 = vadd.f32 %v5271, %v5325
        %v5354 = vadd.f32 %v5272, %v5330
        %v5355 = vadd.f32 %v5273, %v5333
        %v5356 = vadd.f32 %v5274, %v5338
        %v5357 = vadd.f32 %v5275, %v5341
        %v5358 = vadd.f32 %v5276, %v5346
        %v5359 = vadd.f32 %v5277, %v5349
        %v5360 = vpack.c.bf16 %v4665, %v5084
        %s5361 = scalar_lea.vmem %s3, 28
        %v5362 = vld [vmem:[%s5361] sm:$0xf]
        %v5364 = vsel %vm4293, %v5360, 0
        %v5367 = vsel %vm4713, %v5362, 0
        %5369 = vmatprep.subr.bf16.mxu0 0
        %5370 = vmatpush1.bf16.msra.mxu0 %v5367
        %5371 = vmatprep.subr.bf16.mxu0 0
        %5372 = vmatpush1.bf16.msra.mxu0 0
        %5373 = vmatprep.subr.bf16.mxu0 0
        %5374 = vmatpush1.bf16.msra.mxu0 0
        %5375 = vmatprep.subr.bf16.mxu0 0
        %5376 = vmatpush1.bf16.msra.mxu0 0
        %5377 = vmatprep.subr.bf16.mxu0 0
        %5378 = vmatpush1.bf16.msra.mxu0 0
        %5379 = vmatprep.subr.bf16.mxu0 0
        %5380 = vmatpush1.bf16.msra.mxu0 0
        %5381 = vmatprep.subr.bf16.mxu0 0
        %5382 = vmatpush1.bf16.msra.mxu0 0
        %5383 = vmatprep.subr.bf16.mxu0 0
        %5384 = vmatpush1.bf16.msra.mxu0 0
        %5385 = vmatprep.subr.bf16.mxu0 0
        %5386 = vmatpush1.bf16.msra.mxu0 0
        %5387 = vmatprep.subr.bf16.mxu0 0
        %5388 = vmatpush1.bf16.msra.mxu0 0
        %5389 = vmatprep.subr.bf16.mxu0 0
        %5390 = vmatpush1.bf16.msra.mxu0 0
        %5391 = vmatprep.subr.bf16.mxu0 0
        %5392 = vmatpush1.bf16.msra.mxu0 0
        %5393 = vmatprep.subr.bf16.mxu0 0
        %5394 = vmatpush1.bf16.msra.mxu0 0
        %5395 = vmatprep.subr.bf16.mxu0 0
        %5396 = vmatpush1.bf16.msra.mxu0 0
        %5397 = vmatprep.subr.bf16.mxu0 0
        %5398 = vmatpush1.bf16.msra.mxu0 0
        %5399 = vmatprep.subr.bf16.mxu0 0
        %5400 = vmatpush1.bf16.msra.mxu0 0
        %5401 = vmatprep.mubr.bf16.mxu0 0
        %5402 = vmatmul.mubr.bf16.gmra.mrb[0].mxu0 %v4705
        %v5403 = vpop.f32.mrb[0].mxu0
        %v5404 = vadd.f32 0.0, %v5403
        %v5405 = vpop.f32.mrb[0].mxu0
        %v5406 = vpop.f32.mrb[0].mxu0
        %v5407 = vadd.f32 0.0, %v5406
        %v5408 = vpop.f32.mrb[0].mxu0
        %5409 = vmatprep.mubr.bf16.mxu0 0
        %5410 = vmatmul.mubr.bf16.gmra.mrb[0].mxu0 %v4708
        %v5411 = vpop.f32.mrb[0].mxu0
        %v5412 = vadd.f32 0.0, %v5411
        %v5413 = vpop.f32.mrb[0].mxu0
        %v5414 = vpop.f32.mrb[0].mxu0
        %v5415 = vadd.f32 0.0, %v5414
        %v5416 = vpop.f32.mrb[0].mxu0
        %5417 = vmatprep.mubr.bf16.mxu0 0
        %5418 = vmatmul.mubr.bf16.gmra.mrb[0].mxu0 %v4711
        %v5419 = vpop.f32.mrb[0].mxu0
        %v5420 = vadd.f32 0.0, %v5419
        %v5421 = vpop.f32.mrb[0].mxu0
        %v5422 = vpop.f32.mrb[0].mxu0
        %v5423 = vadd.f32 0.0, %v5422
        %v5424 = vpop.f32.mrb[0].mxu0
        %5425 = vmatprep.mubr.bf16.mxu0 0
        %5426 = vmatmul.mubr.bf16.gmra.mrb[0].mxu0 %v5364
        %v5427 = vpop.f32.mrb[0].mxu0
        %v5428 = vadd.f32 0.0, %v5427
        %v5429 = vpop.f32.mrb[0].mxu0
        %v5430 = vpop.f32.mrb[0].mxu0
        %v5431 = vadd.f32 0.0, %v5430
        %v5432 = vpop.f32.mrb[0].mxu0
        %5433 = vdwg.mxu0
        %v5434 = vadd.f32 %v5352, %v5404
        %v5435 = vadd.f32 %v5353, %v5407
        %v5436 = vadd.f32 %v5354, %v5412
        %v5437 = vadd.f32 %v5355, %v5415
        %v5438 = vadd.f32 %v5356, %v5420
        %v5439 = vadd.f32 %v5357, %v5423
        %v5440 = vadd.f32 %v5358, %v5428
        %v5441 = vadd.f32 %v5359, %v5431
        %v5442 = vpack.c.bf16 %v4862, %v5182
        %s5443 = scalar_lea.vmem %s3, 32
        %v5444 = vld [vmem:[%s5443] sm:$0xf]
        %v5446 = vsel %vm4293, %v5442, 0
        %v5449 = vsel %vm4713, %v5444, 0
        %5451 = vmatprep.subr.bf16.mxu0 0
        %5452 = vmatpush1.bf16.msra.mxu0 %v5449
        %5453 = vmatprep.subr.bf16.mxu0 0
        %5454 = vmatpush1.bf16.msra.mxu0 0
        %5455 = vmatprep.subr.bf16.mxu0 0
        %5456 = vmatpush1.bf16.msra.mxu0 0
        %5457 = vmatprep.subr.bf16.mxu0 0
        %5458 = vmatpush1.bf16.msra.mxu0 0
        %5459 = vmatprep.subr.bf16.mxu0 0
        %5460 = vmatpush1.bf16.msra.mxu0 0
        %5461 = vmatprep.subr.bf16.mxu0 0
        %5462 = vmatpush1.bf16.msra.mxu0 0
        %5463 = vmatprep.subr.bf16.mxu0 0
        %5464 = vmatpush1.bf16.msra.mxu0 0
        %5465 = vmatprep.subr.bf16.mxu0 0
        %5466 = vmatpush1.bf16.msra.mxu0 0
        %5467 = vmatprep.subr.bf16.mxu0 0
        %5468 = vmatpush1.bf16.msra.mxu0 0
        %5469 = vmatprep.subr.bf16.mxu0 0
        %5470 = vmatpush1.bf16.msra.mxu0 0
        %5471 = vmatprep.subr.bf16.mxu0 0
        %5472 = vmatpush1.bf16.msra.mxu0 0
        %5473 = vmatprep.subr.bf16.mxu0 0
        %5474 = vmatpush1.bf16.msra.mxu0 0
        %5475 = vmatprep.subr.bf16.mxu0 0
        %5476 = vmatpush1.bf16.msra.mxu0 0
        %5477 = vmatprep.subr.bf16.mxu0 0
        %5478 = vmatpush1.bf16.msra.mxu0 0
        %5479 = vmatprep.subr.bf16.mxu0 0
        %5480 = vmatpush1.bf16.msra.mxu0 0
        %5481 = vmatprep.subr.bf16.mxu0 0
        %5482 = vmatpush1.bf16.msra.mxu0 0
        %5483 = vmatprep.mubr.bf16.mxu0 0
        %5484 = vmatmul.mubr.bf16.gmra.mrb[0].mxu0 %v4902
        %v5485 = vpop.f32.mrb[0].mxu0
        %v5486 = vadd.f32 0.0, %v5485
        %v5487 = vpop.f32.mrb[0].mxu0
        %v5488 = vpop.f32.mrb[0].mxu0
        %v5489 = vadd.f32 0.0, %v5488
        %v5490 = vpop.f32.mrb[0].mxu0
        %5491 = vmatprep.mubr.bf16.mxu0 0
        %5492 = vmatmul.mubr.bf16.gmra.mrb[0].mxu0 %v4905
        %v5493 = vpop.f32.mrb[0].mxu0
        %v5494 = vadd.f32 0.0, %v5493
        %v5495 = vpop.f32.mrb[0].mxu0
        %v5496 = vpop.f32.mrb[0].mxu0
        %v5497 = vadd.f32 0.0, %v5496
        %v5498 = vpop.f32.mrb[0].mxu0
        %5499 = vmatprep.mubr.bf16.mxu0 0
        %5500 = vmatmul.mubr.bf16.gmra.mrb[0].mxu0 %v4908
        %v5501 = vpop.f32.mrb[0].mxu0
        %v5502 = vadd.f32 0.0, %v5501
        %v5503 = vpop.f32.mrb[0].mxu0
        %v5504 = vpop.f32.mrb[0].mxu0
        %v5505 = vadd.f32 0.0, %v5504
        %v5506 = vpop.f32.mrb[0].mxu0
        %5507 = vmatprep.mubr.bf16.mxu0 0
        %5508 = vmatmul.mubr.bf16.gmra.mrb[0].mxu0 %v5446
        %v5509 = vpop.f32.mrb[0].mxu0
        %v5510 = vadd.f32 0.0, %v5509
        %v5511 = vpop.f32.mrb[0].mxu0
        %v5512 = vpop.f32.mrb[0].mxu0
        %v5513 = vadd.f32 0.0, %v5512
        %v5514 = vpop.f32.mrb[0].mxu0
        %5515 = vdwg.mxu0
        %v5516 = vadd.f32 %v5434, %v5486
        %v5517 = vadd.f32 %v5435, %v5489
        %v5518 = vadd.f32 %v5436, %v5494
        %v5519 = vadd.f32 %v5437, %v5497
        %v5520 = vadd.f32 %v5438, %v5502
        %v5521 = vadd.f32 %v5439, %v5505
        %v5522 = vadd.f32 %v5440, %v5510
        %v5523 = vadd.f32 %v5441, %v5513
        %v5525 = vlaneseq
        %v5526 = vshrl.u32 %v5525, 7
        %v5527 = vsub.s32 0, %v5526
        %v5528 = vrot.slane %v4486, %v5527
        %v5530 = vadd.f32 %v5516, %v5528
        %v5531 = vadd.f32 %v5517, %v5528
        %v5532 = vadd.f32 %v5518, %v5528
        %v5533 = vadd.f32 %v5519, %v5528
        %v5534 = vadd.f32 %v5520, %v5528
        %v5535 = vadd.f32 %v5521, %v5528
        %v5536 = vadd.f32 %v5522, %v5528
        %v5537 = vadd.f32 %v5523, %v5528
        %v5538 = vmax.f32 %v5530, 0.0
        %v5539 = vmax.f32 %v5531, 0.0
        %v5540 = vmax.f32 %v5532, 0.0
        %v5541 = vmax.f32 %v5533, 0.0
        %v5542 = vmax.f32 %v5534, 0.0
        %v5543 = vmax.f32 %v5535, 0.0
        %v5544 = vmax.f32 %v5536, 0.0
        %v5545 = vmax.f32 %v5537, 0.0
        %v5554 = vcombine.high %v5538, %v5538
        %v5556 = vunpack.c.l.s4 1983009808
        %v5557 = vunpack.c.0.s8 %v5556
        %v5558 = vlaneseq
        %v5559 = vshrl.u32 %v5558, 7
        %v5560 = vsub.s32 %v5557, %v5559
        %v5561 = vrot.slane %v5538, %v5560
        %v5563 = vunpack.c.l.s4 1983009808
        %v5564 = vunpack.c.0.s8 %v5563
        %v5565 = vlaneseq
        %v5566 = vshrl.u32 %v5565, 7
        %v5567 = vsub.s32 %v5564, %v5566
        %v5568 = vrot.slane %v5554, %v5567
        %v5569 = vcombine.high %v5561, %v5561
        %v5570 = vcombine.high %v5568, %v5568
        %v5571 = vcombine.high %v5539, %v5539
        %v5573 = vunpack.c.l.s4 1983009808
        %v5574 = vunpack.c.0.s8 %v5573
        %v5575 = vlaneseq
        %v5576 = vshrl.u32 %v5575, 7
        %v5577 = vsub.s32 %v5574, %v5576
        %v5578 = vrot.slane %v5539, %v5577
        %v5580 = vunpack.c.l.s4 1983009808
        %v5581 = vunpack.c.0.s8 %v5580
        %v5582 = vlaneseq
        %v5583 = vshrl.u32 %v5582, 7
        %v5584 = vsub.s32 %v5581, %v5583
        %v5585 = vrot.slane %v5571, %v5584
        %v5586 = vcombine.high %v5578, %v5578
        %v5587 = vcombine.high %v5585, %v5585
        %v5588 = vcombine.high %v5540, %v5540
        %v5590 = vunpack.c.l.s4 1983009808
        %v5591 = vunpack.c.0.s8 %v5590
        %v5592 = vlaneseq
        %v5593 = vshrl.u32 %v5592, 7
        %v5594 = vsub.s32 %v5591, %v5593
        %v5595 = vrot.slane %v5540, %v5594
        %v5597 = vunpack.c.l.s4 1983009808
        %v5598 = vunpack.c.0.s8 %v5597
        %v5599 = vlaneseq
        %v5600 = vshrl.u32 %v5599, 7
        %v5601 = vsub.s32 %v5598, %v5600
        %v5602 = vrot.slane %v5588, %v5601
        %v5603 = vcombine.high %v5595, %v5595
        %v5604 = vcombine.high %v5602, %v5602
        %v5605 = vcombine.high %v5541, %v5541
        %v5607 = vunpack.c.l.s4 1983009808
        %v5608 = vunpack.c.0.s8 %v5607
        %v5609 = vlaneseq
        %v5610 = vshrl.u32 %v5609, 7
        %v5611 = vsub.s32 %v5608, %v5610
        %v5612 = vrot.slane %v5541, %v5611
        %v5614 = vunpack.c.l.s4 1983009808
        %v5615 = vunpack.c.0.s8 %v5614
        %v5616 = vlaneseq
        %v5617 = vshrl.u32 %v5616, 7
        %v5618 = vsub.s32 %v5615, %v5617
        %v5619 = vrot.slane %v5605, %v5618
        %v5620 = vcombine.high %v5612, %v5612
        %v5621 = vcombine.high %v5619, %v5619
        %v5622 = vcombine.high %v5542, %v5542
        %v5624 = vunpack.c.l.s4 1983009808
        %v5625 = vunpack.c.0.s8 %v5624
        %v5626 = vlaneseq
        %v5627 = vshrl.u32 %v5626, 7
        %v5628 = vsub.s32 %v5625, %v5627
        %v5629 = vrot.slane %v5542, %v5628
        %v5631 = vunpack.c.l.s4 1983009808
        %v5632 = vunpack.c.0.s8 %v5631
        %v5633 = vlaneseq
        %v5634 = vshrl.u32 %v5633, 7
        %v5635 = vsub.s32 %v5632, %v5634
        %v5636 = vrot.slane %v5622, %v5635
        %v5637 = vcombine.high %v5629, %v5629
        %v5638 = vcombine.high %v5636, %v5636
        %v5639 = vcombine.high %v5543, %v5543
        %v5641 = vunpack.c.l.s4 1983009808
        %v5642 = vunpack.c.0.s8 %v5641
        %v5643 = vlaneseq
        %v5644 = vshrl.u32 %v5643, 7
        %v5645 = vsub.s32 %v5642, %v5644
        %v5646 = vrot.slane %v5543, %v5645
        %v5648 = vunpack.c.l.s4 1983009808
        %v5649 = vunpack.c.0.s8 %v5648
        %v5650 = vlaneseq
        %v5651 = vshrl.u32 %v5650, 7
        %v5652 = vsub.s32 %v5649, %v5651
        %v5653 = vrot.slane %v5639, %v5652
        %v5654 = vcombine.high %v5646, %v5646
        %v5655 = vcombine.high %v5653, %v5653
        %v5656 = vcombine.high %v5544, %v5544
        %v5658 = vunpack.c.l.s4 1983009808
        %v5659 = vunpack.c.0.s8 %v5658
        %v5660 = vlaneseq
        %v5661 = vshrl.u32 %v5660, 7
        %v5662 = vsub.s32 %v5659, %v5661
        %v5663 = vrot.slane %v5544, %v5662
        %v5665 = vunpack.c.l.s4 1983009808
        %v5666 = vunpack.c.0.s8 %v5665
        %v5667 = vlaneseq
        %v5668 = vshrl.u32 %v5667, 7
        %v5669 = vsub.s32 %v5666, %v5668
        %v5670 = vrot.slane %v5656, %v5669
        %v5671 = vcombine.high %v5663, %v5663
        %v5672 = vcombine.high %v5670, %v5670
        %v5673 = vcombine.high %v5545, %v5545
        %v5675 = vunpack.c.l.s4 1983009808
        %v5676 = vunpack.c.0.s8 %v5675
        %v5677 = vlaneseq
        %v5678 = vshrl.u32 %v5677, 7
        %v5679 = vsub.s32 %v5676, %v5678
        %v5680 = vrot.slane %v5545, %v5679
        %v5682 = vunpack.c.l.s4 1983009808
        %v5683 = vunpack.c.0.s8 %v5682
        %v5684 = vlaneseq
        %v5685 = vshrl.u32 %v5684, 7
        %v5686 = vsub.s32 %v5683, %v5685
        %v5687 = vrot.slane %v5673, %v5686
        %v5688 = vcombine.high %v5680, %v5680
        %v5689 = vcombine.high %v5687, %v5687
        %v5722 = vsel %vm3396, %v5561, -inf
        %v5723 = vrot.slane %v5722, 4
        %v5724 = vmax.f32 %v5722, %v5723
        %v5725 = vrot.slane %v5724, 2
        %v5726 = vmax.f32 %v5724, %v5725
        %v5727 = vrot.slane %v5726, 1
        %v5728 = vmax.f32 %v5726, %v5727
        %v5729 = vsel %vm3396, %v5569, -inf
        %v5730 = vrot.slane %v5729, 4
        %v5731 = vmax.f32 %v5729, %v5730
        %v5732 = vrot.slane %v5731, 2
        %v5733 = vmax.f32 %v5731, %v5732
        %v5734 = vrot.slane %v5733, 1
        %v5735 = vmax.f32 %v5733, %v5734
        %v5736 = vsel %vm3396, %v5568, -inf
        %v5737 = vrot.slane %v5736, 4
        %v5738 = vmax.f32 %v5736, %v5737
        %v5739 = vrot.slane %v5738, 2
        %v5740 = vmax.f32 %v5738, %v5739
        %v5741 = vrot.slane %v5740, 1
        %v5742 = vmax.f32 %v5740, %v5741
        %v5743 = vsel %vm3396, %v5570, -inf
        %v5744 = vrot.slane %v5743, 4
        %v5745 = vmax.f32 %v5743, %v5744
        %v5746 = vrot.slane %v5745, 2
        %v5747 = vmax.f32 %v5745, %v5746
        %v5748 = vrot.slane %v5747, 1
        %v5749 = vmax.f32 %v5747, %v5748
        %v5750 = vsel %vm3396, %v5578, -inf
        %v5751 = vrot.slane %v5750, 4
        %v5752 = vmax.f32 %v5750, %v5751
        %v5753 = vrot.slane %v5752, 2
        %v5754 = vmax.f32 %v5752, %v5753
        %v5755 = vrot.slane %v5754, 1
        %v5756 = vmax.f32 %v5754, %v5755
        %v5757 = vsel %vm3396, %v5586, -inf
        %v5758 = vrot.slane %v5757, 4
        %v5759 = vmax.f32 %v5757, %v5758
        %v5760 = vrot.slane %v5759, 2
        %v5761 = vmax.f32 %v5759, %v5760
        %v5762 = vrot.slane %v5761, 1
        %v5763 = vmax.f32 %v5761, %v5762
        %v5764 = vsel %vm3396, %v5585, -inf
        %v5765 = vrot.slane %v5764, 4
        %v5766 = vmax.f32 %v5764, %v5765
        %v5767 = vrot.slane %v5766, 2
        %v5768 = vmax.f32 %v5766, %v5767
        %v5769 = vrot.slane %v5768, 1
        %v5770 = vmax.f32 %v5768, %v5769
        %v5771 = vsel %vm3396, %v5587, -inf
        %v5772 = vrot.slane %v5771, 4
        %v5773 = vmax.f32 %v5771, %v5772
        %v5774 = vrot.slane %v5773, 2
        %v5775 = vmax.f32 %v5773, %v5774
        %v5776 = vrot.slane %v5775, 1
        %v5777 = vmax.f32 %v5775, %v5776
        %v5778 = vsel %vm3396, %v5595, -inf
        %v5779 = vrot.slane %v5778, 4
        %v5780 = vmax.f32 %v5778, %v5779
        %v5781 = vrot.slane %v5780, 2
        %v5782 = vmax.f32 %v5780, %v5781
        %v5783 = vrot.slane %v5782, 1
        %v5784 = vmax.f32 %v5782, %v5783
        %v5785 = vsel %vm3396, %v5603, -inf
        %v5786 = vrot.slane %v5785, 4
        %v5787 = vmax.f32 %v5785, %v5786
        %v5788 = vrot.slane %v5787, 2
        %v5789 = vmax.f32 %v5787, %v5788
        %v5790 = vrot.slane %v5789, 1
        %v5791 = vmax.f32 %v5789, %v5790
        %v5792 = vsel %vm3396, %v5602, -inf
        %v5793 = vrot.slane %v5792, 4
        %v5794 = vmax.f32 %v5792, %v5793
        %v5795 = vrot.slane %v5794, 2
        %v5796 = vmax.f32 %v5794, %v5795
        %v5797 = vrot.slane %v5796, 1
        %v5798 = vmax.f32 %v5796, %v5797
        %v5799 = vsel %vm3396, %v5604, -inf
        %v5800 = vrot.slane %v5799, 4
        %v5801 = vmax.f32 %v5799, %v5800
        %v5802 = vrot.slane %v5801, 2
        %v5803 = vmax.f32 %v5801, %v5802
        %v5804 = vrot.slane %v5803, 1
        %v5805 = vmax.f32 %v5803, %v5804
        %v5806 = vsel %vm3396, %v5612, -inf
        %v5807 = vrot.slane %v5806, 4
        %v5808 = vmax.f32 %v5806, %v5807
        %v5809 = vrot.slane %v5808, 2
        %v5810 = vmax.f32 %v5808, %v5809
        %v5811 = vrot.slane %v5810, 1
        %v5812 = vmax.f32 %v5810, %v5811
        %v5813 = vsel %vm3396, %v5620, -inf
        %v5814 = vrot.slane %v5813, 4
        %v5815 = vmax.f32 %v5813, %v5814
        %v5816 = vrot.slane %v5815, 2
        %v5817 = vmax.f32 %v5815, %v5816
        %v5818 = vrot.slane %v5817, 1
        %v5819 = vmax.f32 %v5817, %v5818
        %v5820 = vsel %vm3396, %v5619, -inf
        %v5821 = vrot.slane %v5820, 4
        %v5822 = vmax.f32 %v5820, %v5821
        %v5823 = vrot.slane %v5822, 2
        %v5824 = vmax.f32 %v5822, %v5823
        %v5825 = vrot.slane %v5824, 1
        %v5826 = vmax.f32 %v5824, %v5825
        %v5827 = vsel %vm3396, %v5621, -inf
        %v5828 = vrot.slane %v5827, 4
        %v5829 = vmax.f32 %v5827, %v5828
        %v5830 = vrot.slane %v5829, 2
        %v5831 = vmax.f32 %v5829, %v5830
        %v5832 = vrot.slane %v5831, 1
        %v5833 = vmax.f32 %v5831, %v5832
        %v5834 = vsel %vm3396, %v5629, -inf
        %v5835 = vrot.slane %v5834, 4
        %v5836 = vmax.f32 %v5834, %v5835
        %v5837 = vrot.slane %v5836, 2
        %v5838 = vmax.f32 %v5836, %v5837
        %v5839 = vrot.slane %v5838, 1
        %v5840 = vmax.f32 %v5838, %v5839
        %v5841 = vsel %vm3396, %v5637, -inf
        %v5842 = vrot.slane %v5841, 4
        %v5843 = vmax.f32 %v5841, %v5842
        %v5844 = vrot.slane %v5843, 2
        %v5845 = vmax.f32 %v5843, %v5844
        %v5846 = vrot.slane %v5845, 1
        %v5847 = vmax.f32 %v5845, %v5846
        %v5848 = vsel %vm3396, %v5636, -inf
        %v5849 = vrot.slane %v5848, 4
        %v5850 = vmax.f32 %v5848, %v5849
        %v5851 = vrot.slane %v5850, 2
        %v5852 = vmax.f32 %v5850, %v5851
        %v5853 = vrot.slane %v5852, 1
        %v5854 = vmax.f32 %v5852, %v5853
        %v5855 = vsel %vm3396, %v5638, -inf
        %v5856 = vrot.slane %v5855, 4
        %v5857 = vmax.f32 %v5855, %v5856
        %v5858 = vrot.slane %v5857, 2
        %v5859 = vmax.f32 %v5857, %v5858
        %v5860 = vrot.slane %v5859, 1
        %v5861 = vmax.f32 %v5859, %v5860
        %v5862 = vsel %vm3396, %v5646, -inf
        %v5863 = vrot.slane %v5862, 4
        %v5864 = vmax.f32 %v5862, %v5863
        %v5865 = vrot.slane %v5864, 2
        %v5866 = vmax.f32 %v5864, %v5865
        %v5867 = vrot.slane %v5866, 1
        %v5868 = vmax.f32 %v5866, %v5867
        %v5869 = vsel %vm3396, %v5654, -inf
        %v5870 = vrot.slane %v5869, 4
        %v5871 = vmax.f32 %v5869, %v5870
        %v5872 = vrot.slane %v5871, 2
        %v5873 = vmax.f32 %v5871, %v5872
        %v5874 = vrot.slane %v5873, 1
        %v5875 = vmax.f32 %v5873, %v5874
        %v5876 = vsel %vm3396, %v5653, -inf
        %v5877 = vrot.slane %v5876, 4
        %v5878 = vmax.f32 %v5876, %v5877
        %v5879 = vrot.slane %v5878, 2
        %v5880 = vmax.f32 %v5878, %v5879
        %v5881 = vrot.slane %v5880, 1
        %v5882 = vmax.f32 %v5880, %v5881
        %v5883 = vsel %vm3396, %v5655, -inf
        %v5884 = vrot.slane %v5883, 4
        %v5885 = vmax.f32 %v5883, %v5884
        %v5886 = vrot.slane %v5885, 2
        %v5887 = vmax.f32 %v5885, %v5886
        %v5888 = vrot.slane %v5887, 1
        %v5889 = vmax.f32 %v5887, %v5888
        %v5890 = vsel %vm3396, %v5663, -inf
        %v5891 = vrot.slane %v5890, 4
        %v5892 = vmax.f32 %v5890, %v5891
        %v5893 = vrot.slane %v5892, 2
        %v5894 = vmax.f32 %v5892, %v5893
        %v5895 = vrot.slane %v5894, 1
        %v5896 = vmax.f32 %v5894, %v5895
        %v5897 = vsel %vm3396, %v5671, -inf
        %v5898 = vrot.slane %v5897, 4
        %v5899 = vmax.f32 %v5897, %v5898
        %v5900 = vrot.slane %v5899, 2
        %v5901 = vmax.f32 %v5899, %v5900
        %v5902 = vrot.slane %v5901, 1
        %v5903 = vmax.f32 %v5901, %v5902
        %v5904 = vsel %vm3396, %v5670, -inf
        %v5905 = vrot.slane %v5904, 4
        %v5906 = vmax.f32 %v5904, %v5905
        %v5907 = vrot.slane %v5906, 2
        %v5908 = vmax.f32 %v5906, %v5907
        %v5909 = vrot.slane %v5908, 1
        %v5910 = vmax.f32 %v5908, %v5909
        %v5911 = vsel %vm3396, %v5672, -inf
        %v5912 = vrot.slane %v5911, 4
        %v5913 = vmax.f32 %v5911, %v5912
        %v5914 = vrot.slane %v5913, 2
        %v5915 = vmax.f32 %v5913, %v5914
        %v5916 = vrot.slane %v5915, 1
        %v5917 = vmax.f32 %v5915, %v5916
        %v5918 = vsel %vm3396, %v5680, -inf
        %v5919 = vrot.slane %v5918, 4
        %v5920 = vmax.f32 %v5918, %v5919
        %v5921 = vrot.slane %v5920, 2
        %v5922 = vmax.f32 %v5920, %v5921
        %v5923 = vrot.slane %v5922, 1
        %v5924 = vmax.f32 %v5922, %v5923
        %v5925 = vsel %vm3396, %v5688, -inf
        %v5926 = vrot.slane %v5925, 4
        %v5927 = vmax.f32 %v5925, %v5926
        %v5928 = vrot.slane %v5927, 2
        %v5929 = vmax.f32 %v5927, %v5928
        %v5930 = vrot.slane %v5929, 1
        %v5931 = vmax.f32 %v5929, %v5930
        %v5932 = vsel %vm3396, %v5687, -inf
        %v5933 = vrot.slane %v5932, 4
        %v5934 = vmax.f32 %v5932, %v5933
        %v5935 = vrot.slane %v5934, 2
        %v5936 = vmax.f32 %v5934, %v5935
        %v5937 = vrot.slane %v5936, 1
        %v5938 = vmax.f32 %v5936, %v5937
        %v5939 = vsel %vm3396, %v5689, -inf
        %v5940 = vrot.slane %v5939, 4
        %v5941 = vmax.f32 %v5939, %v5940
        %v5942 = vrot.slane %v5941, 2
        %v5943 = vmax.f32 %v5941, %v5942
        %v5944 = vrot.slane %v5943, 1
        %v5945 = vmax.f32 %v5943, %v5944
        %v5946 = vsel %vm4293, %v5728, -inf
        %v5947 = vsel %vm4293, %v5756, -inf
        %v5948 = vmax.f32 %v5946, %v5947
        %v5949 = vsel %vm4293, %v5735, -inf
        %v5950 = vsel %vm4293, %v5763, -inf
        %v5951 = vmax.f32 %v5949, %v5950
        %v5952 = vsel %vm4293, %v5742, -inf
        %v5953 = vsel %vm4293, %v5770, -inf
        %v5954 = vmax.f32 %v5952, %v5953
        %v5955 = vsel %vm4293, %v5749, -inf
        %v5956 = vsel %vm4293, %v5777, -inf
        %v5957 = vmax.f32 %v5955, %v5956
        %v5958 = vsel %vm4293, %v5784, -inf
        %v5959 = vsel %vm4293, %v5812, -inf
        %v5960 = vmax.f32 %v5958, %v5959
        %v5961 = vsel %vm4293, %v5791, -inf
        %v5962 = vsel %vm4293, %v5819, -inf
        %v5963 = vmax.f32 %v5961, %v5962
        %v5964 = vsel %vm4293, %v5798, -inf
        %v5965 = vsel %vm4293, %v5826, -inf
        %v5966 = vmax.f32 %v5964, %v5965
        %v5967 = vsel %vm4293, %v5805, -inf
        %v5968 = vsel %vm4293, %v5833, -inf
        %v5969 = vmax.f32 %v5967, %v5968
        %v5970 = vsel %vm4293, %v5840, -inf
        %v5971 = vsel %vm4293, %v5868, -inf
        %v5972 = vmax.f32 %v5970, %v5971
        %v5973 = vsel %vm4293, %v5847, -inf
        %v5974 = vsel %vm4293, %v5875, -inf
        %v5975 = vmax.f32 %v5973, %v5974
        %v5976 = vsel %vm4293, %v5854, -inf
        %v5977 = vsel %vm4293, %v5882, -inf
        %v5978 = vmax.f32 %v5976, %v5977
        %v5979 = vsel %vm4293, %v5861, -inf
        %v5980 = vsel %vm4293, %v5889, -inf
        %v5981 = vmax.f32 %v5979, %v5980
        %v5982 = vsel %vm4293, %v5896, -inf
        %v5983 = vsel %vm4293, %v5924, -inf
        %v5984 = vmax.f32 %v5982, %v5983
        %v5985 = vsel %vm4293, %v5903, -inf
        %v5986 = vsel %vm4293, %v5931, -inf
        %v5987 = vmax.f32 %v5985, %v5986
        %v5988 = vsel %vm4293, %v5910, -inf
        %v5989 = vsel %vm4293, %v5938, -inf
        %v5990 = vmax.f32 %v5988, %v5989
        %v5991 = vsel %vm4293, %v5917, -inf
        %v5992 = vsel %vm4293, %v5945, -inf
        %v5993 = vmax.f32 %v5991, %v5992
        %v6010 = vsel %vm4551, %v5951, %v5948
        %v6011 = vsel %vm4553, %v5954, %v6010
        %v6012 = vsel %vm4555, %v5957, %v6011
        %v6013 = vsel %vm4551, %v5963, %v5960
        %v6014 = vsel %vm4553, %v5966, %v6013
        %v6015 = vsel %vm4555, %v5969, %v6014
        %v6016 = vsel %vm4551, %v5975, %v5972
        %v6017 = vsel %vm4553, %v5978, %v6016
        %v6018 = vsel %vm4555, %v5981, %v6017
        %v6019 = vsel %vm4551, %v5987, %v5984
        %v6020 = vsel %vm4553, %v5990, %v6019
        %v6021 = vsel %vm4555, %v5993, %v6020
        %v6026 = vcombine.low %v6012, %v6018
        %v6028 = vunpack.c.l.s4 1983009808
        %v6029 = vunpack.c.0.s8 %v6028
        %v6030 = vlaneseq
        %v6031 = vshrl.u32 %v6030, 7
        %v6032 = vsub.s32 %v6029, %v6031
        %v6033 = vrot.slane %v6026, %v6032
        %v6034 = vcombine.low %v6015, %v6021
        %v6036 = vunpack.c.l.s4 1983009808
        %v6037 = vunpack.c.0.s8 %v6036
        %v6038 = vlaneseq
        %v6039 = vshrl.u32 %v6038, 7
        %v6040 = vsub.s32 %v6037, %v6039
        %v6041 = vrot.slane %v6034, %v6040
        %v6042 = vcombine.low %v6033, %v6041
        %v6043 = vcombine.high %v6033, %v6041
        %v6045 = vunpack.c.l.s4 1934713408
        %v6046 = vunpack.c.0.s8 %v6045
        %v6047 = vlaneseq
        %v6048 = vshrl.u32 %v6047, 7
        %v6049 = vsub.s32 %v6046, %v6048
        %v6050 = vrot.slane %v6042, %v6049
        %v6052 = vunpack.c.l.s4 1934713408
        %v6053 = vunpack.c.0.s8 %v6052
        %v6054 = vlaneseq
        %v6055 = vshrl.u32 %v6054, 7
        %v6056 = vsub.s32 %v6053, %v6055
        %v6057 = vrot.slane %v6043, %v6056
        %v6058 = vcombine.high %v6050, 0.0
        %v6059 = vcombine.high %v6057, 0.0
        %6061 = vrot.lane.b32.xlu0 %v6058, 8
        %v6062 = vpop.permute.xlu0 %6061
        %6065 = vrot.lane.b32.xlu0 %v6057, 16
        %v6066 = vpop.permute.xlu0 %6065
        %6069 = vrot.lane.b32.xlu0 %v6059, 24
        %v6070 = vpop.permute.xlu0 %6069
        %v6072 = vsel %vm4293, %v6050, %v6062
        %vm6073 = vcmask 130048
        %v6074 = vsel %vm6073, %v6072, %v6066
        %vm6075 = vcmask 195584
        %v6076 = vsel %vm6075, %v6074, %v6070
        %vm6077 = vcmask 257024
        %6078 = vst.msk [vmem:[%s217] sm:$0xf] %vm6077, %v6076
        %s6079 = sand.u32 %s137, 1
        %s6080 = scalar_lea.sflag [#allocation3], %s6079
        %s6081 = sand.u32 %s137, 1
        %s6082 = smul.addr %s6081, 4
        %s6083 = scalar_lea.vmem [#allocation2], %s6082
        // Predicated region
        $region41: #{tpu_custom_call.1} parent=39 // pred_check
          %p6084 = pneg %p147
        $region42: #{tpu_custom_call.1} parent=39 // pred_check_branch
          %6086 = sbr.rel (%p6084) target = $region44
        $region43: #{tpu_custom_call.1} parent=39 // pred_region
          %s6088 = ssub.s32 64, 64
          %6089 = vsyncadd %s6080, %s6088
          %s6090 = smul.addr %s19, 64
          %s6091 = scalar_lea.hbm %s5, %s6090
          %s6093 = sshll.u32 %s6083, 4
          %s6094 = int_to_ptr.vmem [resolvable:$true] %s6093
          %6096 = dma.vmem_to_hbm [thread:$0]  %s6094, 64, %s6091, %s6080
        $region44: #{tpu_custom_call.1} parent=39 // pred_fallthru
          _
      $region40: #{tpu_custom_call.1} parent=5 // pred_fallthru
        _
      %p6097 = scmp.le.s32.totalorder 2, %s14
      // Predicated region
      $region45: #{tpu_custom_call.1} parent=5 // pred_check
        %p6098 = pneg %p6097
      $region46: #{tpu_custom_call.1} parent=5 // pred_check_branch
        %6100 = sbr.rel (%p6098) target = $region48
      $region47: #{tpu_custom_call.1} parent=5 // pred_region
        %s6101 = ssub.s32 %s14, 2
        // Predicated region
        $region49: #{tpu_custom_call.1} parent=47 // pred_check
          %p6102 = pneg %p153
        $region50: #{tpu_custom_call.1} parent=47 // pred_check_branch
          %6104 = sbr.rel (%p6102) target = $region52
        $region51: #{tpu_custom_call.1} parent=47 // pred_region
          %s6105 = sand.u32 %s138, 1
          %s6106 = scalar_lea.sflag [#allocation3], %s6105
          %s6107 = sand.u32 %s138, 1
          %s6108 = smul.addr %s6107, 4
          %s6109 = scalar_lea.vmem [#allocation2], %s6108
          %6110 = dma.done %s6106, 64
        $region52: #{tpu_custom_call.1} parent=47 // pred_fallthru
          _
      $region48: #{tpu_custom_call.1} parent=5 // pred_fallthru
        _
    $region6: #{tpu_custom_call.1} parent=1 // loop_footer
      %s18 = sadd.s32 1, %s14
    $region7: #{tpu_custom_call.1} parent=1 // loop_footer_branch
      %13 = sbr.rel target = $region3
    $region8: #{tpu_custom_call.1} parent=1 // loop_exit
      _
    %6111 = vsyncpa [#allocation3], 1
    %s6112 = scalar_lea.sflag [#allocation3], 1
    %6113 = vsyncpa %s6112, 1

</llo_original>
